<compile_context>
chip_gen: v7x
topology: tpu7x:2x2x1
jax: 0.10.0
libtpu: 0.0.40
codegen_flags: <defaults>
</compile_context>

<pallas_src>
import functools

import jax
import jax.numpy as jnp
from jax.experimental import pallas as pl
from jax.experimental.pallas import tpu as pltpu


def _round_up(x, m):
    return (x + m - 1) // m * m


def _double_conv_kernel(xp_ref, w1_ref, s1_ref, t1_ref, w2_ref, s2_ref, t2_ref,
                        o_ref, y_ref, *, H, W):
    """Fused (conv3x3 + BN + ReLU) x 2 for one (batch, row-strip) tile.

    xp_ref : (H+4, WP, Cip)    zero-padded input image (resident in VMEM)
    w1_ref : (9*Cip, Cmp)      conv1 weights in im2col layout
    s1_ref, t1_ref : (1, Cmp)  folded BN1 scale / shift (f32)
    w2_ref : (9*Cmp, Cop)      conv2 weights in im2col layout
    s2_ref, t2_ref : (1, Cop)  folded BN2 scale / shift (f32)
    o_ref  : (TH, Wo, Cop)     output row strip (lane-dense channels)
    y_ref  : (TH+2, Wp2, Cmp)  VMEM scratch: conv1 activation incl. conv2 halo
    """
    TH, Wo, Cop = o_ref.shape
    TH2, Wp2, Cmp = y_ref.shape
    Cip = xp_ref.shape[-1]
    # First output row of this strip (aligned hint helps the dynamic slices).
    r0 = pl.multiple_of(pl.program_id(1) * TH, TH)

    # ---- Stage 1: conv1 + BN1 + ReLU over (TH+2, Wp2) positions -------------
    # Buffer index (a, b) holds conv1 output at image position
    # (row r0-1+a, col b-1); positions outside the image are conv2's zero
    # padding and are masked to exact zeros below.
    cols = []
    for dh in range(3):
        band = xp_ref[pl.ds(r0 + dh, TH2), :, :]          # (TH2, WP, Cip)
        for dw in range(3):
            cols.append(band[:, dw:dw + Wp2, :])          # (TH2, Wp2, Cip)
    p1 = jnp.concatenate(cols, axis=-1).reshape(TH2 * Wp2, 9 * Cip)
    y = jnp.dot(p1, w1_ref[...], preferred_element_type=jnp.float32)
    y = jnp.maximum(y * s1_ref[...] + t1_ref[...], 0.0)   # f32 BN + ReLU
    y = y.reshape(TH2, Wp2, Cmp)

    # Zero out everything outside the real image (conv2's implicit padding).
    row = jax.lax.broadcasted_iota(jnp.int32, (TH2, Wp2, Cmp), 0) + (r0 - 1)
    col = jax.lax.broadcasted_iota(jnp.int32, (TH2, Wp2, Cmp), 1) - 1
    valid = (row >= 0) & (row < H) & (col >= 0) & (col < W)
    y_ref[...] = jnp.where(valid, y, 0.0).astype(y_ref.dtype)

    # ---- Stage 2: conv2 + BN2 + ReLU over (TH, Wo) positions -----------------
    cols2 = [y_ref[dh:dh + TH, dw:dw + Wo, :]
             for dh in range(3) for dw in range(3)]
    p2 = jnp.concatenate(cols2, axis=-1).reshape(TH * Wo, 9 * Cmp)
    z = jnp.dot(p2, w2_ref[...], preferred_element_type=jnp.float32)
    z = jnp.maximum(z * s2_ref[...] + t2_ref[...], 0.0)
    o_ref[...] = z.reshape(TH, Wo, Cop).astype(o_ref.dtype)


def _fold_bn(conv_bias, gamma, beta, mean, var, eps=1e-5):
    scale = gamma / jnp.sqrt(var + eps)
    shift = beta + (conv_bias - mean) * scale
    return scale, shift


@functools.partial(jax.jit, static_argnames=("compute_dtype", "tile_h"))
def double_conv_forward(x_nchw, params, compute_dtype=jnp.bfloat16, tile_h=8):
    """Forward pass of DoubleConv. Input/output are NCHW like PyTorch."""
    # TODO(synk): keeping the whole model NHWC would remove these transposes.
    x = jnp.transpose(x_nchw, (0, 2, 3, 1))               # NCHW -> NHWC
    N, H, W, Cin = x.shape
    Cout = params["w1"].shape[-1]

    LANE, SUB = 128, 16
    Cip = _round_up(Cin, LANE)          # padded conv1 input channels
    Cmp = _round_up(Cout, LANE)         # padded conv1 output / conv2 input ch.
    Cop = Cmp                           # padded conv2 output channels

    th = tile_h if (tile_h and 0 < tile_h <= H and H % tile_h == 0) else H
    Wo = _round_up(W, SUB)              # stage-2 compute width (tile aligned)
    Wp2 = Wo + SUB                      # stage-1 compute width (conv2 halo)
    WP = Wp2 + 2                        # padded input width kept in VMEM

    # Fold conv bias + BatchNorm(eval) into per-channel scale/shift (f32).
    s1, t1 = _fold_bn(params["b1"], params["gamma1"], params["beta1"],
                      params["mean1"], params["var1"])
    s2, t2 = _fold_bn(params["b2"], params["gamma2"], params["beta2"],
                      params["mean2"], params["var2"])
    s1p = jnp.pad(s1, (0, Cmp - Cout)).reshape(1, Cmp).astype(jnp.float32)
    t1p = jnp.pad(t1, (0, Cmp - Cout)).reshape(1, Cmp).astype(jnp.float32)
    s2p = jnp.pad(s2, (0, Cop - Cout)).reshape(1, Cop).astype(jnp.float32)
    t2p = jnp.pad(t2, (0, Cop - Cout)).reshape(1, Cop).astype(jnp.float32)

    # Weights: HWIO -> channel-padded -> (9*Cin_pad, Cout_pad) im2col layout.
    w1p = jnp.pad(params["w1"], ((0, 0), (0, 0), (0, Cip - Cin), (0, Cmp - Cout)))
    w1p = w1p.reshape(9 * Cip, Cmp).astype(compute_dtype)
    w2p = jnp.pad(params["w2"], ((0, 0), (0, 0), (0, Cmp - Cout), (0, Cop - Cout)))
    w2p = w2p.reshape(9 * Cmp, Cop).astype(compute_dtype)

    # Input: one pad op covers the spatial halo of BOTH convs and the channel
    # padding to the 128-lane width.
    xp = jnp.pad(x, ((0, 0), (2, 2), (2, WP - 2 - W), (0, Cip - Cin)))
    xp = xp.astype(compute_dtype)

    grid = (N, H // th)
    kernel = functools.partial(_double_conv_kernel, H=H, W=W)

    # Advisory cost hint so XLA schedules sensibly around the custom call.
    item = jnp.dtype(compute_dtype).itemsize
    flops = 2 * N * (H // th) * ((th + 2) * Wp2 * (9 * Cip) * Cmp
                                 + th * Wo * (9 * Cmp) * Cop)
    bytes_accessed = (N * (H + 4) * WP * Cip * item
                      + 9 * Cip * Cmp * item + 9 * Cmp * Cop * item
                      + N * H * Wo * Cop * jnp.dtype(x.dtype).itemsize)
    cost = pl.CostEstimate(flops=flops, transcendentals=0,
                           bytes_accessed=bytes_accessed)

    out_padded = pl.pallas_call(
        kernel,
        out_shape=jax.ShapeDtypeStruct((N, H, Wo, Cop), x.dtype),
        grid=grid,
        in_specs=[
            # Full padded image per batch element (block index constant in h ->
            # stays resident in VMEM across the row strips of one image).
            pl.BlockSpec((None, H + 4, WP, Cip), lambda n, h: (n, 0, 0, 0)),
            pl.BlockSpec((9 * Cip, Cmp), lambda n, h: (0, 0)),
            pl.BlockSpec((1, Cmp), lambda n, h: (0, 0)),
            pl.BlockSpec((1, Cmp), lambda n, h: (0, 0)),
            pl.BlockSpec((9 * Cmp, Cop), lambda n, h: (0, 0)),
            pl.BlockSpec((1, Cop), lambda n, h: (0, 0)),
            pl.BlockSpec((1, Cop), lambda n, h: (0, 0)),
        ],
        out_specs=pl.BlockSpec((None, th, Wo, Cop), lambda n, h: (n, h, 0, 0)),
        scratch_shapes=[pltpu.VMEM((th + 2, Wp2, Cmp), compute_dtype)],
        compiler_params=pltpu.CompilerParams(
            dimension_semantics=("parallel", "parallel"),
            vmem_limit_bytes=32 * 1024 * 1024),
        cost_estimate=cost,
    )(xp, w1p, s1p, t1p, w2p, s2p, t2p)

    out = out_padded[:, :, :W, :Cout]                      # drop padding
    return jnp.transpose(out, (0, 3, 1, 2))                # NHWC -> NCHW


def init_double_conv_params(key, in_channels, out_channels):
    """Deterministic parameter init matching the PyTorch module's shapes."""
    params = {}
    k1, k2, k3, k4 = jax.random.split(key, 4)

    # Conv2d weights in PyTorch are (Cout, Cin, kh, kw); store as HWIO.
    def conv_init(kw, kb, cin, cout):
        fan_in = cin * 9
        bound = 1.0 / jnp.sqrt(fan_in)
        w = jax.random.uniform(kw, (cout, cin, 3, 3), jnp.float32, -bound, bound)
        b = jax.random.uniform(kb, (cout,), jnp.float32, -bound, bound)
        return jnp.transpose(w, (2, 3, 1, 0)), b           # -> (3,3,Cin,Cout)

    params["w1"], params["b1"] = conv_init(k1, k2, in_channels, out_channels)
    params["w2"], params["b2"] = conv_init(k3, k4, out_channels, out_channels)
    # BatchNorm2d init: gamma=1, beta=0, running_mean=0, running_var=1.
    for i in (1, 2):
        params[f"gamma{i}"] = jnp.ones((out_channels,), jnp.float32)
        params[f"beta{i}"] = jnp.zeros((out_channels,), jnp.float32)
        params[f"mean{i}"] = jnp.zeros((out_channels,), jnp.float32)
        params[f"var{i}"] = jnp.ones((out_channels,), jnp.float32)
    return params


def _reference_forward(x_nchw, params):
    """Pure-JAX reference (lax.conv, f32) for correctness check."""
    def conv(x_nhwc, w_hwio, scale, shift):
        y = jax.lax.conv_general_dilated(
            x_nhwc, w_hwio, window_strides=(1, 1), padding=((1, 1), (1, 1)),
            dimension_numbers=("NHWC", "HWIO", "NHWC"))
        return jnp.maximum(y * scale + shift, 0.0)

    x = jnp.transpose(x_nchw, (0, 2, 3, 1))
    s1, t1 = _fold_bn(params["b1"], params["gamma1"], params["beta1"],
                      params["mean1"], params["var1"])
    x = conv(x, params["w1"], s1, t1)
    s2, t2 = _fold_bn(params["b2"], params["gamma2"], params["beta2"],
                      params["mean2"], params["var2"])
    x = conv(x, params["w2"], s2, t2)
    return jnp.transpose(x, (0, 3, 1, 2))


if __name__ == "__main__":
    key = jax.random.PRNGKey(0)
    k_x, k_p = jax.random.split(key)

    N, C_IN, C_OUT, H, W = 2, 4, 8, 16, 16
    x = jax.random.normal(k_x, (N, C_IN, H, W), jnp.float32)
    params = init_double_conv_params(k_p, C_IN, C_OUT)

    ref = _reference_forward(x, params)

    # Optimized path: bf16 MXU inputs, f32 accumulation + f32 BN/ReLU epilogue.
    out = jax.block_until_ready(double_conv_forward(x, params))
    assert out.shape == (N, C_OUT, H, W), out.shape
    assert jnp.allclose(out, ref, atol=2e-2, rtol=2e-2), "bf16 path mismatch"

    # Full-f32 path through the same kernel for a tight numerical check.
    out_f32 = jax.block_until_ready(
        double_conv_forward(x, params, compute_dtype=jnp.float32))
    assert jnp.allclose(out_f32, ref, atol=1e-4, rtol=1e-4), "f32 path mismatch"

    print("KERNEL_OK")
</pallas_src>

<mosaic_0001>
module attributes {stable_mosaic.version = 11 : i64} {
  func.func @_double_conv_kernel(%arg0: i32, %arg1: i32, %arg2: memref<1x20x34x128xbf16, #tpu.memory_space<vmem>>, %arg3: memref<1152x128xbf16, #tpu.memory_space<vmem>>, %arg4: memref<1x128xf32, #tpu.memory_space<vmem>>, %arg5: memref<1x128xf32, #tpu.memory_space<vmem>>, %arg6: memref<1152x128xbf16, #tpu.memory_space<vmem>>, %arg7: memref<1x128xf32, #tpu.memory_space<vmem>>, %arg8: memref<1x128xf32, #tpu.memory_space<vmem>>, %arg9: memref<1x8x16x128xf32, #tpu.memory_space<vmem>>, %arg10: memref<10x32x128xbf16, #tpu.memory_space<vmem>>) attributes {dimension_semantics = [#tpu.dimension_semantics<parallel>, #tpu.dimension_semantics<parallel>], iteration_bounds = array<i64: 2, 2>, scalar_prefetch = 0 : i64, scratch_operands = 1 : i64, tpu.core_type = #tpu.core_type<tc>, window_params = [{transform_indices = @transform_0, window_bounds = array<i64: 1, 20, 34, 128>}, {pipeline_mode = #tpu.pipeline_mode<synchronous>, transform_indices = @transform_1, window_bounds = array<i64: 1152, 128>}, {pipeline_mode = #tpu.pipeline_mode<synchronous>, transform_indices = @transform_2, window_bounds = array<i64: 1, 128>}, {pipeline_mode = #tpu.pipeline_mode<synchronous>, transform_indices = @transform_3, window_bounds = array<i64: 1, 128>}, {pipeline_mode = #tpu.pipeline_mode<synchronous>, transform_indices = @transform_4, window_bounds = array<i64: 1152, 128>}, {pipeline_mode = #tpu.pipeline_mode<synchronous>, transform_indices = @transform_5, window_bounds = array<i64: 1, 128>}, {pipeline_mode = #tpu.pipeline_mode<synchronous>, transform_indices = @transform_6, window_bounds = array<i64: 1, 128>}, {transform_indices = @transform_7, window_bounds = array<i64: 1, 8, 16, 128>}]} {
    %c8_i32 = arith.constant 8 : i32
    %0 = arith.muli %arg1, %c8_i32 : i32
    %1 = tpu.assume_multiple %0, 8 : i32
    %c0_i32 = arith.constant 0 : i32
    %2 = arith.addi %1, %c0_i32 : i32
    %c0 = arith.constant 0 : index
    %3 = arith.index_cast %2 : i32 to index
    %c0_0 = arith.constant 0 : index
    %c0_1 = arith.constant 0 : index
    %4 = vector.load %arg2[%c0, %3, %c0_0, %c0_1] : memref<1x20x34x128xbf16, #tpu.memory_space<vmem>>, vector<1x10x34x128xbf16>
    %5 = vector.shape_cast %4 : vector<1x10x34x128xbf16> to vector<10x34x128xbf16>
    %6 = vector.extract_strided_slice %5 {offsets = [0, 0, 0], sizes = [10, 32, 128], strides = [1, 1, 1]} : vector<10x34x128xbf16> to vector<10x32x128xbf16>
    %7 = vector.extract_strided_slice %5 {offsets = [0, 1, 0], sizes = [10, 32, 128], strides = [1, 1, 1]} : vector<10x34x128xbf16> to vector<10x32x128xbf16>
    %8 = vector.extract_strided_slice %5 {offsets = [0, 2, 0], sizes = [10, 32, 128], strides = [1, 1, 1]} : vector<10x34x128xbf16> to vector<10x32x128xbf16>
    %c1_i32 = arith.constant 1 : i32
    %9 = arith.addi %1, %c1_i32 : i32
    %c0_2 = arith.constant 0 : index
    %10 = arith.index_cast %9 : i32 to index
    %c0_3 = arith.constant 0 : index
    %c0_4 = arith.constant 0 : index
    %11 = vector.load %arg2[%c0_2, %10, %c0_3, %c0_4] : memref<1x20x34x128xbf16, #tpu.memory_space<vmem>>, vector<1x10x34x128xbf16>
    %12 = vector.shape_cast %11 : vector<1x10x34x128xbf16> to vector<10x34x128xbf16>
    %13 = vector.extract_strided_slice %12 {offsets = [0, 0, 0], sizes = [10, 32, 128], strides = [1, 1, 1]} : vector<10x34x128xbf16> to vector<10x32x128xbf16>
    %14 = vector.extract_strided_slice %12 {offsets = [0, 1, 0], sizes = [10, 32, 128], strides = [1, 1, 1]} : vector<10x34x128xbf16> to vector<10x32x128xbf16>
    %15 = vector.extract_strided_slice %12 {offsets = [0, 2, 0], sizes = [10, 32, 128], strides = [1, 1, 1]} : vector<10x34x128xbf16> to vector<10x32x128xbf16>
    %c2_i32 = arith.constant 2 : i32
    %16 = arith.addi %1, %c2_i32 : i32
    %c0_5 = arith.constant 0 : index
    %17 = arith.index_cast %16 : i32 to index
    %c0_6 = arith.constant 0 : index
    %c0_7 = arith.constant 0 : index
    %18 = vector.load %arg2[%c0_5, %17, %c0_6, %c0_7] : memref<1x20x34x128xbf16, #tpu.memory_space<vmem>>, vector<1x10x34x128xbf16>
    %19 = vector.shape_cast %18 : vector<1x10x34x128xbf16> to vector<10x34x128xbf16>
    %20 = vector.extract_strided_slice %19 {offsets = [0, 0, 0], sizes = [10, 32, 128], strides = [1, 1, 1]} : vector<10x34x128xbf16> to vector<10x32x128xbf16>
    %21 = vector.extract_strided_slice %19 {offsets = [0, 1, 0], sizes = [10, 32, 128], strides = [1, 1, 1]} : vector<10x34x128xbf16> to vector<10x32x128xbf16>
    %22 = vector.extract_strided_slice %19 {offsets = [0, 2, 0], sizes = [10, 32, 128], strides = [1, 1, 1]} : vector<10x34x128xbf16> to vector<10x32x128xbf16>
    %23 = tpu.concatenate %6, %7, %8, %13, %14, %15, %20, %21, %22 in 2 : vector<10x32x128xbf16>, vector<10x32x128xbf16>, vector<10x32x128xbf16>, vector<10x32x128xbf16>, vector<10x32x128xbf16>, vector<10x32x128xbf16>, vector<10x32x128xbf16>, vector<10x32x128xbf16>, vector<10x32x128xbf16> -> vector<10x32x1152xbf16>
    %24 = vector.shape_cast %23 : vector<10x32x1152xbf16> to vector<320x1152xbf16>
    %c0_8 = arith.constant 0 : index
    %c0_9 = arith.constant 0 : index
    %25 = vector.load %arg3[%c0_8, %c0_9] : memref<1152x128xbf16, #tpu.memory_space<vmem>>, vector<1152x128xbf16>
    %cst = arith.constant dense<0.000000e+00> : vector<320x128xf32>
    %26 = tpu.matmul %24, %25, %cst {dimension_numbers = #tpu.dot_dimension_numbers<[1], [0], [0], [1], [0, 0, 1, 1], [], []>} : vector<320x1152xbf16>, vector<1152x128xbf16>, vector<320x128xf32> -> vector<320x128xf32>
    %c0_10 = arith.constant 0 : index
    %c0_11 = arith.constant 0 : index
    %27 = vector.load %arg4[%c0_10, %c0_11] : memref<1x128xf32, #tpu.memory_space<vmem>>, vector<1x128xf32>
    %28 = vector.broadcast %27 : vector<1x128xf32> to vector<320x128xf32>
    %29 = arith.mulf %26, %28 : vector<320x128xf32>
    %c0_12 = arith.constant 0 : index
    %c0_13 = arith.constant 0 : index
    %30 = vector.load %arg5[%c0_12, %c0_13] : memref<1x128xf32, #tpu.memory_space<vmem>>, vector<1x128xf32>
    %31 = vector.broadcast %30 : vector<1x128xf32> to vector<320x128xf32>
    %32 = arith.addf %29, %31 : vector<320x128xf32>
    %cst_14 = arith.constant 0.000000e+00 : f32
    %33 = vector.broadcast %cst_14 : f32 to vector<320x128xf32>
    %34 = arith.maximumf %32, %33 : vector<320x128xf32>
    %35 = vector.shape_cast %34 : vector<320x128xf32> to vector<10x32x128xf32>
    %36 = tpu.iota {dimensions = array<i32: 0>} : vector<10x32x128xi32>
    %c1_i32_15 = arith.constant 1 : i32
    %37 = arith.subi %1, %c1_i32_15 : i32
    %38 = vector.broadcast %37 : i32 to vector<10x32x128xi32>
    %39 = arith.addi %36, %38 : vector<10x32x128xi32>
    %40 = tpu.iota {dimensions = array<i32: 1>} : vector<10x32x128xi32>
    %c1_i32_16 = arith.constant 1 : i32
    %41 = vector.broadcast %c1_i32_16 : i32 to vector<10x32x128xi32>
    %42 = arith.subi %40, %41 : vector<10x32x128xi32>
    %c0_i32_17 = arith.constant 0 : i32
    %43 = vector.broadcast %c0_i32_17 : i32 to vector<10x32x128xi32>
    %44 = arith.cmpi sge, %39, %43 : vector<10x32x128xi32>
    %c16_i32 = arith.constant 16 : i32
    %45 = vector.broadcast %c16_i32 : i32 to vector<10x32x128xi32>
    %46 = arith.cmpi slt, %39, %45 : vector<10x32x128xi32>
    %47 = arith.andi %44, %46 : vector<10x32x128xi1>
    %c0_i32_18 = arith.constant 0 : i32
    %48 = vector.broadcast %c0_i32_18 : i32 to vector<10x32x128xi32>
    %49 = arith.cmpi sge, %42, %48 : vector<10x32x128xi32>
    %50 = arith.andi %47, %49 : vector<10x32x128xi1>
    %c16_i32_19 = arith.constant 16 : i32
    %51 = vector.broadcast %c16_i32_19 : i32 to vector<10x32x128xi32>
    %52 = arith.cmpi slt, %42, %51 : vector<10x32x128xi32>
    %53 = arith.andi %50, %52 : vector<10x32x128xi1>
    %cst_20 = arith.constant 0.000000e+00 : f32
    %54 = vector.broadcast %cst_20 : f32 to vector<10x32x128xf32>
    %55 = arith.select %53, %35, %54 : vector<10x32x128xi1>, vector<10x32x128xf32>
    %56 = arith.truncf %55 : vector<10x32x128xf32> to vector<10x32x128xbf16>
    %c0_21 = arith.constant 0 : index
    %c0_22 = arith.constant 0 : index
    %c0_23 = arith.constant 0 : index
    %57 = vector.load %arg10[%c0_21, %c0_22, %c0_23] : memref<10x32x128xbf16, #tpu.memory_space<vmem>>, vector<10x32x128xbf16>
    tpu.vector_store %arg10[%c0_21, %c0_22, %c0_23], %56 {strides = array<i32>} : memref<10x32x128xbf16, #tpu.memory_space<vmem>>, vector<10x32x128xbf16>,
    %c0_24 = arith.constant 0 : index
    %c0_25 = arith.constant 0 : index
    %c0_26 = arith.constant 0 : index
    %58 = vector.load %arg10[%c0_24, %c0_25, %c0_26] : memref<10x32x128xbf16, #tpu.memory_space<vmem>>, vector<8x16x128xbf16>
    %c0_27 = arith.constant 0 : index
    %c1 = arith.constant 1 : index
    %c0_28 = arith.constant 0 : index
    %59 = vector.load %arg10[%c0_27, %c1, %c0_28] : memref<10x32x128xbf16, #tpu.memory_space<vmem>>, vector<8x16x128xbf16>
    %c0_29 = arith.constant 0 : index
    %c2 = arith.constant 2 : index
    %c0_30 = arith.constant 0 : index
    %60 = vector.load %arg10[%c0_29, %c2, %c0_30] : memref<10x32x128xbf16, #tpu.memory_space<vmem>>, vector<8x16x128xbf16>
    %c1_31 = arith.constant 1 : index
    %c0_32 = arith.constant 0 : index
    %c0_33 = arith.constant 0 : index
    %61 = vector.load %arg10[%c1_31, %c0_32, %c0_33] : memref<10x32x128xbf16, #tpu.memory_space<vmem>>, vector<8x16x128xbf16>
    %c1_34 = arith.constant 1 : index
    %c1_35 = arith.constant 1 : index
    %c0_36 = arith.constant 0 : index
    %62 = vector.load %arg10[%c1_34, %c1_35, %c0_36] : memref<10x32x128xbf16, #tpu.memory_space<vmem>>, vector<8x16x128xbf16>
    %c1_37 = arith.constant 1 : index
    %c2_38 = arith.constant 2 : index
    %c0_39 = arith.constant 0 : index
    %63 = vector.load %arg10[%c1_37, %c2_38, %c0_39] : memref<10x32x128xbf16, #tpu.memory_space<vmem>>, vector<8x16x128xbf16>
    %c2_40 = arith.constant 2 : index
    %c0_41 = arith.constant 0 : index
    %c0_42 = arith.constant 0 : index
    %64 = vector.load %arg10[%c2_40, %c0_41, %c0_42] : memref<10x32x128xbf16, #tpu.memory_space<vmem>>, vector<8x16x128xbf16>
    %c2_43 = arith.constant 2 : index
    %c1_44 = arith.constant 1 : index
    %c0_45 = arith.constant 0 : index
    %65 = vector.load %arg10[%c2_43, %c1_44, %c0_45] : memref<10x32x128xbf16, #tpu.memory_space<vmem>>, vector<8x16x128xbf16>
    %c2_46 = arith.constant 2 : index
    %c2_47 = arith.constant 2 : index
    %c0_48 = arith.constant 0 : index
    %66 = vector.load %arg10[%c2_46, %c2_47, %c0_48] : memref<10x32x128xbf16, #tpu.memory_space<vmem>>, vector<8x16x128xbf16>
    %67 = tpu.concatenate %58, %59, %60, %61, %62, %63, %64, %65, %66 in 2 : vector<8x16x128xbf16>, vector<8x16x128xbf16>, vector<8x16x128xbf16>, vector<8x16x128xbf16>, vector<8x16x128xbf16>, vector<8x16x128xbf16>, vector<8x16x128xbf16>, vector<8x16x128xbf16>, vector<8x16x128xbf16> -> vector<8x16x1152xbf16>
    %68 = vector.shape_cast %67 : vector<8x16x1152xbf16> to vector<128x1152xbf16>
    %c0_49 = arith.constant 0 : index
    %c0_50 = arith.constant 0 : index
    %69 = vector.load %arg6[%c0_49, %c0_50] : memref<1152x128xbf16, #tpu.memory_space<vmem>>, vector<1152x128xbf16>
    %cst_51 = arith.constant dense<0.000000e+00> : vector<128x128xf32>
    %70 = tpu.matmul %68, %69, %cst_51 {dimension_numbers = #tpu.dot_dimension_numbers<[1], [0], [0], [1], [0, 0, 1, 1], [], []>} : vector<128x1152xbf16>, vector<1152x128xbf16>, vector<128x128xf32> -> vector<128x128xf32>
    %c0_52 = arith.constant 0 : index
    %c0_53 = arith.constant 0 : index
    %71 = vector.load %arg7[%c0_52, %c0_53] : memref<1x128xf32, #tpu.memory_space<vmem>>, vector<1x128xf32>
    %72 = vector.broadcast %71 : vector<1x128xf32> to vector<128x128xf32>
    %73 = arith.mulf %70, %72 : vector<128x128xf32>
    %c0_54 = arith.constant 0 : index
    %c0_55 = arith.constant 0 : index
    %74 = vector.load %arg8[%c0_54, %c0_55] : memref<1x128xf32, #tpu.memory_space<vmem>>, vector<1x128xf32>
    %75 = vector.broadcast %74 : vector<1x128xf32> to vector<128x128xf32>
    %76 = arith.addf %73, %75 : vector<128x128xf32>
    %cst_56 = arith.constant 0.000000e+00 : f32
    %77 = vector.broadcast %cst_56 : f32 to vector<128x128xf32>
    %78 = arith.maximumf %76, %77 : vector<128x128xf32>
    %79 = vector.shape_cast %78 : vector<128x128xf32> to vector<8x16x128xf32>
    %c0_57 = arith.constant 0 : index
    %c0_58 = arith.constant 0 : index
    %c0_59 = arith.constant 0 : index
    %c0_60 = arith.constant 0 : index
    %80 = vector.load %arg9[%c0_57, %c0_58, %c0_59, %c0_60] : memref<1x8x16x128xf32, #tpu.memory_space<vmem>>, vector<1x8x16x128xf32>
    %81 = vector.shape_cast %80 : vector<1x8x16x128xf32> to vector<8x16x128xf32>
    %82 = vector.shape_cast %79 : vector<8x16x128xf32> to vector<1x8x16x128xf32>
    tpu.vector_store %arg9[%c0_57, %c0_58, %c0_59, %c0_60], %82 {strides = array<i32>} : memref<1x8x16x128xf32, #tpu.memory_space<vmem>>, vector<1x8x16x128xf32>,
    return
  }
  func.func @transform_0(%arg0: i32, %arg1: i32) -> (i32, i32, i32, i32) {
    %c0_i32 = arith.constant 0 : i32
    %c0_i32_0 = arith.constant 0 : i32
    %c0_i32_1 = arith.constant 0 : i32
    %c0_i32_2 = arith.constant 0 : i32
    return %arg0, %c0_i32, %c0_i32_0, %c0_i32_1 : i32, i32, i32, i32
  }
  func.func @transform_1(%arg0: i32, %arg1: i32) -> (i32, i32) {
    %c0_i32 = arith.constant 0 : i32
    %c0_i32_0 = arith.constant 0 : i32
    %c0_i32_1 = arith.constant 0 : i32
    return %c0_i32, %c0_i32_0 : i32, i32
  }
  func.func @transform_2(%arg0: i32, %arg1: i32) -> (i32, i32) {
    %c0_i32 = arith.constant 0 : i32
    %c0_i32_0 = arith.constant 0 : i32
    %c0_i32_1 = arith.constant 0 : i32
    return %c0_i32, %c0_i32_0 : i32, i32
  }
  func.func @transform_3(%arg0: i32, %arg1: i32) -> (i32, i32) {
    %c0_i32 = arith.constant 0 : i32
    %c0_i32_0 = arith.constant 0 : i32
    %c0_i32_1 = arith.constant 0 : i32
    return %c0_i32, %c0_i32_0 : i32, i32
  }
  func.func @transform_4(%arg0: i32, %arg1: i32) -> (i32, i32) {
    %c0_i32 = arith.constant 0 : i32
    %c0_i32_0 = arith.constant 0 : i32
    %c0_i32_1 = arith.constant 0 : i32
    return %c0_i32, %c0_i32_0 : i32, i32
  }
  func.func @transform_5(%arg0: i32, %arg1: i32) -> (i32, i32) {
    %c0_i32 = arith.constant 0 : i32
    %c0_i32_0 = arith.constant 0 : i32
    %c0_i32_1 = arith.constant 0 : i32
    return %c0_i32, %c0_i32_0 : i32, i32
  }
  func.func @transform_6(%arg0: i32, %arg1: i32) -> (i32, i32) {
    %c0_i32 = arith.constant 0 : i32
    %c0_i32_0 = arith.constant 0 : i32
    %c0_i32_1 = arith.constant 0 : i32
    return %c0_i32, %c0_i32_0 : i32, i32
  }
  func.func @transform_7(%arg0: i32, %arg1: i32) -> (i32, i32, i32, i32) {
    %c0_i32 = arith.constant 0 : i32
    %c0_i32_0 = arith.constant 0 : i32
    %c0_i32_1 = arith.constant 0 : i32
    return %arg0, %arg1, %c0_i32, %c0_i32_0 : i32, i32, i32, i32
  }
}

</mosaic_0001>

<llo_original>
// kernel: double_conv_forward.1
$region0: #{double_conv_forward.1}
  #allocation0 [shape = 'u32[]', space=smem, size = 0x4, offset = 0x4, fixed_abs, tag = 'smem constant byte address 0x4 - core index']
  #allocation1 [shape = 'u32[144,128]{1,0:T(1,128)}', space=vmem, size = 0x12000, scoped, tag = 'internal scratch']
  #allocation2 [shape = 'bf16[10,32,128]{2,1,0:T(16,128)(2,1)}', space=vmem, size = 0x14000, scoped, tag = 'scratch operand']
  %s0 = inlined_call_operand.vmem [shape: bf16[2,20,34,128], index: 0, kind: input, shape index: {}]
  %s1 = inlined_call_operand.vmem [shape: bf16[1152,128], index: 1, kind: input, shape index: {}]
  %s2 = inlined_call_operand.vmem [shape: f32[1,128], index: 2, kind: input, shape index: {}]
  %s3 = inlined_call_operand.vmem [shape: f32[1,128], index: 3, kind: input, shape index: {}]
  %s4 = inlined_call_operand.vmem [shape: bf16[1152,128], index: 4, kind: input, shape index: {}]
  %s5 = inlined_call_operand.vmem [shape: f32[1,128], index: 5, kind: input, shape index: {}]
  %s6 = inlined_call_operand.vmem [shape: f32[1,128], index: 6, kind: input, shape index: {}]
  %s7 = inlined_call_operand.vmem [shape: f32[2,16,16,128], index: 7, kind: output, shape index: {}]
  %s8 = sld [smem:[#allocation0]]
  $region61: #{double_conv_forward.1} parent=0
    _
  %s10 = ssub.s32 1, %s8
  %s11 = scalar_select 0, %s10, %s8
  loop: start=0, step=1, limit=6
  $region2: #{double_conv_forward.1} parent=0 // loop_pre_header
    _
  $region3: #{double_conv_forward.1} parent=0 // loop_header
    %s13 = sphi 0, %s17
    %p14 = scmp.ge.s32.totalorder %s13, 6
    %s20 = sphi 0, %s32
    %s21 = sphi 0, %s28
    %s22 = sphi 0, %s20
    %s23 = sphi 0, %s21
    %s24 = sphi 0, %s22
    %s25 = sphi 0, %s23
    %s35 = sphi 0, %s37
    %s38 = sphi 0, %s35
    %s39 = sphi 0, %s38
    %s55 = sphi 0, %s39
    %s59 = sphi 0, %s59
    %s61 = sphi 0, %s59
    %s62 = sphi 0, %s61
    %s76 = sphi 0, %s62
    %s80 = sphi 0, %s80
    %s82 = sphi 0, %s80
    %s83 = sphi 0, %s82
    %s97 = sphi 0, %s83
    %s101 = sphi 0, %s101
    %s103 = sphi 0, %s101
    %s104 = sphi 0, %s103
    %s118 = sphi 0, %s104
    %s122 = sphi 0, %s122
    %s124 = sphi 0, %s122
    %s125 = sphi 0, %s124
    %s139 = sphi 0, %s125
    %s143 = sphi 0, %s143
    %s145 = sphi 0, %s143
    %s146 = sphi 0, %s145
    %s160 = sphi 0, %s146
    %s164 = sphi 0, %s164
    %s166 = sphi 0, %s164
    %s167 = sphi 0, %s166
    %s181 = sphi 0, %s167
    %s189 = sphi 0, %s191
    %s192 = sphi 0, %s189
    %s193 = sphi 0, %s192
    %s209 = sphi 0, %s193
  $region4: #{double_conv_forward.1} parent=0 // loop_header_branch
    %16 = sbr.rel (%p14) target = $region8
  $region5: #{double_conv_forward.1} parent=0 // loop_body
    %s18 = ssub.s32 %s13, 1
    %s19 = ssub.s32 %s13, 2
    %s26 = sadd.s32 1, %s21
    %p27 = scmp.ge.s32.totalorder %s26, 2
    %s28 = scalar_select %p27, 0, %s26
    %s29 = sadd.s32 1, %s20
    %s30 = scalar_select %p27, %s29, %s20
    %p31 = scmp.ge.s32.totalorder %s30, 2
    %s32 = scalar_select %p31, 0, %s30
    %s33 = ssub.s32 %s20, %s32
    %p34 = scmp.eq.s32.totalorder %s33, 0
    %s36 = sadd.s32 %s35, 1
    %s37 = scalar_select %p34, %s35, %s36
    %p40 = pneg %p34
    %p41 = scmp.eq.s32.totalorder %s13, 3
    %p42 = por %p40, %p41
    %p43 = scmp.ne.s32.totalorder %s35, %s38
    %p44 = scmp.eq.s32.totalorder %s13, 0
    %p45 = por %p43, %p44
    %p46 = scmp.ne.s32.totalorder %s35, %s38
    %p47 = scmp.eq.s32.totalorder %s18, 3
    %p48 = por %p46, %p47
    %p49 = scmp.ne.s32.totalorder %s38, %s39
    %p50 = scmp.eq.s32.totalorder %s18, 0
    %p51 = por %p49, %p50
    %p52 = scmp.ne.s32.totalorder %s38, %s39
    %p53 = scmp.eq.s32.totalorder %s19, 3
    %p54 = por %p52, %p53
    %p56 = scmp.ne.s32.totalorder %s39, %s55
    %p57 = scmp.eq.s32.totalorder %s19, 0
    %p58 = por %p56, %p57
    %s60 = sadd.s32 %s59, 1
    %p63 = scmp.eq.s32.totalorder %s13, 3
    %p64 = scmp.ne.s32.totalorder %s59, %s61
    %p65 = scmp.eq.s32.totalorder %s13, 0
    %p66 = por %p64, %p65
    %p67 = scmp.ne.s32.totalorder %s59, %s61
    %p68 = scmp.eq.s32.totalorder %s18, 3
    %p69 = por %p67, %p68
    %p70 = scmp.ne.s32.totalorder %s61, %s62
    %p71 = scmp.eq.s32.totalorder %s18, 0
    %p72 = por %p70, %p71
    %p73 = scmp.ne.s32.totalorder %s61, %s62
    %p74 = scmp.eq.s32.totalorder %s19, 3
    %p75 = por %p73, %p74
    %p77 = scmp.ne.s32.totalorder %s62, %s76
    %p78 = scmp.eq.s32.totalorder %s19, 0
    %p79 = por %p77, %p78
    %s81 = sadd.s32 %s80, 1
    %p84 = scmp.eq.s32.totalorder %s13, 3
    %p85 = scmp.ne.s32.totalorder %s80, %s82
    %p86 = scmp.eq.s32.totalorder %s13, 0
    %p87 = por %p85, %p86
    %p88 = scmp.ne.s32.totalorder %s80, %s82
    %p89 = scmp.eq.s32.totalorder %s18, 3
    %p90 = por %p88, %p89
    %p91 = scmp.ne.s32.totalorder %s82, %s83
    %p92 = scmp.eq.s32.totalorder %s18, 0
    %p93 = por %p91, %p92
    %p94 = scmp.ne.s32.totalorder %s82, %s83
    %p95 = scmp.eq.s32.totalorder %s19, 3
    %p96 = por %p94, %p95
    %p98 = scmp.ne.s32.totalorder %s83, %s97
    %p99 = scmp.eq.s32.totalorder %s19, 0
    %p100 = por %p98, %p99
    %s102 = sadd.s32 %s101, 1
    %p105 = scmp.eq.s32.totalorder %s13, 3
    %p106 = scmp.ne.s32.totalorder %s101, %s103
    %p107 = scmp.eq.s32.totalorder %s13, 0
    %p108 = por %p106, %p107
    %p109 = scmp.ne.s32.totalorder %s101, %s103
    %p110 = scmp.eq.s32.totalorder %s18, 3
    %p111 = por %p109, %p110
    %p112 = scmp.ne.s32.totalorder %s103, %s104
    %p113 = scmp.eq.s32.totalorder %s18, 0
    %p114 = por %p112, %p113
    %p115 = scmp.ne.s32.totalorder %s103, %s104
    %p116 = scmp.eq.s32.totalorder %s19, 3
    %p117 = por %p115, %p116
    %p119 = scmp.ne.s32.totalorder %s104, %s118
    %p120 = scmp.eq.s32.totalorder %s19, 0
    %p121 = por %p119, %p120
    %s123 = sadd.s32 %s122, 1
    %p126 = scmp.eq.s32.totalorder %s13, 3
    %p127 = scmp.ne.s32.totalorder %s122, %s124
    %p128 = scmp.eq.s32.totalorder %s13, 0
    %p129 = por %p127, %p128
    %p130 = scmp.ne.s32.totalorder %s122, %s124
    %p131 = scmp.eq.s32.totalorder %s18, 3
    %p132 = por %p130, %p131
    %p133 = scmp.ne.s32.totalorder %s124, %s125
    %p134 = scmp.eq.s32.totalorder %s18, 0
    %p135 = por %p133, %p134
    %p136 = scmp.ne.s32.totalorder %s124, %s125
    %p137 = scmp.eq.s32.totalorder %s19, 3
    %p138 = por %p136, %p137
    %p140 = scmp.ne.s32.totalorder %s125, %s139
    %p141 = scmp.eq.s32.totalorder %s19, 0
    %p142 = por %p140, %p141
    %s144 = sadd.s32 %s143, 1
    %p147 = scmp.eq.s32.totalorder %s13, 3
    %p148 = scmp.ne.s32.totalorder %s143, %s145
    %p149 = scmp.eq.s32.totalorder %s13, 0
    %p150 = por %p148, %p149
    %p151 = scmp.ne.s32.totalorder %s143, %s145
    %p152 = scmp.eq.s32.totalorder %s18, 3
    %p153 = por %p151, %p152
    %p154 = scmp.ne.s32.totalorder %s145, %s146
    %p155 = scmp.eq.s32.totalorder %s18, 0
    %p156 = por %p154, %p155
    %p157 = scmp.ne.s32.totalorder %s145, %s146
    %p158 = scmp.eq.s32.totalorder %s19, 3
    %p159 = por %p157, %p158
    %p161 = scmp.ne.s32.totalorder %s146, %s160
    %p162 = scmp.eq.s32.totalorder %s19, 0
    %p163 = por %p161, %p162
    %s165 = sadd.s32 %s164, 1
    %p168 = scmp.eq.s32.totalorder %s13, 3
    %p169 = scmp.ne.s32.totalorder %s164, %s166
    %p170 = scmp.eq.s32.totalorder %s13, 0
    %p171 = por %p169, %p170
    %p172 = scmp.ne.s32.totalorder %s164, %s166
    %p173 = scmp.eq.s32.totalorder %s18, 3
    %p174 = por %p172, %p173
    %p175 = scmp.ne.s32.totalorder %s166, %s167
    %p176 = scmp.eq.s32.totalorder %s18, 0
    %p177 = por %p175, %p176
    %p178 = scmp.ne.s32.totalorder %s166, %s167
    %p179 = scmp.eq.s32.totalorder %s19, 3
    %p180 = por %p178, %p179
    %p182 = scmp.ne.s32.totalorder %s167, %s181
    %p183 = scmp.eq.s32.totalorder %s19, 0
    %p184 = por %p182, %p183
    %s185 = ssub.s32 %s20, %s32
    %s186 = ssub.s32 %s21, %s28
    %s187 = sor.u32 %s185, %s186
    %p188 = scmp.eq.s32.totalorder %s187, 0
    %s190 = sadd.s32 %s189, 1
    %s191 = scalar_select %p188, %s189, %s190
    %p194 = pneg %p188
    %p195 = scmp.eq.s32.totalorder %s13, 3
    %p196 = por %p194, %p195
    %p197 = scmp.ne.s32.totalorder %s189, %s192
    %p198 = scmp.eq.s32.totalorder %s13, 0
    %p199 = por %p197, %p198
    %p200 = scmp.ne.s32.totalorder %s189, %s192
    %p201 = scmp.eq.s32.totalorder %s18, 3
    %p202 = por %p200, %p201
    %p203 = scmp.ne.s32.totalorder %s192, %s193
    %p204 = scmp.eq.s32.totalorder %s18, 0
    %p205 = por %p203, %p204
    %p206 = scmp.ne.s32.totalorder %s192, %s193
    %p207 = scmp.eq.s32.totalorder %s19, 3
    %p208 = por %p206, %p207
    %p210 = scmp.ne.s32.totalorder %s193, %s209
    %p211 = scmp.eq.s32.totalorder %s19, 0
    %p212 = por %p210, %p211
    %p213 = scmp.le.s32.totalorder 1, %s13
    %p214 = scmp.lt.s32.totalorder %s13, 5
    %p215 = pnand %p213, %p214
    %p216 = pneg %p215
    // Predicated region
    $region9: #{double_conv_forward.1} parent=5 // pred_check
      _
    $region10: #{double_conv_forward.1} parent=5 // pred_check_branch
      %218 = sbr.rel (%p215) target = $region12
    $region11: #{double_conv_forward.1} parent=5 // pred_region
      %s219 = ssub.s32 %s13, 1
      // Predicated region
      $region13: #{double_conv_forward.1} parent=11 // pred_check
        %p220 = pneg %p72
      $region14: #{double_conv_forward.1} parent=11 // pred_check_branch
        %222 = sbr.rel (%p220) target = $region16
      $region15: #{double_conv_forward.1} parent=11 // pred_region
        _
      $region16: #{double_conv_forward.1} parent=11 // pred_fallthru
        _
      // Predicated region
      $region17: #{double_conv_forward.1} parent=11 // pred_check
        %p223 = pneg %p93
      $region18: #{double_conv_forward.1} parent=11 // pred_check_branch
        %225 = sbr.rel (%p223) target = $region20
      $region19: #{double_conv_forward.1} parent=11 // pred_region
        _
      $region20: #{double_conv_forward.1} parent=11 // pred_fallthru
        _
      // Predicated region
      $region21: #{double_conv_forward.1} parent=11 // pred_check
        %p226 = pneg %p114
      $region22: #{double_conv_forward.1} parent=11 // pred_check_branch
        %228 = sbr.rel (%p226) target = $region24
      $region23: #{double_conv_forward.1} parent=11 // pred_region
        _
      $region24: #{double_conv_forward.1} parent=11 // pred_fallthru
        _
      // Predicated region
      $region25: #{double_conv_forward.1} parent=11 // pred_check
        %p229 = pneg %p135
      $region26: #{double_conv_forward.1} parent=11 // pred_check_branch
        %231 = sbr.rel (%p229) target = $region28
      $region27: #{double_conv_forward.1} parent=11 // pred_region
        _
      $region28: #{double_conv_forward.1} parent=11 // pred_fallthru
        _
      // Predicated region
      $region29: #{double_conv_forward.1} parent=11 // pred_check
        %p232 = pneg %p156
      $region30: #{double_conv_forward.1} parent=11 // pred_check_branch
        %234 = sbr.rel (%p232) target = $region32
      $region31: #{double_conv_forward.1} parent=11 // pred_region
        _
      $region32: #{double_conv_forward.1} parent=11 // pred_fallthru
        _
      // Predicated region
      $region33: #{double_conv_forward.1} parent=11 // pred_check
        %p235 = pneg %p177
      $region34: #{double_conv_forward.1} parent=11 // pred_check_branch
        %237 = sbr.rel (%p235) target = $region36
      $region35: #{double_conv_forward.1} parent=11 // pred_region
        _
      $region36: #{double_conv_forward.1} parent=11 // pred_fallthru
        _
    $region12: #{double_conv_forward.1} parent=5 // pred_fallthru
      _
    %p238 = scmp.lt.s32.totalorder %s13, 4
    // Predicated region
    $region37: #{double_conv_forward.1} parent=5 // pred_check
      %p239 = pneg %p238
    $region38: #{double_conv_forward.1} parent=5 // pred_check_branch
      %241 = sbr.rel (%p239) target = $region40
    $region39: #{double_conv_forward.1} parent=5 // pred_region
      // Predicated region
      $region41: #{double_conv_forward.1} parent=39 // pred_check
        %p242 = pneg %p45
      $region42: #{double_conv_forward.1} parent=39 // pred_check_branch
        %244 = sbr.rel (%p242) target = $region44
      $region43: #{double_conv_forward.1} parent=39 // pred_region
        %p245 = scmp.lt.s32.totalorder %s20, 1
        %s246 = scalar_select %p245, %s20, 1
        %s247 = smul.addr %s246, 100
        %s248 = smul.addr %s247, 4
        %s249 = scalar_lea.vmem %s0, %s248
      $region44: #{double_conv_forward.1} parent=39 // pred_fallthru
        _
    $region40: #{double_conv_forward.1} parent=5 // pred_fallthru
      _
    %p250 = scmp.le.s32.totalorder 1, %s13
    %p251 = scmp.lt.s32.totalorder %s13, 5
    %p252 = pnand %p250, %p251
    %p253 = pneg %p252
    // Predicated region
    $region45: #{double_conv_forward.1} parent=5 // pred_check
      _
    $region46: #{double_conv_forward.1} parent=5 // pred_check_branch
      %255 = sbr.rel (%p252) target = $region48
    $region47: #{double_conv_forward.1} parent=5 // pred_region
      %s256 = ssub.s32 %s13, 1
      %p257 = scmp.lt.s32.totalorder %s22, 1
      %s258 = scalar_select %p257, %s22, 1
      %s259 = smul.addr %s258, 100
      %s260 = smul.addr %s259, 4
      %s261 = scalar_lea.vmem %s0, %s260
      %p262 = pneg %p51
      %p263 = pneg %p48
      %p264 = pneg %p72
      %p265 = pneg %p69
      %p266 = pneg %p93
      %p267 = pneg %p90
      %p268 = pneg %p114
      %p269 = pneg %p111
      %p270 = pneg %p135
      %p271 = pneg %p132
      %p272 = pneg %p156
      %p273 = pneg %p153
      %p274 = pneg %p177
      %p275 = pneg %p174
      %p276 = pneg %p205
      %p277 = pneg %p202
      %s278 = smul.u32 8, %s23
      %p279 = scmp.lt.s32.totalorder %s22, 1
      %s280 = scalar_select %p279, %s22, 1
      %p281 = scmp.lt.s32.totalorder %s278, 15
      %s282 = scalar_select %p281, %s278, 15
      %s283 = smul.addr %s282, 2
      %s284 = smul.addr %s280, 32
      %s285 = sadd.s32 %s283, %s284
      %s286 = smul.addr %s285, 8
      %s287 = scalar_lea.vmem %s7, %s286
      %p288 = scmp.lt.s32.totalorder %s22, 1
      %s289 = scalar_select %p288, %s22, 1
      %s290 = smul.addr %s289, 100
      %s291 = smul.addr %s290, 4
      %s292 = scalar_lea.vmem %s0, %s291
      %s293 = smul.u32 8, %s23
      %p294 = scmp.lt.s32.totalorder %s22, 1
      %s295 = scalar_select %p294, %s22, 1
      %p296 = scmp.lt.s32.totalorder %s293, 15
      %s297 = scalar_select %p296, %s293, 15
      %s298 = smul.addr %s297, 2
      %s299 = smul.addr %s295, 32
      %s300 = sadd.s32 %s298, %s299
      %s301 = smul.addr %s300, 8
      %s302 = scalar_lea.vmem %s7, %s301
      %s303 = smul.u32 8, %s23
      %s305 = smul.u32 %s23, 8
      %s306 = smul.u32 %s305, 5
      %s307 = smul.addr %s306, 4
      %s308 = scalar_lea.vmem %s292, %s307
      %v309 = vld [vmem:[%s308] sm:$0xf]
      %v310 = vld [vmem:[%s308 + $0x4] sm:$0xf]
      %v311 = vld [vmem:[%s308 + $0x8] sm:$0xf]
      %v312 = vld [vmem:[%s308 + $0xc] sm:$0xf]
      %v313 = vld [vmem:[%s308 + $0x10] sm:$0x1]
      %v314 = vld [vmem:[%s308 + $0x14] sm:$0xf]
      %v315 = vld [vmem:[%s308 + $0x18] sm:$0xf]
      %v316 = vld [vmem:[%s308 + $0x1c] sm:$0xf]
      %v317 = vld [vmem:[%s308 + $0x20] sm:$0xf]
      %v318 = vld [vmem:[%s308 + $0x24] sm:$0x1]
      %v319 = vld [vmem:[%s308 + $0x28] sm:$0xf]
      %v320 = vld [vmem:[%s308 + $0x2c] sm:$0xf]
      %v321 = vld [vmem:[%s308 + $0x30] sm:$0xf]
      %v322 = vld [vmem:[%s308 + $0x34] sm:$0xf]
      %v323 = vld [vmem:[%s308 + $0x38] sm:$0x1]
      %v324 = vld [vmem:[%s308 + $0x3c] sm:$0xf]
      %v325 = vld [vmem:[%s308 + $0x40] sm:$0xf]
      %v326 = vld [vmem:[%s308 + $0x44] sm:$0xf]
      %v327 = vld [vmem:[%s308 + $0x48] sm:$0xf]
      %v328 = vld [vmem:[%s308 + $0x4c] sm:$0x1]
      %v329 = vld [vmem:[%s308 + $0x50] sm:$0xf]
      %v330 = vld [vmem:[%s308 + $0x54] sm:$0xf]
      %v331 = vld [vmem:[%s308 + $0x58] sm:$0xf]
      %v332 = vld [vmem:[%s308 + $0x5c] sm:$0xf]
      %v333 = vld [vmem:[%s308 + $0x60] sm:$0x1]
      %v334 = vld [vmem:[%s308 + $0x64] sm:$0xf]
      %v335 = vld [vmem:[%s308 + $0x68] sm:$0xf]
      %v336 = vld [vmem:[%s308 + $0x6c] sm:$0xf]
      %v337 = vld [vmem:[%s308 + $0x70] sm:$0xf]
      %v338 = vld [vmem:[%s308 + $0x74] sm:$0x1]
      %v339 = vld [vmem:[%s308 + $0x78] sm:$0xf]
      %v340 = vld [vmem:[%s308 + $0x7c] sm:$0xf]
      %v341 = vld [vmem:[%s308 + $0x80] sm:$0xf]
      %v342 = vld [vmem:[%s308 + $0x84] sm:$0xf]
      %v343 = vld [vmem:[%s308 + $0x88] sm:$0x1]
      %v344 = vld [vmem:[%s308 + $0x8c] sm:$0xf]
      %v345 = vld [vmem:[%s308 + $0x90] sm:$0xf]
      %v346 = vld [vmem:[%s308 + $0x94] sm:$0xf]
      %v347 = vld [vmem:[%s308 + $0x98] sm:$0xf]
      %v348 = vld [vmem:[%s308 + $0x9c] sm:$0x1]
      %v349 = vld [vmem:[%s308 + $0xa0] sm:$0xf]
      %v350 = vld [vmem:[%s308 + $0xa4] sm:$0xf]
      %v351 = vld [vmem:[%s308 + $0xa8] sm:$0xf]
      %v352 = vld [vmem:[%s308 + $0xac] sm:$0xf]
      %v353 = vld [vmem:[%s308 + $0xb0] sm:$0x1]
      %v354 = vld [vmem:[%s308 + $0xb4] sm:$0xf]
      %v355 = vld [vmem:[%s308 + $0xb8] sm:$0xf]
      %v356 = vld [vmem:[%s308 + $0xbc] sm:$0xf]
      %v357 = vld [vmem:[%s308 + $0xc0] sm:$0xf]
      %v358 = vld [vmem:[%s308 + $0xc4] sm:$0x1]
      %s359 = sadd.s32 %s305, 1
      %s360 = smul.u32 %s359, 5
      %s361 = smul.addr %s360, 4
      %s362 = scalar_lea.vmem %s292, %s361
      %v363 = vld [vmem:[%s362] sm:$0xf]
      %v364 = vld [vmem:[%s362 + $0x4] sm:$0xf]
      %v365 = vld [vmem:[%s362 + $0x8] sm:$0xf]
      %v366 = vld [vmem:[%s362 + $0xc] sm:$0xf]
      %v367 = vld [vmem:[%s362 + $0x10] sm:$0x1]
      %v368 = vld [vmem:[%s362 + $0x14] sm:$0xf]
      %v369 = vld [vmem:[%s362 + $0x18] sm:$0xf]
      %v370 = vld [vmem:[%s362 + $0x1c] sm:$0xf]
      %v371 = vld [vmem:[%s362 + $0x20] sm:$0xf]
      %v372 = vld [vmem:[%s362 + $0x24] sm:$0x1]
      %v373 = vld [vmem:[%s362 + $0x28] sm:$0xf]
      %v374 = vld [vmem:[%s362 + $0x2c] sm:$0xf]
      %v375 = vld [vmem:[%s362 + $0x30] sm:$0xf]
      %v376 = vld [vmem:[%s362 + $0x34] sm:$0xf]
      %v377 = vld [vmem:[%s362 + $0x38] sm:$0x1]
      %v378 = vld [vmem:[%s362 + $0x3c] sm:$0xf]
      %v379 = vld [vmem:[%s362 + $0x40] sm:$0xf]
      %v380 = vld [vmem:[%s362 + $0x44] sm:$0xf]
      %v381 = vld [vmem:[%s362 + $0x48] sm:$0xf]
      %v382 = vld [vmem:[%s362 + $0x4c] sm:$0x1]
      %v383 = vld [vmem:[%s362 + $0x50] sm:$0xf]
      %v384 = vld [vmem:[%s362 + $0x54] sm:$0xf]
      %v385 = vld [vmem:[%s362 + $0x58] sm:$0xf]
      %v386 = vld [vmem:[%s362 + $0x5c] sm:$0xf]
      %v387 = vld [vmem:[%s362 + $0x60] sm:$0x1]
      %v388 = vld [vmem:[%s362 + $0x64] sm:$0xf]
      %v389 = vld [vmem:[%s362 + $0x68] sm:$0xf]
      %v390 = vld [vmem:[%s362 + $0x6c] sm:$0xf]
      %v391 = vld [vmem:[%s362 + $0x70] sm:$0xf]
      %v392 = vld [vmem:[%s362 + $0x74] sm:$0x1]
      %v393 = vld [vmem:[%s362 + $0x78] sm:$0xf]
      %v394 = vld [vmem:[%s362 + $0x7c] sm:$0xf]
      %v395 = vld [vmem:[%s362 + $0x80] sm:$0xf]
      %v396 = vld [vmem:[%s362 + $0x84] sm:$0xf]
      %v397 = vld [vmem:[%s362 + $0x88] sm:$0x1]
      %v398 = vld [vmem:[%s362 + $0x8c] sm:$0xf]
      %v399 = vld [vmem:[%s362 + $0x90] sm:$0xf]
      %v400 = vld [vmem:[%s362 + $0x94] sm:$0xf]
      %v401 = vld [vmem:[%s362 + $0x98] sm:$0xf]
      %v402 = vld [vmem:[%s362 + $0x9c] sm:$0x1]
      %v403 = vld [vmem:[%s362 + $0xa0] sm:$0xf]
      %v404 = vld [vmem:[%s362 + $0xa4] sm:$0xf]
      %v405 = vld [vmem:[%s362 + $0xa8] sm:$0xf]
      %v406 = vld [vmem:[%s362 + $0xac] sm:$0xf]
      %v407 = vld [vmem:[%s362 + $0xb0] sm:$0x1]
      %v408 = vld [vmem:[%s362 + $0xb4] sm:$0xf]
      %v409 = vld [vmem:[%s362 + $0xb8] sm:$0xf]
      %v410 = vld [vmem:[%s362 + $0xbc] sm:$0xf]
      %v411 = vld [vmem:[%s362 + $0xc0] sm:$0xf]
      %v412 = vld [vmem:[%s362 + $0xc4] sm:$0x1]
      %s413 = sadd.s32 %s305, 2
      %s414 = smul.u32 %s413, 5
      %s415 = smul.addr %s414, 4
      %s416 = scalar_lea.vmem %s292, %s415
      %v417 = vld [vmem:[%s416] sm:$0xf]
      %v418 = vld [vmem:[%s416 + $0x4] sm:$0xf]
      %v419 = vld [vmem:[%s416 + $0x8] sm:$0xf]
      %v420 = vld [vmem:[%s416 + $0xc] sm:$0xf]
      %v421 = vld [vmem:[%s416 + $0x10] sm:$0x1]
      %v422 = vld [vmem:[%s416 + $0x14] sm:$0xf]
      %v423 = vld [vmem:[%s416 + $0x18] sm:$0xf]
      %v424 = vld [vmem:[%s416 + $0x1c] sm:$0xf]
      %v425 = vld [vmem:[%s416 + $0x20] sm:$0xf]
      %v426 = vld [vmem:[%s416 + $0x24] sm:$0x1]
      %v427 = vld [vmem:[%s416 + $0x28] sm:$0xf]
      %v428 = vld [vmem:[%s416 + $0x2c] sm:$0xf]
      %v429 = vld [vmem:[%s416 + $0x30] sm:$0xf]
      %v430 = vld [vmem:[%s416 + $0x34] sm:$0xf]
      %v431 = vld [vmem:[%s416 + $0x38] sm:$0x1]
      %v432 = vld [vmem:[%s416 + $0x3c] sm:$0xf]
      %v433 = vld [vmem:[%s416 + $0x40] sm:$0xf]
      %v434 = vld [vmem:[%s416 + $0x44] sm:$0xf]
      %v435 = vld [vmem:[%s416 + $0x48] sm:$0xf]
      %v436 = vld [vmem:[%s416 + $0x4c] sm:$0x1]
      %v437 = vld [vmem:[%s416 + $0x50] sm:$0xf]
      %v438 = vld [vmem:[%s416 + $0x54] sm:$0xf]
      %v439 = vld [vmem:[%s416 + $0x58] sm:$0xf]
      %v440 = vld [vmem:[%s416 + $0x5c] sm:$0xf]
      %v441 = vld [vmem:[%s416 + $0x60] sm:$0x1]
      %v442 = vld [vmem:[%s416 + $0x64] sm:$0xf]
      %v443 = vld [vmem:[%s416 + $0x68] sm:$0xf]
      %v444 = vld [vmem:[%s416 + $0x6c] sm:$0xf]
      %v445 = vld [vmem:[%s416 + $0x70] sm:$0xf]
      %v446 = vld [vmem:[%s416 + $0x74] sm:$0x1]
      %v447 = vld [vmem:[%s416 + $0x78] sm:$0xf]
      %v448 = vld [vmem:[%s416 + $0x7c] sm:$0xf]
      %v449 = vld [vmem:[%s416 + $0x80] sm:$0xf]
      %v450 = vld [vmem:[%s416 + $0x84] sm:$0xf]
      %v451 = vld [vmem:[%s416 + $0x88] sm:$0x1]
      %v452 = vld [vmem:[%s416 + $0x8c] sm:$0xf]
      %v453 = vld [vmem:[%s416 + $0x90] sm:$0xf]
      %v454 = vld [vmem:[%s416 + $0x94] sm:$0xf]
      %v455 = vld [vmem:[%s416 + $0x98] sm:$0xf]
      %v456 = vld [vmem:[%s416 + $0x9c] sm:$0x1]
      %v457 = vld [vmem:[%s416 + $0xa0] sm:$0xf]
      %v458 = vld [vmem:[%s416 + $0xa4] sm:$0xf]
      %v459 = vld [vmem:[%s416 + $0xa8] sm:$0xf]
      %v460 = vld [vmem:[%s416 + $0xac] sm:$0xf]
      %v461 = vld [vmem:[%s416 + $0xb0] sm:$0x1]
      %v462 = vld [vmem:[%s416 + $0xb4] sm:$0xf]
      %v463 = vld [vmem:[%s416 + $0xb8] sm:$0xf]
      %v464 = vld [vmem:[%s416 + $0xbc] sm:$0xf]
      %v465 = vld [vmem:[%s416 + $0xc0] sm:$0xf]
      %v466 = vld [vmem:[%s416 + $0xc4] sm:$0x1]
      %v507 = vunpack.c.l.b16 %v309
      %v508 = vunpack.c.l.b16 %v310
      %v509 = vunpack.c.l.b16 %v311
      %v510 = vunpack.c.l.b16 %v312
      %v511 = vunpack.c.l.b16 %v314
      %v512 = vunpack.c.l.b16 %v315
      %v513 = vunpack.c.l.b16 %v316
      %v514 = vunpack.c.l.b16 %v317
      %v515 = vunpack.c.l.b16 %v319
      %v516 = vunpack.c.l.b16 %v320
      %v517 = vunpack.c.l.b16 %v321
      %v518 = vunpack.c.l.b16 %v322
      %v519 = vunpack.c.l.b16 %v324
      %v520 = vunpack.c.l.b16 %v325
      %v521 = vunpack.c.l.b16 %v326
      %v522 = vunpack.c.l.b16 %v327
      %v523 = vunpack.c.l.b16 %v329
      %v524 = vunpack.c.l.b16 %v330
      %v525 = vunpack.c.l.b16 %v331
      %v526 = vunpack.c.l.b16 %v332
      %v527 = vunpack.c.l.b16 %v334
      %v528 = vunpack.c.l.b16 %v335
      %v529 = vunpack.c.l.b16 %v336
      %v530 = vunpack.c.l.b16 %v337
      %v531 = vunpack.c.l.b16 %v339
      %v532 = vunpack.c.l.b16 %v340
      %v533 = vunpack.c.l.b16 %v341
      %v534 = vunpack.c.l.b16 %v342
      %v535 = vunpack.c.l.b16 %v344
      %v536 = vunpack.c.l.b16 %v345
      %v537 = vunpack.c.l.b16 %v346
      %v538 = vunpack.c.l.b16 %v347
      %v539 = vunpack.c.l.b16 %v349
      %v540 = vunpack.c.l.b16 %v350
      %v541 = vunpack.c.l.b16 %v351
      %v542 = vunpack.c.l.b16 %v352
      %v543 = vunpack.c.l.b16 %v354
      %v544 = vunpack.c.l.b16 %v355
      %v545 = vunpack.c.l.b16 %v356
      %v546 = vunpack.c.l.b16 %v357
      %v547 = vpack.c.b16 %v508, %v507
      %v548 = vpack.c.b16 %v510, %v509
      %v549 = vpack.c.b16 %v512, %v511
      %v550 = vpack.c.b16 %v514, %v513
      %v551 = vpack.c.b16 %v516, %v515
      %v552 = vpack.c.b16 %v518, %v517
      %v553 = vpack.c.b16 %v520, %v519
      %v554 = vpack.c.b16 %v522, %v521
      %v555 = vpack.c.b16 %v524, %v523
      %v556 = vpack.c.b16 %v526, %v525
      %v557 = vpack.c.b16 %v528, %v527
      %v558 = vpack.c.b16 %v530, %v529
      %v559 = vpack.c.b16 %v532, %v531
      %v560 = vpack.c.b16 %v534, %v533
      %v561 = vpack.c.b16 %v536, %v535
      %v562 = vpack.c.b16 %v538, %v537
      %v563 = vpack.c.b16 %v540, %v539
      %v564 = vpack.c.b16 %v542, %v541
      %v565 = vpack.c.b16 %v544, %v543
      %v566 = vpack.c.b16 %v546, %v545
      %v597 = vunpack.c.l.b16 %v313
      %v598 = vunpack.c.l.b16 %v318
      %v599 = vunpack.c.l.b16 %v323
      %v600 = vunpack.c.l.b16 %v328
      %v601 = vunpack.c.l.b16 %v333
      %v602 = vunpack.c.l.b16 %v338
      %v603 = vunpack.c.l.b16 %v343
      %v604 = vunpack.c.l.b16 %v348
      %v605 = vunpack.c.l.b16 %v353
      %v606 = vunpack.c.l.b16 %v358
      %v607 = vpack.c.b16 %v597, %v597
      %v608 = vpack.c.b16 %v598, %v598
      %v609 = vpack.c.b16 %v599, %v599
      %v610 = vpack.c.b16 %v600, %v600
      %v611 = vpack.c.b16 %v601, %v601
      %v612 = vpack.c.b16 %v602, %v602
      %v613 = vpack.c.b16 %v603, %v603
      %v614 = vpack.c.b16 %v604, %v604
      %v615 = vpack.c.b16 %v605, %v605
      %v616 = vpack.c.b16 %v606, %v606
      %vm617 = vsmask.f32 7424
      %v619 = vshrl.u32 %v547, 16
      %v621 = vshll.u32 %v547, 16
      %v623 = vrot.slane %v621, 1
      %v624 = vor.u32 %v619, %v623
      %v626 = vshll.u32 %v548, 16
      %v628 = vrot.slane %v626, 1
      %v629 = vsel %vm617, %v624, %v628
      %v630 = vshrl.u32 %v548, 16
      %v632 = vor.u32 %v630, %v628
      %v634 = vshll.u32 %v607, 16
      %v636 = vrot.slane %v634, 1
      %v637 = vsel %vm617, %v632, %v636
      %v639 = vshrl.u32 %v549, 16
      %v641 = vshll.u32 %v549, 16
      %v643 = vrot.slane %v641, 1
      %v644 = vor.u32 %v639, %v643
      %v646 = vshll.u32 %v550, 16
      %v648 = vrot.slane %v646, 1
      %v649 = vsel %vm617, %v644, %v648
      %v650 = vshrl.u32 %v550, 16
      %v652 = vor.u32 %v650, %v648
      %v654 = vshll.u32 %v608, 16
      %v656 = vrot.slane %v654, 1
      %v657 = vsel %vm617, %v652, %v656
      %v659 = vshrl.u32 %v551, 16
      %v661 = vshll.u32 %v551, 16
      %v663 = vrot.slane %v661, 1
      %v664 = vor.u32 %v659, %v663
      %v666 = vshll.u32 %v552, 16
      %v668 = vrot.slane %v666, 1
      %v669 = vsel %vm617, %v664, %v668
      %v670 = vshrl.u32 %v552, 16
      %v672 = vor.u32 %v670, %v668
      %v674 = vshll.u32 %v609, 16
      %v676 = vrot.slane %v674, 1
      %v677 = vsel %vm617, %v672, %v676
      %v679 = vshrl.u32 %v553, 16
      %v681 = vshll.u32 %v553, 16
      %v683 = vrot.slane %v681, 1
      %v684 = vor.u32 %v679, %v683
      %v686 = vshll.u32 %v554, 16
      %v688 = vrot.slane %v686, 1
      %v689 = vsel %vm617, %v684, %v688
      %v690 = vshrl.u32 %v554, 16
      %v692 = vor.u32 %v690, %v688
      %v694 = vshll.u32 %v610, 16
      %v696 = vrot.slane %v694, 1
      %v697 = vsel %vm617, %v692, %v696
      %v699 = vshrl.u32 %v555, 16
      %v701 = vshll.u32 %v555, 16
      %v703 = vrot.slane %v701, 1
      %v704 = vor.u32 %v699, %v703
      %v706 = vshll.u32 %v556, 16
      %v708 = vrot.slane %v706, 1
      %v709 = vsel %vm617, %v704, %v708
      %v710 = vshrl.u32 %v556, 16
      %v712 = vor.u32 %v710, %v708
      %v714 = vshll.u32 %v611, 16
      %v716 = vrot.slane %v714, 1
      %v717 = vsel %vm617, %v712, %v716
      %v719 = vshrl.u32 %v557, 16
      %v721 = vshll.u32 %v557, 16
      %v723 = vrot.slane %v721, 1
      %v724 = vor.u32 %v719, %v723
      %v726 = vshll.u32 %v558, 16
      %v728 = vrot.slane %v726, 1
      %v729 = vsel %vm617, %v724, %v728
      %v730 = vshrl.u32 %v558, 16
      %v732 = vor.u32 %v730, %v728
      %v734 = vshll.u32 %v612, 16
      %v736 = vrot.slane %v734, 1
      %v737 = vsel %vm617, %v732, %v736
      %v739 = vshrl.u32 %v559, 16
      %v741 = vshll.u32 %v559, 16
      %v743 = vrot.slane %v741, 1
      %v744 = vor.u32 %v739, %v743
      %v746 = vshll.u32 %v560, 16
      %v748 = vrot.slane %v746, 1
      %v749 = vsel %vm617, %v744, %v748
      %v750 = vshrl.u32 %v560, 16
      %v752 = vor.u32 %v750, %v748
      %v754 = vshll.u32 %v613, 16
      %v756 = vrot.slane %v754, 1
      %v757 = vsel %vm617, %v752, %v756
      %v759 = vshrl.u32 %v561, 16
      %v761 = vshll.u32 %v561, 16
      %v763 = vrot.slane %v761, 1
      %v764 = vor.u32 %v759, %v763
      %v766 = vshll.u32 %v562, 16
      %v768 = vrot.slane %v766, 1
      %v769 = vsel %vm617, %v764, %v768
      %v770 = vshrl.u32 %v562, 16
      %v772 = vor.u32 %v770, %v768
      %v774 = vshll.u32 %v614, 16
      %v776 = vrot.slane %v774, 1
      %v777 = vsel %vm617, %v772, %v776
      %v779 = vshrl.u32 %v563, 16
      %v781 = vshll.u32 %v563, 16
      %v783 = vrot.slane %v781, 1
      %v784 = vor.u32 %v779, %v783
      %v786 = vshll.u32 %v564, 16
      %v788 = vrot.slane %v786, 1
      %v789 = vsel %vm617, %v784, %v788
      %v790 = vshrl.u32 %v564, 16
      %v792 = vor.u32 %v790, %v788
      %v794 = vshll.u32 %v615, 16
      %v796 = vrot.slane %v794, 1
      %v797 = vsel %vm617, %v792, %v796
      %v799 = vshrl.u32 %v565, 16
      %v801 = vshll.u32 %v565, 16
      %v803 = vrot.slane %v801, 1
      %v804 = vor.u32 %v799, %v803
      %v806 = vshll.u32 %v566, 16
      %v808 = vrot.slane %v806, 1
      %v809 = vsel %vm617, %v804, %v808
      %v810 = vshrl.u32 %v566, 16
      %v812 = vor.u32 %v810, %v808
      %v814 = vshll.u32 %v616, 16
      %v816 = vrot.slane %v814, 1
      %v817 = vsel %vm617, %v812, %v816
      %vm838 = vcmask 1046528
      %v839 = vrot.slane %v547, 1
      %v840 = vrot.slane %v548, 1
      %v841 = vsel %vm838, %v839, %v840
      %v842 = vrot.slane %v607, 1
      %v843 = vsel %vm838, %v840, %v842
      %v844 = vrot.slane %v549, 1
      %v845 = vrot.slane %v550, 1
      %v846 = vsel %vm838, %v844, %v845
      %v847 = vrot.slane %v608, 1
      %v848 = vsel %vm838, %v845, %v847
      %v849 = vrot.slane %v551, 1
      %v850 = vrot.slane %v552, 1
      %v851 = vsel %vm838, %v849, %v850
      %v852 = vrot.slane %v609, 1
      %v853 = vsel %vm838, %v850, %v852
      %v854 = vrot.slane %v553, 1
      %v855 = vrot.slane %v554, 1
      %v856 = vsel %vm838, %v854, %v855
      %v857 = vrot.slane %v610, 1
      %v858 = vsel %vm838, %v855, %v857
      %v859 = vrot.slane %v555, 1
      %v860 = vrot.slane %v556, 1
      %v861 = vsel %vm838, %v859, %v860
      %v862 = vrot.slane %v611, 1
      %v863 = vsel %vm838, %v860, %v862
      %v864 = vrot.slane %v557, 1
      %v865 = vrot.slane %v558, 1
      %v866 = vsel %vm838, %v864, %v865
      %v867 = vrot.slane %v612, 1
      %v868 = vsel %vm838, %v865, %v867
      %v869 = vrot.slane %v559, 1
      %v870 = vrot.slane %v560, 1
      %v871 = vsel %vm838, %v869, %v870
      %v872 = vrot.slane %v613, 1
      %v873 = vsel %vm838, %v870, %v872
      %v874 = vrot.slane %v561, 1
      %v875 = vrot.slane %v562, 1
      %v876 = vsel %vm838, %v874, %v875
      %v877 = vrot.slane %v614, 1
      %v878 = vsel %vm838, %v875, %v877
      %v879 = vrot.slane %v563, 1
      %v880 = vrot.slane %v564, 1
      %v881 = vsel %vm838, %v879, %v880
      %v882 = vrot.slane %v615, 1
      %v883 = vsel %vm838, %v880, %v882
      %v884 = vrot.slane %v565, 1
      %v885 = vrot.slane %v566, 1
      %v886 = vsel %vm838, %v884, %v885
      %v887 = vrot.slane %v616, 1
      %v888 = vsel %vm838, %v885, %v887
      %v949 = vunpack.c.l.b16 %v363
      %v950 = vunpack.c.l.b16 %v364
      %v951 = vunpack.c.l.b16 %v365
      %v952 = vunpack.c.l.b16 %v366
      %v953 = vunpack.c.l.b16 %v368
      %v954 = vunpack.c.l.b16 %v369
      %v955 = vunpack.c.l.b16 %v370
      %v956 = vunpack.c.l.b16 %v371
      %v957 = vunpack.c.l.b16 %v373
      %v958 = vunpack.c.l.b16 %v374
      %v959 = vunpack.c.l.b16 %v375
      %v960 = vunpack.c.l.b16 %v376
      %v961 = vunpack.c.l.b16 %v378
      %v962 = vunpack.c.l.b16 %v379
      %v963 = vunpack.c.l.b16 %v380
      %v964 = vunpack.c.l.b16 %v381
      %v965 = vunpack.c.l.b16 %v383
      %v966 = vunpack.c.l.b16 %v384
      %v967 = vunpack.c.l.b16 %v385
      %v968 = vunpack.c.l.b16 %v386
      %v969 = vunpack.c.l.b16 %v388
      %v970 = vunpack.c.l.b16 %v389
      %v971 = vunpack.c.l.b16 %v390
      %v972 = vunpack.c.l.b16 %v391
      %v973 = vunpack.c.l.b16 %v393
      %v974 = vunpack.c.l.b16 %v394
      %v975 = vunpack.c.l.b16 %v395
      %v976 = vunpack.c.l.b16 %v396
      %v977 = vunpack.c.l.b16 %v398
      %v978 = vunpack.c.l.b16 %v399
      %v979 = vunpack.c.l.b16 %v400
      %v980 = vunpack.c.l.b16 %v401
      %v981 = vunpack.c.l.b16 %v403
      %v982 = vunpack.c.l.b16 %v404
      %v983 = vunpack.c.l.b16 %v405
      %v984 = vunpack.c.l.b16 %v406
      %v985 = vunpack.c.l.b16 %v408
      %v986 = vunpack.c.l.b16 %v409
      %v987 = vunpack.c.l.b16 %v410
      %v988 = vunpack.c.l.b16 %v411
      %v989 = vpack.c.b16 %v950, %v949
      %v990 = vpack.c.b16 %v952, %v951
      %v991 = vpack.c.b16 %v954, %v953
      %v992 = vpack.c.b16 %v956, %v955
      %v993 = vpack.c.b16 %v958, %v957
      %v994 = vpack.c.b16 %v960, %v959
      %v995 = vpack.c.b16 %v962, %v961
      %v996 = vpack.c.b16 %v964, %v963
      %v997 = vpack.c.b16 %v966, %v965
      %v998 = vpack.c.b16 %v968, %v967
      %v999 = vpack.c.b16 %v970, %v969
      %v1000 = vpack.c.b16 %v972, %v971
      %v1001 = vpack.c.b16 %v974, %v973
      %v1002 = vpack.c.b16 %v976, %v975
      %v1003 = vpack.c.b16 %v978, %v977
      %v1004 = vpack.c.b16 %v980, %v979
      %v1005 = vpack.c.b16 %v982, %v981
      %v1006 = vpack.c.b16 %v984, %v983
      %v1007 = vpack.c.b16 %v986, %v985
      %v1008 = vpack.c.b16 %v988, %v987
      %v1039 = vunpack.c.l.b16 %v367
      %v1040 = vunpack.c.l.b16 %v372
      %v1041 = vunpack.c.l.b16 %v377
      %v1042 = vunpack.c.l.b16 %v382
      %v1043 = vunpack.c.l.b16 %v387
      %v1044 = vunpack.c.l.b16 %v392
      %v1045 = vunpack.c.l.b16 %v397
      %v1046 = vunpack.c.l.b16 %v402
      %v1047 = vunpack.c.l.b16 %v407
      %v1048 = vunpack.c.l.b16 %v412
      %v1049 = vpack.c.b16 %v1039, %v1039
      %v1050 = vpack.c.b16 %v1040, %v1040
      %v1051 = vpack.c.b16 %v1041, %v1041
      %v1052 = vpack.c.b16 %v1042, %v1042
      %v1053 = vpack.c.b16 %v1043, %v1043
      %v1054 = vpack.c.b16 %v1044, %v1044
      %v1055 = vpack.c.b16 %v1045, %v1045
      %v1056 = vpack.c.b16 %v1046, %v1046
      %v1057 = vpack.c.b16 %v1047, %v1047
      %v1058 = vpack.c.b16 %v1048, %v1048
      %v1060 = vshrl.u32 %v989, 16
      %v1062 = vshll.u32 %v989, 16
      %v1064 = vrot.slane %v1062, 1
      %v1065 = vor.u32 %v1060, %v1064
      %v1067 = vshll.u32 %v990, 16
      %v1069 = vrot.slane %v1067, 1
      %v1070 = vsel %vm617, %v1065, %v1069
      %v1071 = vshrl.u32 %v990, 16
      %v1073 = vor.u32 %v1071, %v1069
      %v1075 = vshll.u32 %v1049, 16
      %v1077 = vrot.slane %v1075, 1
      %v1078 = vsel %vm617, %v1073, %v1077
      %v1080 = vshrl.u32 %v991, 16
      %v1082 = vshll.u32 %v991, 16
      %v1084 = vrot.slane %v1082, 1
      %v1085 = vor.u32 %v1080, %v1084
      %v1087 = vshll.u32 %v992, 16
      %v1089 = vrot.slane %v1087, 1
      %v1090 = vsel %vm617, %v1085, %v1089
      %v1091 = vshrl.u32 %v992, 16
      %v1093 = vor.u32 %v1091, %v1089
      %v1095 = vshll.u32 %v1050, 16
      %v1097 = vrot.slane %v1095, 1
      %v1098 = vsel %vm617, %v1093, %v1097
      %v1100 = vshrl.u32 %v993, 16
      %v1102 = vshll.u32 %v993, 16
      %v1104 = vrot.slane %v1102, 1
      %v1105 = vor.u32 %v1100, %v1104
      %v1107 = vshll.u32 %v994, 16
      %v1109 = vrot.slane %v1107, 1
      %v1110 = vsel %vm617, %v1105, %v1109
      %v1111 = vshrl.u32 %v994, 16
      %v1113 = vor.u32 %v1111, %v1109
      %v1115 = vshll.u32 %v1051, 16
      %v1117 = vrot.slane %v1115, 1
      %v1118 = vsel %vm617, %v1113, %v1117
      %v1120 = vshrl.u32 %v995, 16
      %v1122 = vshll.u32 %v995, 16
      %v1124 = vrot.slane %v1122, 1
      %v1125 = vor.u32 %v1120, %v1124
      %v1127 = vshll.u32 %v996, 16
      %v1129 = vrot.slane %v1127, 1
      %v1130 = vsel %vm617, %v1125, %v1129
      %v1131 = vshrl.u32 %v996, 16
      %v1133 = vor.u32 %v1131, %v1129
      %v1135 = vshll.u32 %v1052, 16
      %v1137 = vrot.slane %v1135, 1
      %v1138 = vsel %vm617, %v1133, %v1137
      %v1140 = vshrl.u32 %v997, 16
      %v1142 = vshll.u32 %v997, 16
      %v1144 = vrot.slane %v1142, 1
      %v1145 = vor.u32 %v1140, %v1144
      %v1147 = vshll.u32 %v998, 16
      %v1149 = vrot.slane %v1147, 1
      %v1150 = vsel %vm617, %v1145, %v1149
      %v1151 = vshrl.u32 %v998, 16
      %v1153 = vor.u32 %v1151, %v1149
      %v1155 = vshll.u32 %v1053, 16
      %v1157 = vrot.slane %v1155, 1
      %v1158 = vsel %vm617, %v1153, %v1157
      %v1160 = vshrl.u32 %v999, 16
      %v1162 = vshll.u32 %v999, 16
      %v1164 = vrot.slane %v1162, 1
      %v1165 = vor.u32 %v1160, %v1164
      %v1167 = vshll.u32 %v1000, 16
      %v1169 = vrot.slane %v1167, 1
      %v1170 = vsel %vm617, %v1165, %v1169
      %v1171 = vshrl.u32 %v1000, 16
      %v1173 = vor.u32 %v1171, %v1169
      %v1175 = vshll.u32 %v1054, 16
      %v1177 = vrot.slane %v1175, 1
      %v1178 = vsel %vm617, %v1173, %v1177
      %v1180 = vshrl.u32 %v1001, 16
      %v1182 = vshll.u32 %v1001, 16
      %v1184 = vrot.slane %v1182, 1
      %v1185 = vor.u32 %v1180, %v1184
      %v1187 = vshll.u32 %v1002, 16
      %v1189 = vrot.slane %v1187, 1
      %v1190 = vsel %vm617, %v1185, %v1189
      %v1191 = vshrl.u32 %v1002, 16
      %v1193 = vor.u32 %v1191, %v1189
      %v1195 = vshll.u32 %v1055, 16
      %v1197 = vrot.slane %v1195, 1
      %v1198 = vsel %vm617, %v1193, %v1197
      %v1200 = vshrl.u32 %v1003, 16
      %v1202 = vshll.u32 %v1003, 16
      %v1204 = vrot.slane %v1202, 1
      %v1205 = vor.u32 %v1200, %v1204
      %v1207 = vshll.u32 %v1004, 16
      %v1209 = vrot.slane %v1207, 1
      %v1210 = vsel %vm617, %v1205, %v1209
      %v1211 = vshrl.u32 %v1004, 16
      %v1213 = vor.u32 %v1211, %v1209
      %v1215 = vshll.u32 %v1056, 16
      %v1217 = vrot.slane %v1215, 1
      %v1218 = vsel %vm617, %v1213, %v1217
      %v1220 = vshrl.u32 %v1005, 16
      %v1222 = vshll.u32 %v1005, 16
      %v1224 = vrot.slane %v1222, 1
      %v1225 = vor.u32 %v1220, %v1224
      %v1227 = vshll.u32 %v1006, 16
      %v1229 = vrot.slane %v1227, 1
      %v1230 = vsel %vm617, %v1225, %v1229
      %v1231 = vshrl.u32 %v1006, 16
      %v1233 = vor.u32 %v1231, %v1229
      %v1235 = vshll.u32 %v1057, 16
      %v1237 = vrot.slane %v1235, 1
      %v1238 = vsel %vm617, %v1233, %v1237
      %v1240 = vshrl.u32 %v1007, 16
      %v1242 = vshll.u32 %v1007, 16
      %v1244 = vrot.slane %v1242, 1
      %v1245 = vor.u32 %v1240, %v1244
      %v1247 = vshll.u32 %v1008, 16
      %v1249 = vrot.slane %v1247, 1
      %v1250 = vsel %vm617, %v1245, %v1249
      %v1251 = vshrl.u32 %v1008, 16
      %v1253 = vor.u32 %v1251, %v1249
      %v1255 = vshll.u32 %v1058, 16
      %v1257 = vrot.slane %v1255, 1
      %v1258 = vsel %vm617, %v1253, %v1257
      %v1279 = vrot.slane %v989, 1
      %v1280 = vrot.slane %v990, 1
      %v1281 = vsel %vm838, %v1279, %v1280
      %v1282 = vrot.slane %v1049, 1
      %v1283 = vsel %vm838, %v1280, %v1282
      %v1284 = vrot.slane %v991, 1
      %v1285 = vrot.slane %v992, 1
      %v1286 = vsel %vm838, %v1284, %v1285
      %v1287 = vrot.slane %v1050, 1
      %v1288 = vsel %vm838, %v1285, %v1287
      %v1289 = vrot.slane %v993, 1
      %v1290 = vrot.slane %v994, 1
      %v1291 = vsel %vm838, %v1289, %v1290
      %v1292 = vrot.slane %v1051, 1
      %v1293 = vsel %vm838, %v1290, %v1292
      %v1294 = vrot.slane %v995, 1
      %v1295 = vrot.slane %v996, 1
      %v1296 = vsel %vm838, %v1294, %v1295
      %v1297 = vrot.slane %v1052, 1
      %v1298 = vsel %vm838, %v1295, %v1297
      %v1299 = vrot.slane %v997, 1
      %v1300 = vrot.slane %v998, 1
      %v1301 = vsel %vm838, %v1299, %v1300
      %v1302 = vrot.slane %v1053, 1
      %v1303 = vsel %vm838, %v1300, %v1302
      %v1304 = vrot.slane %v999, 1
      %v1305 = vrot.slane %v1000, 1
      %v1306 = vsel %vm838, %v1304, %v1305
      %v1307 = vrot.slane %v1054, 1
      %v1308 = vsel %vm838, %v1305, %v1307
      %v1309 = vrot.slane %v1001, 1
      %v1310 = vrot.slane %v1002, 1
      %v1311 = vsel %vm838, %v1309, %v1310
      %v1312 = vrot.slane %v1055, 1
      %v1313 = vsel %vm838, %v1310, %v1312
      %v1314 = vrot.slane %v1003, 1
      %v1315 = vrot.slane %v1004, 1
      %v1316 = vsel %vm838, %v1314, %v1315
      %v1317 = vrot.slane %v1056, 1
      %v1318 = vsel %vm838, %v1315, %v1317
      %v1319 = vrot.slane %v1005, 1
      %v1320 = vrot.slane %v1006, 1
      %v1321 = vsel %vm838, %v1319, %v1320
      %v1322 = vrot.slane %v1057, 1
      %v1323 = vsel %vm838, %v1320, %v1322
      %v1324 = vrot.slane %v1007, 1
      %v1325 = vrot.slane %v1008, 1
      %v1326 = vsel %vm838, %v1324, %v1325
      %v1327 = vrot.slane %v1058, 1
      %v1328 = vsel %vm838, %v1325, %v1327
      %v1389 = vunpack.c.l.b16 %v417
      %v1390 = vunpack.c.l.b16 %v418
      %v1391 = vunpack.c.l.b16 %v419
      %v1392 = vunpack.c.l.b16 %v420
      %v1393 = vunpack.c.l.b16 %v422
      %v1394 = vunpack.c.l.b16 %v423
      %v1395 = vunpack.c.l.b16 %v424
      %v1396 = vunpack.c.l.b16 %v425
      %v1397 = vunpack.c.l.b16 %v427
      %v1398 = vunpack.c.l.b16 %v428
      %v1399 = vunpack.c.l.b16 %v429
      %v1400 = vunpack.c.l.b16 %v430
      %v1401 = vunpack.c.l.b16 %v432
      %v1402 = vunpack.c.l.b16 %v433
      %v1403 = vunpack.c.l.b16 %v434
      %v1404 = vunpack.c.l.b16 %v435
      %v1405 = vunpack.c.l.b16 %v437
      %v1406 = vunpack.c.l.b16 %v438
      %v1407 = vunpack.c.l.b16 %v439
      %v1408 = vunpack.c.l.b16 %v440
      %v1409 = vunpack.c.l.b16 %v442
      %v1410 = vunpack.c.l.b16 %v443
      %v1411 = vunpack.c.l.b16 %v444
      %v1412 = vunpack.c.l.b16 %v445
      %v1413 = vunpack.c.l.b16 %v447
      %v1414 = vunpack.c.l.b16 %v448
      %v1415 = vunpack.c.l.b16 %v449
      %v1416 = vunpack.c.l.b16 %v450
      %v1417 = vunpack.c.l.b16 %v452
      %v1418 = vunpack.c.l.b16 %v453
      %v1419 = vunpack.c.l.b16 %v454
      %v1420 = vunpack.c.l.b16 %v455
      %v1421 = vunpack.c.l.b16 %v457
      %v1422 = vunpack.c.l.b16 %v458
      %v1423 = vunpack.c.l.b16 %v459
      %v1424 = vunpack.c.l.b16 %v460
      %v1425 = vunpack.c.l.b16 %v462
      %v1426 = vunpack.c.l.b16 %v463
      %v1427 = vunpack.c.l.b16 %v464
      %v1428 = vunpack.c.l.b16 %v465
      %v1429 = vpack.c.b16 %v1390, %v1389
      %v1430 = vpack.c.b16 %v1392, %v1391
      %v1431 = vpack.c.b16 %v1394, %v1393
      %v1432 = vpack.c.b16 %v1396, %v1395
      %v1433 = vpack.c.b16 %v1398, %v1397
      %v1434 = vpack.c.b16 %v1400, %v1399
      %v1435 = vpack.c.b16 %v1402, %v1401
      %v1436 = vpack.c.b16 %v1404, %v1403
      %v1437 = vpack.c.b16 %v1406, %v1405
      %v1438 = vpack.c.b16 %v1408, %v1407
      %v1439 = vpack.c.b16 %v1410, %v1409
      %v1440 = vpack.c.b16 %v1412, %v1411
      %v1441 = vpack.c.b16 %v1414, %v1413
      %v1442 = vpack.c.b16 %v1416, %v1415
      %v1443 = vpack.c.b16 %v1418, %v1417
      %v1444 = vpack.c.b16 %v1420, %v1419
      %v1445 = vpack.c.b16 %v1422, %v1421
      %v1446 = vpack.c.b16 %v1424, %v1423
      %v1447 = vpack.c.b16 %v1426, %v1425
      %v1448 = vpack.c.b16 %v1428, %v1427
      %v1479 = vunpack.c.l.b16 %v421
      %v1480 = vunpack.c.l.b16 %v426
      %v1481 = vunpack.c.l.b16 %v431
      %v1482 = vunpack.c.l.b16 %v436
      %v1483 = vunpack.c.l.b16 %v441
      %v1484 = vunpack.c.l.b16 %v446
      %v1485 = vunpack.c.l.b16 %v451
      %v1486 = vunpack.c.l.b16 %v456
      %v1487 = vunpack.c.l.b16 %v461
      %v1488 = vunpack.c.l.b16 %v466
      %v1489 = vpack.c.b16 %v1479, %v1479
      %v1490 = vpack.c.b16 %v1480, %v1480
      %v1491 = vpack.c.b16 %v1481, %v1481
      %v1492 = vpack.c.b16 %v1482, %v1482
      %v1493 = vpack.c.b16 %v1483, %v1483
      %v1494 = vpack.c.b16 %v1484, %v1484
      %v1495 = vpack.c.b16 %v1485, %v1485
      %v1496 = vpack.c.b16 %v1486, %v1486
      %v1497 = vpack.c.b16 %v1487, %v1487
      %v1498 = vpack.c.b16 %v1488, %v1488
      %v1500 = vshrl.u32 %v1429, 16
      %v1502 = vshll.u32 %v1429, 16
      %v1504 = vrot.slane %v1502, 1
      %v1505 = vor.u32 %v1500, %v1504
      %v1507 = vshll.u32 %v1430, 16
      %v1509 = vrot.slane %v1507, 1
      %v1510 = vsel %vm617, %v1505, %v1509
      %v1511 = vshrl.u32 %v1430, 16
      %v1513 = vor.u32 %v1511, %v1509
      %v1515 = vshll.u32 %v1489, 16
      %v1517 = vrot.slane %v1515, 1
      %v1518 = vsel %vm617, %v1513, %v1517
      %v1520 = vshrl.u32 %v1431, 16
      %v1522 = vshll.u32 %v1431, 16
      %v1524 = vrot.slane %v1522, 1
      %v1525 = vor.u32 %v1520, %v1524
      %v1527 = vshll.u32 %v1432, 16
      %v1529 = vrot.slane %v1527, 1
      %v1530 = vsel %vm617, %v1525, %v1529
      %v1531 = vshrl.u32 %v1432, 16
      %v1533 = vor.u32 %v1531, %v1529
      %v1535 = vshll.u32 %v1490, 16
      %v1537 = vrot.slane %v1535, 1
      %v1538 = vsel %vm617, %v1533, %v1537
      %v1540 = vshrl.u32 %v1433, 16
      %v1542 = vshll.u32 %v1433, 16
      %v1544 = vrot.slane %v1542, 1
      %v1545 = vor.u32 %v1540, %v1544
      %v1547 = vshll.u32 %v1434, 16
      %v1549 = vrot.slane %v1547, 1
      %v1550 = vsel %vm617, %v1545, %v1549
      %v1551 = vshrl.u32 %v1434, 16
      %v1553 = vor.u32 %v1551, %v1549
      %v1555 = vshll.u32 %v1491, 16
      %v1557 = vrot.slane %v1555, 1
      %v1558 = vsel %vm617, %v1553, %v1557
      %v1560 = vshrl.u32 %v1435, 16
      %v1562 = vshll.u32 %v1435, 16
      %v1564 = vrot.slane %v1562, 1
      %v1565 = vor.u32 %v1560, %v1564
      %v1567 = vshll.u32 %v1436, 16
      %v1569 = vrot.slane %v1567, 1
      %v1570 = vsel %vm617, %v1565, %v1569
      %v1571 = vshrl.u32 %v1436, 16
      %v1573 = vor.u32 %v1571, %v1569
      %v1575 = vshll.u32 %v1492, 16
      %v1577 = vrot.slane %v1575, 1
      %v1578 = vsel %vm617, %v1573, %v1577
      %v1580 = vshrl.u32 %v1437, 16
      %v1582 = vshll.u32 %v1437, 16
      %v1584 = vrot.slane %v1582, 1
      %v1585 = vor.u32 %v1580, %v1584
      %v1587 = vshll.u32 %v1438, 16
      %v1589 = vrot.slane %v1587, 1
      %v1590 = vsel %vm617, %v1585, %v1589
      %v1591 = vshrl.u32 %v1438, 16
      %v1593 = vor.u32 %v1591, %v1589
      %v1595 = vshll.u32 %v1493, 16
      %v1597 = vrot.slane %v1595, 1
      %v1598 = vsel %vm617, %v1593, %v1597
      %v1600 = vshrl.u32 %v1439, 16
      %v1602 = vshll.u32 %v1439, 16
      %v1604 = vrot.slane %v1602, 1
      %v1605 = vor.u32 %v1600, %v1604
      %v1607 = vshll.u32 %v1440, 16
      %v1609 = vrot.slane %v1607, 1
      %v1610 = vsel %vm617, %v1605, %v1609
      %v1611 = vshrl.u32 %v1440, 16
      %v1613 = vor.u32 %v1611, %v1609
      %v1615 = vshll.u32 %v1494, 16
      %v1617 = vrot.slane %v1615, 1
      %v1618 = vsel %vm617, %v1613, %v1617
      %v1620 = vshrl.u32 %v1441, 16
      %v1622 = vshll.u32 %v1441, 16
      %v1624 = vrot.slane %v1622, 1
      %v1625 = vor.u32 %v1620, %v1624
      %v1627 = vshll.u32 %v1442, 16
      %v1629 = vrot.slane %v1627, 1
      %v1630 = vsel %vm617, %v1625, %v1629
      %v1631 = vshrl.u32 %v1442, 16
      %v1633 = vor.u32 %v1631, %v1629
      %v1635 = vshll.u32 %v1495, 16
      %v1637 = vrot.slane %v1635, 1
      %v1638 = vsel %vm617, %v1633, %v1637
      %v1640 = vshrl.u32 %v1443, 16
      %v1642 = vshll.u32 %v1443, 16
      %v1644 = vrot.slane %v1642, 1
      %v1645 = vor.u32 %v1640, %v1644
      %v1647 = vshll.u32 %v1444, 16
      %v1649 = vrot.slane %v1647, 1
      %v1650 = vsel %vm617, %v1645, %v1649
      %v1651 = vshrl.u32 %v1444, 16
      %v1653 = vor.u32 %v1651, %v1649
      %v1655 = vshll.u32 %v1496, 16
      %v1657 = vrot.slane %v1655, 1
      %v1658 = vsel %vm617, %v1653, %v1657
      %v1660 = vshrl.u32 %v1445, 16
      %v1662 = vshll.u32 %v1445, 16
      %v1664 = vrot.slane %v1662, 1
      %v1665 = vor.u32 %v1660, %v1664
      %v1667 = vshll.u32 %v1446, 16
      %v1669 = vrot.slane %v1667, 1
      %v1670 = vsel %vm617, %v1665, %v1669
      %v1671 = vshrl.u32 %v1446, 16
      %v1673 = vor.u32 %v1671, %v1669
      %v1675 = vshll.u32 %v1497, 16
      %v1677 = vrot.slane %v1675, 1
      %v1678 = vsel %vm617, %v1673, %v1677
      %v1680 = vshrl.u32 %v1447, 16
      %v1682 = vshll.u32 %v1447, 16
      %v1684 = vrot.slane %v1682, 1
      %v1685 = vor.u32 %v1680, %v1684
      %v1687 = vshll.u32 %v1448, 16
      %v1689 = vrot.slane %v1687, 1
      %v1690 = vsel %vm617, %v1685, %v1689
      %v1691 = vshrl.u32 %v1448, 16
      %v1693 = vor.u32 %v1691, %v1689
      %v1695 = vshll.u32 %v1498, 16
      %v1697 = vrot.slane %v1695, 1
      %v1698 = vsel %vm617, %v1693, %v1697
      %v1719 = vrot.slane %v1429, 1
      %v1720 = vrot.slane %v1430, 1
      %v1721 = vsel %vm838, %v1719, %v1720
      %v1722 = vrot.slane %v1489, 1
      %v1723 = vsel %vm838, %v1720, %v1722
      %v1724 = vrot.slane %v1431, 1
      %v1725 = vrot.slane %v1432, 1
      %v1726 = vsel %vm838, %v1724, %v1725
      %v1727 = vrot.slane %v1490, 1
      %v1728 = vsel %vm838, %v1725, %v1727
      %v1729 = vrot.slane %v1433, 1
      %v1730 = vrot.slane %v1434, 1
      %v1731 = vsel %vm838, %v1729, %v1730
      %v1732 = vrot.slane %v1491, 1
      %v1733 = vsel %vm838, %v1730, %v1732
      %v1734 = vrot.slane %v1435, 1
      %v1735 = vrot.slane %v1436, 1
      %v1736 = vsel %vm838, %v1734, %v1735
      %v1737 = vrot.slane %v1492, 1
      %v1738 = vsel %vm838, %v1735, %v1737
      %v1739 = vrot.slane %v1437, 1
      %v1740 = vrot.slane %v1438, 1
      %v1741 = vsel %vm838, %v1739, %v1740
      %v1742 = vrot.slane %v1493, 1
      %v1743 = vsel %vm838, %v1740, %v1742
      %v1744 = vrot.slane %v1439, 1
      %v1745 = vrot.slane %v1440, 1
      %v1746 = vsel %vm838, %v1744, %v1745
      %v1747 = vrot.slane %v1494, 1
      %v1748 = vsel %vm838, %v1745, %v1747
      %v1749 = vrot.slane %v1441, 1
      %v1750 = vrot.slane %v1442, 1
      %v1751 = vsel %vm838, %v1749, %v1750
      %v1752 = vrot.slane %v1495, 1
      %v1753 = vsel %vm838, %v1750, %v1752
      %v1754 = vrot.slane %v1443, 1
      %v1755 = vrot.slane %v1444, 1
      %v1756 = vsel %vm838, %v1754, %v1755
      %v1757 = vrot.slane %v1496, 1
      %v1758 = vsel %vm838, %v1755, %v1757
      %v1759 = vrot.slane %v1445, 1
      %v1760 = vrot.slane %v1446, 1
      %v1761 = vsel %vm838, %v1759, %v1760
      %v1762 = vrot.slane %v1497, 1
      %v1763 = vsel %vm838, %v1760, %v1762
      %v1764 = vrot.slane %v1447, 1
      %v1765 = vrot.slane %v1448, 1
      %v1766 = vsel %vm838, %v1764, %v1765
      %v1767 = vrot.slane %v1498, 1
      %v1768 = vsel %vm838, %v1765, %v1767
      %v1789 = vld [vmem:[%s1] sm:$0xf]
      %v1790 = vld [vmem:[%s1 + $0x4] sm:$0xf]
      %v1791 = vld [vmem:[%s1 + $0x8] sm:$0xf]
      %v1792 = vld [vmem:[%s1 + $0xc] sm:$0xf]
      %v1793 = vld [vmem:[%s1 + $0x10] sm:$0xf]
      %v1794 = vld [vmem:[%s1 + $0x14] sm:$0xf]
      %v1795 = vld [vmem:[%s1 + $0x18] sm:$0xf]
      %v1796 = vld [vmem:[%s1 + $0x1c] sm:$0xf]
      %v1797 = vld [vmem:[%s1 + $0x20] sm:$0xf]
      %v1798 = vld [vmem:[%s1 + $0x24] sm:$0xf]
      %v1799 = vld [vmem:[%s1 + $0x28] sm:$0xf]
      %v1800 = vld [vmem:[%s1 + $0x2c] sm:$0xf]
      %v1801 = vld [vmem:[%s1 + $0x30] sm:$0xf]
      %v1802 = vld [vmem:[%s1 + $0x34] sm:$0xf]
      %v1803 = vld [vmem:[%s1 + $0x38] sm:$0xf]
      %v1804 = vld [vmem:[%s1 + $0x3c] sm:$0xf]
      %v1805 = vld [vmem:[%s1 + $0x40] sm:$0xf]
      %v1806 = vld [vmem:[%s1 + $0x44] sm:$0xf]
      %v1807 = vld [vmem:[%s1 + $0x48] sm:$0xf]
      %v1808 = vld [vmem:[%s1 + $0x4c] sm:$0xf]
      %v1809 = vld [vmem:[%s1 + $0x50] sm:$0xf]
      %v1810 = vld [vmem:[%s1 + $0x54] sm:$0xf]
      %v1811 = vld [vmem:[%s1 + $0x58] sm:$0xf]
      %v1812 = vld [vmem:[%s1 + $0x5c] sm:$0xf]
      %v1813 = vld [vmem:[%s1 + $0x60] sm:$0xf]
      %v1814 = vld [vmem:[%s1 + $0x64] sm:$0xf]
      %v1815 = vld [vmem:[%s1 + $0x68] sm:$0xf]
      %v1816 = vld [vmem:[%s1 + $0x6c] sm:$0xf]
      %v1817 = vld [vmem:[%s1 + $0x70] sm:$0xf]
      %v1818 = vld [vmem:[%s1 + $0x74] sm:$0xf]
      %v1819 = vld [vmem:[%s1 + $0x78] sm:$0xf]
      %v1820 = vld [vmem:[%s1 + $0x7c] sm:$0xf]
      %v1821 = vld [vmem:[%s1 + $0x80] sm:$0xf]
      %v1822 = vld [vmem:[%s1 + $0x84] sm:$0xf]
      %v1823 = vld [vmem:[%s1 + $0x88] sm:$0xf]
      %v1824 = vld [vmem:[%s1 + $0x8c] sm:$0xf]
      %v1825 = vld [vmem:[%s1 + $0x90] sm:$0xf]
      %v1826 = vld [vmem:[%s1 + $0x94] sm:$0xf]
      %v1827 = vld [vmem:[%s1 + $0x98] sm:$0xf]
      %v1828 = vld [vmem:[%s1 + $0x9c] sm:$0xf]
      %v1829 = vld [vmem:[%s1 + $0xa0] sm:$0xf]
      %v1830 = vld [vmem:[%s1 + $0xa4] sm:$0xf]
      %v1831 = vld [vmem:[%s1 + $0xa8] sm:$0xf]
      %v1832 = vld [vmem:[%s1 + $0xac] sm:$0xf]
      %v1833 = vld [vmem:[%s1 + $0xb0] sm:$0xf]
      %v1834 = vld [vmem:[%s1 + $0xb4] sm:$0xf]
      %v1835 = vld [vmem:[%s1 + $0xb8] sm:$0xf]
      %v1836 = vld [vmem:[%s1 + $0xbc] sm:$0xf]
      %v1837 = vld [vmem:[%s1 + $0xc0] sm:$0xf]
      %v1838 = vld [vmem:[%s1 + $0xc4] sm:$0xf]
      %v1839 = vld [vmem:[%s1 + $0xc8] sm:$0xf]
      %v1840 = vld [vmem:[%s1 + $0xcc] sm:$0xf]
      %v1841 = vld [vmem:[%s1 + $0xd0] sm:$0xf]
      %v1842 = vld [vmem:[%s1 + $0xd4] sm:$0xf]
      %v1843 = vld [vmem:[%s1 + $0xd8] sm:$0xf]
      %v1844 = vld [vmem:[%s1 + $0xdc] sm:$0xf]
      %v1845 = vld [vmem:[%s1 + $0xe0] sm:$0xf]
      %v1846 = vld [vmem:[%s1 + $0xe4] sm:$0xf]
      %v1847 = vld [vmem:[%s1 + $0xe8] sm:$0xf]
      %v1848 = vld [vmem:[%s1 + $0xec] sm:$0xf]
      %v1849 = vld [vmem:[%s1 + $0xf0] sm:$0xf]
      %v1850 = vld [vmem:[%s1 + $0xf4] sm:$0xf]
      %v1851 = vld [vmem:[%s1 + $0xf8] sm:$0xf]
      %v1852 = vld [vmem:[%s1 + $0xfc] sm:$0xf]
      %v1853 = vld [vmem:[%s1 + $0x100] sm:$0xf]
      %v1854 = vld [vmem:[%s1 + $0x104] sm:$0xf]
      %v1855 = vld [vmem:[%s1 + $0x108] sm:$0xf]
      %v1856 = vld [vmem:[%s1 + $0x10c] sm:$0xf]
      %v1857 = vld [vmem:[%s1 + $0x110] sm:$0xf]
      %v1858 = vld [vmem:[%s1 + $0x114] sm:$0xf]
      %v1859 = vld [vmem:[%s1 + $0x118] sm:$0xf]
      %v1860 = vld [vmem:[%s1 + $0x11c] sm:$0xf]
      %v1861 = vld [vmem:[%s1 + $0x120] sm:$0xf]
      %v1862 = vld [vmem:[%s1 + $0x124] sm:$0xf]
      %v1863 = vld [vmem:[%s1 + $0x128] sm:$0xf]
      %v1864 = vld [vmem:[%s1 + $0x12c] sm:$0xf]
      %v1865 = vld [vmem:[%s1 + $0x130] sm:$0xf]
      %v1866 = vld [vmem:[%s1 + $0x134] sm:$0xf]
      %v1867 = vld [vmem:[%s1 + $0x138] sm:$0xf]
      %v1868 = vld [vmem:[%s1 + $0x13c] sm:$0xf]
      %v1869 = vld [vmem:[%s1 + $0x140] sm:$0xf]
      %v1870 = vld [vmem:[%s1 + $0x144] sm:$0xf]
      %v1871 = vld [vmem:[%s1 + $0x148] sm:$0xf]
      %v1872 = vld [vmem:[%s1 + $0x14c] sm:$0xf]
      %v1873 = vld [vmem:[%s1 + $0x150] sm:$0xf]
      %v1874 = vld [vmem:[%s1 + $0x154] sm:$0xf]
      %v1875 = vld [vmem:[%s1 + $0x158] sm:$0xf]
      %v1876 = vld [vmem:[%s1 + $0x15c] sm:$0xf]
      %v1877 = vld [vmem:[%s1 + $0x160] sm:$0xf]
      %v1878 = vld [vmem:[%s1 + $0x164] sm:$0xf]
      %v1879 = vld [vmem:[%s1 + $0x168] sm:$0xf]
      %v1880 = vld [vmem:[%s1 + $0x16c] sm:$0xf]
      %v1881 = vld [vmem:[%s1 + $0x170] sm:$0xf]
      %v1882 = vld [vmem:[%s1 + $0x174] sm:$0xf]
      %v1883 = vld [vmem:[%s1 + $0x178] sm:$0xf]
      %v1884 = vld [vmem:[%s1 + $0x17c] sm:$0xf]
      %v1885 = vld [vmem:[%s1 + $0x180] sm:$0xf]
      %v1886 = vld [vmem:[%s1 + $0x184] sm:$0xf]
      %v1887 = vld [vmem:[%s1 + $0x188] sm:$0xf]
      %v1888 = vld [vmem:[%s1 + $0x18c] sm:$0xf]
      %v1889 = vld [vmem:[%s1 + $0x190] sm:$0xf]
      %v1890 = vld [vmem:[%s1 + $0x194] sm:$0xf]
      %v1891 = vld [vmem:[%s1 + $0x198] sm:$0xf]
      %v1892 = vld [vmem:[%s1 + $0x19c] sm:$0xf]
      %v1893 = vld [vmem:[%s1 + $0x1a0] sm:$0xf]
      %v1894 = vld [vmem:[%s1 + $0x1a4] sm:$0xf]
      %v1895 = vld [vmem:[%s1 + $0x1a8] sm:$0xf]
      %v1896 = vld [vmem:[%s1 + $0x1ac] sm:$0xf]
      %v1897 = vld [vmem:[%s1 + $0x1b0] sm:$0xf]
      %v1898 = vld [vmem:[%s1 + $0x1b4] sm:$0xf]
      %v1899 = vld [vmem:[%s1 + $0x1b8] sm:$0xf]
      %v1900 = vld [vmem:[%s1 + $0x1bc] sm:$0xf]
      %v1901 = vld [vmem:[%s1 + $0x1c0] sm:$0xf]
      %v1902 = vld [vmem:[%s1 + $0x1c4] sm:$0xf]
      %v1903 = vld [vmem:[%s1 + $0x1c8] sm:$0xf]
      %v1904 = vld [vmem:[%s1 + $0x1cc] sm:$0xf]
      %v1905 = vld [vmem:[%s1 + $0x1d0] sm:$0xf]
      %v1906 = vld [vmem:[%s1 + $0x1d4] sm:$0xf]
      %v1907 = vld [vmem:[%s1 + $0x1d8] sm:$0xf]
      %v1908 = vld [vmem:[%s1 + $0x1dc] sm:$0xf]
      %v1909 = vld [vmem:[%s1 + $0x1e0] sm:$0xf]
      %v1910 = vld [vmem:[%s1 + $0x1e4] sm:$0xf]
      %v1911 = vld [vmem:[%s1 + $0x1e8] sm:$0xf]
      %v1912 = vld [vmem:[%s1 + $0x1ec] sm:$0xf]
      %v1913 = vld [vmem:[%s1 + $0x1f0] sm:$0xf]
      %v1914 = vld [vmem:[%s1 + $0x1f4] sm:$0xf]
      %v1915 = vld [vmem:[%s1 + $0x1f8] sm:$0xf]
      %v1916 = vld [vmem:[%s1 + $0x1fc] sm:$0xf]
      %v1917 = vld [vmem:[%s1 + $0x200] sm:$0xf]
      %v1918 = vld [vmem:[%s1 + $0x204] sm:$0xf]
      %v1919 = vld [vmem:[%s1 + $0x208] sm:$0xf]
      %v1920 = vld [vmem:[%s1 + $0x20c] sm:$0xf]
      %v1921 = vld [vmem:[%s1 + $0x210] sm:$0xf]
      %v1922 = vld [vmem:[%s1 + $0x214] sm:$0xf]
      %v1923 = vld [vmem:[%s1 + $0x218] sm:$0xf]
      %v1924 = vld [vmem:[%s1 + $0x21c] sm:$0xf]
      %v1925 = vld [vmem:[%s1 + $0x220] sm:$0xf]
      %v1926 = vld [vmem:[%s1 + $0x224] sm:$0xf]
      %v1927 = vld [vmem:[%s1 + $0x228] sm:$0xf]
      %v1928 = vld [vmem:[%s1 + $0x22c] sm:$0xf]
      %v1929 = vld [vmem:[%s1 + $0x230] sm:$0xf]
      %v1930 = vld [vmem:[%s1 + $0x234] sm:$0xf]
      %v1931 = vld [vmem:[%s1 + $0x238] sm:$0xf]
      %v1932 = vld [vmem:[%s1 + $0x23c] sm:$0xf]
      %v2077 = vunpack.c.l.b16 %v1789
      %v2078 = vunpack.c.l.b16 %v1790
      %v2079 = vunpack.c.l.b16 %v1791
      %v2080 = vunpack.c.l.b16 %v1792
      %v2081 = vunpack.c.l.b16 %v1793
      %v2082 = vunpack.c.l.b16 %v1794
      %v2083 = vunpack.c.l.b16 %v1795
      %v2084 = vunpack.c.l.b16 %v1796
      %v2085 = vunpack.c.l.b16 %v1797
      %v2086 = vunpack.c.l.b16 %v1798
      %v2087 = vunpack.c.l.b16 %v1799
      %v2088 = vunpack.c.l.b16 %v1800
      %v2089 = vunpack.c.l.b16 %v1801
      %v2090 = vunpack.c.l.b16 %v1802
      %v2091 = vunpack.c.l.b16 %v1803
      %v2092 = vunpack.c.l.b16 %v1804
      %v2093 = vunpack.c.l.b16 %v1805
      %v2094 = vunpack.c.l.b16 %v1806
      %v2095 = vunpack.c.l.b16 %v1807
      %v2096 = vunpack.c.l.b16 %v1808
      %v2097 = vunpack.c.l.b16 %v1809
      %v2098 = vunpack.c.l.b16 %v1810
      %v2099 = vunpack.c.l.b16 %v1811
      %v2100 = vunpack.c.l.b16 %v1812
      %v2101 = vunpack.c.l.b16 %v1813
      %v2102 = vunpack.c.l.b16 %v1814
      %v2103 = vunpack.c.l.b16 %v1815
      %v2104 = vunpack.c.l.b16 %v1816
      %v2105 = vunpack.c.l.b16 %v1817
      %v2106 = vunpack.c.l.b16 %v1818
      %v2107 = vunpack.c.l.b16 %v1819
      %v2108 = vunpack.c.l.b16 %v1820
      %v2109 = vunpack.c.l.b16 %v1821
      %v2110 = vunpack.c.l.b16 %v1822
      %v2111 = vunpack.c.l.b16 %v1823
      %v2112 = vunpack.c.l.b16 %v1824
      %v2113 = vunpack.c.l.b16 %v1825
      %v2114 = vunpack.c.l.b16 %v1826
      %v2115 = vunpack.c.l.b16 %v1827
      %v2116 = vunpack.c.l.b16 %v1828
      %v2117 = vunpack.c.l.b16 %v1829
      %v2118 = vunpack.c.l.b16 %v1830
      %v2119 = vunpack.c.l.b16 %v1831
      %v2120 = vunpack.c.l.b16 %v1832
      %v2121 = vunpack.c.l.b16 %v1833
      %v2122 = vunpack.c.l.b16 %v1834
      %v2123 = vunpack.c.l.b16 %v1835
      %v2124 = vunpack.c.l.b16 %v1836
      %v2125 = vunpack.c.l.b16 %v1837
      %v2126 = vunpack.c.l.b16 %v1838
      %v2127 = vunpack.c.l.b16 %v1839
      %v2128 = vunpack.c.l.b16 %v1840
      %v2129 = vunpack.c.l.b16 %v1841
      %v2130 = vunpack.c.l.b16 %v1842
      %v2131 = vunpack.c.l.b16 %v1843
      %v2132 = vunpack.c.l.b16 %v1844
      %v2133 = vunpack.c.l.b16 %v1845
      %v2134 = vunpack.c.l.b16 %v1846
      %v2135 = vunpack.c.l.b16 %v1847
      %v2136 = vunpack.c.l.b16 %v1848
      %v2137 = vunpack.c.l.b16 %v1849
      %v2138 = vunpack.c.l.b16 %v1850
      %v2139 = vunpack.c.l.b16 %v1851
      %v2140 = vunpack.c.l.b16 %v1852
      %v2141 = vunpack.c.l.b16 %v1853
      %v2142 = vunpack.c.l.b16 %v1854
      %v2143 = vunpack.c.l.b16 %v1855
      %v2144 = vunpack.c.l.b16 %v1856
      %v2145 = vunpack.c.l.b16 %v1857
      %v2146 = vunpack.c.l.b16 %v1858
      %v2147 = vunpack.c.l.b16 %v1859
      %v2148 = vunpack.c.l.b16 %v1860
      %v2149 = vunpack.c.l.b16 %v1861
      %v2150 = vunpack.c.l.b16 %v1862
      %v2151 = vunpack.c.l.b16 %v1863
      %v2152 = vunpack.c.l.b16 %v1864
      %v2153 = vunpack.c.l.b16 %v1865
      %v2154 = vunpack.c.l.b16 %v1866
      %v2155 = vunpack.c.l.b16 %v1867
      %v2156 = vunpack.c.l.b16 %v1868
      %v2157 = vunpack.c.l.b16 %v1869
      %v2158 = vunpack.c.l.b16 %v1870
      %v2159 = vunpack.c.l.b16 %v1871
      %v2160 = vunpack.c.l.b16 %v1872
      %v2161 = vunpack.c.l.b16 %v1873
      %v2162 = vunpack.c.l.b16 %v1874
      %v2163 = vunpack.c.l.b16 %v1875
      %v2164 = vunpack.c.l.b16 %v1876
      %v2165 = vunpack.c.l.b16 %v1877
      %v2166 = vunpack.c.l.b16 %v1878
      %v2167 = vunpack.c.l.b16 %v1879
      %v2168 = vunpack.c.l.b16 %v1880
      %v2169 = vunpack.c.l.b16 %v1881
      %v2170 = vunpack.c.l.b16 %v1882
      %v2171 = vunpack.c.l.b16 %v1883
      %v2172 = vunpack.c.l.b16 %v1884
      %v2173 = vunpack.c.l.b16 %v1885
      %v2174 = vunpack.c.l.b16 %v1886
      %v2175 = vunpack.c.l.b16 %v1887
      %v2176 = vunpack.c.l.b16 %v1888
      %v2177 = vunpack.c.l.b16 %v1889
      %v2178 = vunpack.c.l.b16 %v1890
      %v2179 = vunpack.c.l.b16 %v1891
      %v2180 = vunpack.c.l.b16 %v1892
      %v2181 = vunpack.c.l.b16 %v1893
      %v2182 = vunpack.c.l.b16 %v1894
      %v2183 = vunpack.c.l.b16 %v1895
      %v2184 = vunpack.c.l.b16 %v1896
      %v2185 = vunpack.c.l.b16 %v1897
      %v2186 = vunpack.c.l.b16 %v1898
      %v2187 = vunpack.c.l.b16 %v1899
      %v2188 = vunpack.c.l.b16 %v1900
      %v2189 = vunpack.c.l.b16 %v1901
      %v2190 = vunpack.c.l.b16 %v1902
      %v2191 = vunpack.c.l.b16 %v1903
      %v2192 = vunpack.c.l.b16 %v1904
      %v2193 = vunpack.c.l.b16 %v1905
      %v2194 = vunpack.c.l.b16 %v1906
      %v2195 = vunpack.c.l.b16 %v1907
      %v2196 = vunpack.c.l.b16 %v1908
      %v2197 = vunpack.c.l.b16 %v1909
      %v2198 = vunpack.c.l.b16 %v1910
      %v2199 = vunpack.c.l.b16 %v1911
      %v2200 = vunpack.c.l.b16 %v1912
      %v2201 = vunpack.c.l.b16 %v1913
      %v2202 = vunpack.c.l.b16 %v1914
      %v2203 = vunpack.c.l.b16 %v1915
      %v2204 = vunpack.c.l.b16 %v1916
      %v2205 = vunpack.c.l.b16 %v1917
      %v2206 = vunpack.c.l.b16 %v1918
      %v2207 = vunpack.c.l.b16 %v1919
      %v2208 = vunpack.c.l.b16 %v1920
      %v2209 = vunpack.c.l.b16 %v1921
      %v2210 = vunpack.c.l.b16 %v1922
      %v2211 = vunpack.c.l.b16 %v1923
      %v2212 = vunpack.c.l.b16 %v1924
      %v2213 = vunpack.c.l.b16 %v1925
      %v2214 = vunpack.c.l.b16 %v1926
      %v2215 = vunpack.c.l.b16 %v1927
      %v2216 = vunpack.c.l.b16 %v1928
      %v2217 = vunpack.c.l.b16 %v1929
      %v2218 = vunpack.c.l.b16 %v1930
      %v2219 = vunpack.c.l.b16 %v1931
      %v2220 = vunpack.c.l.b16 %v1932
      %v2221 = vpack.c.b16 %v2078, %v2077
      %v2222 = vpack.c.b16 %v2080, %v2079
      %v2223 = vpack.c.b16 %v2082, %v2081
      %v2224 = vpack.c.b16 %v2084, %v2083
      %v2225 = vpack.c.b16 %v2086, %v2085
      %v2226 = vpack.c.b16 %v2088, %v2087
      %v2227 = vpack.c.b16 %v2090, %v2089
      %v2228 = vpack.c.b16 %v2092, %v2091
      %v2229 = vpack.c.b16 %v2094, %v2093
      %v2230 = vpack.c.b16 %v2096, %v2095
      %v2231 = vpack.c.b16 %v2098, %v2097
      %v2232 = vpack.c.b16 %v2100, %v2099
      %v2233 = vpack.c.b16 %v2102, %v2101
      %v2234 = vpack.c.b16 %v2104, %v2103
      %v2235 = vpack.c.b16 %v2106, %v2105
      %v2236 = vpack.c.b16 %v2108, %v2107
      %v2237 = vpack.c.b16 %v2110, %v2109
      %v2238 = vpack.c.b16 %v2112, %v2111
      %v2239 = vpack.c.b16 %v2114, %v2113
      %v2240 = vpack.c.b16 %v2116, %v2115
      %v2241 = vpack.c.b16 %v2118, %v2117
      %v2242 = vpack.c.b16 %v2120, %v2119
      %v2243 = vpack.c.b16 %v2122, %v2121
      %v2244 = vpack.c.b16 %v2124, %v2123
      %v2245 = vpack.c.b16 %v2126, %v2125
      %v2246 = vpack.c.b16 %v2128, %v2127
      %v2247 = vpack.c.b16 %v2130, %v2129
      %v2248 = vpack.c.b16 %v2132, %v2131
      %v2249 = vpack.c.b16 %v2134, %v2133
      %v2250 = vpack.c.b16 %v2136, %v2135
      %v2251 = vpack.c.b16 %v2138, %v2137
      %v2252 = vpack.c.b16 %v2140, %v2139
      %v2253 = vpack.c.b16 %v2142, %v2141
      %v2254 = vpack.c.b16 %v2144, %v2143
      %v2255 = vpack.c.b16 %v2146, %v2145
      %v2256 = vpack.c.b16 %v2148, %v2147
      %v2257 = vpack.c.b16 %v2150, %v2149
      %v2258 = vpack.c.b16 %v2152, %v2151
      %v2259 = vpack.c.b16 %v2154, %v2153
      %v2260 = vpack.c.b16 %v2156, %v2155
      %v2261 = vpack.c.b16 %v2158, %v2157
      %v2262 = vpack.c.b16 %v2160, %v2159
      %v2263 = vpack.c.b16 %v2162, %v2161
      %v2264 = vpack.c.b16 %v2164, %v2163
      %v2265 = vpack.c.b16 %v2166, %v2165
      %v2266 = vpack.c.b16 %v2168, %v2167
      %v2267 = vpack.c.b16 %v2170, %v2169
      %v2268 = vpack.c.b16 %v2172, %v2171
      %v2269 = vpack.c.b16 %v2174, %v2173
      %v2270 = vpack.c.b16 %v2176, %v2175
      %v2271 = vpack.c.b16 %v2178, %v2177
      %v2272 = vpack.c.b16 %v2180, %v2179
      %v2273 = vpack.c.b16 %v2182, %v2181
      %v2274 = vpack.c.b16 %v2184, %v2183
      %v2275 = vpack.c.b16 %v2186, %v2185
      %v2276 = vpack.c.b16 %v2188, %v2187
      %v2277 = vpack.c.b16 %v2190, %v2189
      %v2278 = vpack.c.b16 %v2192, %v2191
      %v2279 = vpack.c.b16 %v2194, %v2193
      %v2280 = vpack.c.b16 %v2196, %v2195
      %v2281 = vpack.c.b16 %v2198, %v2197
      %v2282 = vpack.c.b16 %v2200, %v2199
      %v2283 = vpack.c.b16 %v2202, %v2201
      %v2284 = vpack.c.b16 %v2204, %v2203
      %v2285 = vpack.c.b16 %v2206, %v2205
      %v2286 = vpack.c.b16 %v2208, %v2207
      %v2287 = vpack.c.b16 %v2210, %v2209
      %v2288 = vpack.c.b16 %v2212, %v2211
      %v2289 = vpack.c.b16 %v2214, %v2213
      %v2290 = vpack.c.b16 %v2216, %v2215
      %v2291 = vpack.c.b16 %v2218, %v2217
      %v2292 = vpack.c.b16 %v2220, %v2219
      %2365 = vmatprep.subr.bf16.mxu0 0
      %2366 = vmatpush1.bf16.msra.mxu0 %v2221
      %2367 = vmatprep.subr.bf16.mxu0 0
      %2368 = vmatpush1.bf16.msra.mxu0 %v2222
      %2369 = vmatprep.subr.bf16.mxu0 0
      %2370 = vmatpush1.bf16.msra.mxu0 %v2223
      %2371 = vmatprep.subr.bf16.mxu0 0
      %2372 = vmatpush1.bf16.msra.mxu0 %v2224
      %2373 = vmatprep.subr.bf16.mxu0 0
      %2374 = vmatpush1.bf16.msra.mxu0 %v2225
      %2375 = vmatprep.subr.bf16.mxu0 0
      %2376 = vmatpush1.bf16.msra.mxu0 %v2226
      %2377 = vmatprep.subr.bf16.mxu0 0
      %2378 = vmatpush1.bf16.msra.mxu0 %v2227
      %2379 = vmatprep.subr.bf16.mxu0 0
      %2380 = vmatpush1.bf16.msra.mxu0 %v2228
      %2381 = vmatprep.subr.bf16.mxu0 0
      %2382 = vmatpush1.bf16.msra.mxu0 %v2229
      %2383 = vmatprep.subr.bf16.mxu0 0
      %2384 = vmatpush1.bf16.msra.mxu0 %v2230
      %2385 = vmatprep.subr.bf16.mxu0 0
      %2386 = vmatpush1.bf16.msra.mxu0 %v2231
      %2387 = vmatprep.subr.bf16.mxu0 0
      %2388 = vmatpush1.bf16.msra.mxu0 %v2232
      %2389 = vmatprep.subr.bf16.mxu0 0
      %2390 = vmatpush1.bf16.msra.mxu0 %v2233
      %2391 = vmatprep.subr.bf16.mxu0 0
      %2392 = vmatpush1.bf16.msra.mxu0 %v2234
      %2393 = vmatprep.subr.bf16.mxu0 0
      %2394 = vmatpush1.bf16.msra.mxu0 %v2235
      %2395 = vmatprep.subr.bf16.mxu0 0
      %2396 = vmatpush1.bf16.msra.mxu0 %v2236
      %2397 = vmatprep.mubr.bf16.mxu0 %v629
      %2398 = vmatmul.mubr.bf16.gmra.mrb[0].mxu0 %v547
      %v2399 = vpop.f32.mrb[0].mxu0
      %v2400 = vadd.f32 0.0, %v2399
      %v2401 = vpop.f32.mrb[0].mxu0
      %v2402 = vpop.f32.mrb[0].mxu0
      %v2403 = vadd.f32 0.0, %v2402
      %v2404 = vpop.f32.mrb[0].mxu0
      %2405 = vmatprep.mubr.bf16.mxu0 %v637
      %2406 = vmatmul.mubr.bf16.gmra.mrb[0].mxu0 %v548
      %v2407 = vpop.f32.mrb[0].mxu0
      %v2408 = vadd.f32 0.0, %v2407
      %v2409 = vpop.f32.mrb[0].mxu0
      %v2410 = vpop.f32.mrb[0].mxu0
      %v2411 = vadd.f32 0.0, %v2410
      %v2412 = vpop.f32.mrb[0].mxu0
      %2413 = vmatprep.mubr.bf16.mxu0 %v649
      %2414 = vmatmul.mubr.bf16.gmra.mrb[0].mxu0 %v549
      %v2415 = vpop.f32.mrb[0].mxu0
      %v2416 = vadd.f32 0.0, %v2415
      %v2417 = vpop.f32.mrb[0].mxu0
      %v2418 = vpop.f32.mrb[0].mxu0
      %v2419 = vadd.f32 0.0, %v2418
      %v2420 = vpop.f32.mrb[0].mxu0
      %2421 = vmatprep.mubr.bf16.mxu0 %v657
      %2422 = vmatmul.mubr.bf16.gmra.mrb[0].mxu0 %v550
      %v2423 = vpop.f32.mrb[0].mxu0
      %v2424 = vadd.f32 0.0, %v2423
      %v2425 = vpop.f32.mrb[0].mxu0
      %v2426 = vpop.f32.mrb[0].mxu0
      %v2427 = vadd.f32 0.0, %v2426
      %v2428 = vpop.f32.mrb[0].mxu0
      %2429 = vmatprep.mubr.bf16.mxu0 %v669
      %2430 = vmatmul.mubr.bf16.gmra.mrb[0].mxu0 %v551
      %v2431 = vpop.f32.mrb[0].mxu0
      %v2432 = vadd.f32 0.0, %v2431
      %v2433 = vpop.f32.mrb[0].mxu0
      %v2434 = vpop.f32.mrb[0].mxu0
      %v2435 = vadd.f32 0.0, %v2434
      %v2436 = vpop.f32.mrb[0].mxu0
      %2437 = vmatprep.mubr.bf16.mxu0 %v677
      %2438 = vmatmul.mubr.bf16.gmra.mrb[0].mxu0 %v552
      %v2439 = vpop.f32.mrb[0].mxu0
      %v2440 = vadd.f32 0.0, %v2439
      %v2441 = vpop.f32.mrb[0].mxu0
      %v2442 = vpop.f32.mrb[0].mxu0
      %v2443 = vadd.f32 0.0, %v2442
      %v2444 = vpop.f32.mrb[0].mxu0
      %2445 = vmatprep.mubr.bf16.mxu0 %v689
      %2446 = vmatmul.mubr.bf16.gmra.mrb[0].mxu0 %v553
      %v2447 = vpop.f32.mrb[0].mxu0
      %v2448 = vadd.f32 0.0, %v2447
      %v2449 = vpop.f32.mrb[0].mxu0
      %v2450 = vpop.f32.mrb[0].mxu0
      %v2451 = vadd.f32 0.0, %v2450
      %v2452 = vpop.f32.mrb[0].mxu0
      %2453 = vmatprep.mubr.bf16.mxu0 %v697
      %2454 = vmatmul.mubr.bf16.gmra.mrb[0].mxu0 %v554
      %v2455 = vpop.f32.mrb[0].mxu0
      %v2456 = vadd.f32 0.0, %v2455
      %v2457 = vpop.f32.mrb[0].mxu0
      %v2458 = vpop.f32.mrb[0].mxu0
      %v2459 = vadd.f32 0.0, %v2458
      %v2460 = vpop.f32.mrb[0].mxu0
      %2461 = vmatprep.mubr.bf16.mxu0 %v709
      %2462 = vmatmul.mubr.bf16.gmra.mrb[0].mxu0 %v555
      %v2463 = vpop.f32.mrb[0].mxu0
      %v2464 = vadd.f32 0.0, %v2463
      %v2465 = vpop.f32.mrb[0].mxu0
      %v2466 = vpop.f32.mrb[0].mxu0
      %v2467 = vadd.f32 0.0, %v2466
      %v2468 = vpop.f32.mrb[0].mxu0
      %2469 = vmatprep.mubr.bf16.mxu0 %v717
      %2470 = vmatmul.mubr.bf16.gmra.mrb[0].mxu0 %v556
      %v2471 = vpop.f32.mrb[0].mxu0
      %v2472 = vadd.f32 0.0, %v2471
      %v2473 = vpop.f32.mrb[0].mxu0
      %v2474 = vpop.f32.mrb[0].mxu0
      %v2475 = vadd.f32 0.0, %v2474
      %v2476 = vpop.f32.mrb[0].mxu0
      %2477 = vmatprep.mubr.bf16.mxu0 %v729
      %2478 = vmatmul.mubr.bf16.gmra.mrb[0].mxu0 %v557
      %v2479 = vpop.f32.mrb[0].mxu0
      %v2480 = vadd.f32 0.0, %v2479
      %v2481 = vpop.f32.mrb[0].mxu0
      %v2482 = vpop.f32.mrb[0].mxu0
      %v2483 = vadd.f32 0.0, %v2482
      %v2484 = vpop.f32.mrb[0].mxu0
      %2485 = vmatprep.mubr.bf16.mxu0 %v737
      %2486 = vmatmul.mubr.bf16.gmra.mrb[0].mxu0 %v558
      %v2487 = vpop.f32.mrb[0].mxu0
      %v2488 = vadd.f32 0.0, %v2487
      %v2489 = vpop.f32.mrb[0].mxu0
      %v2490 = vpop.f32.mrb[0].mxu0
      %v2491 = vadd.f32 0.0, %v2490
      %v2492 = vpop.f32.mrb[0].mxu0
      %2493 = vmatprep.mubr.bf16.mxu0 %v749
      %2494 = vmatmul.mubr.bf16.gmra.mrb[0].mxu0 %v559
      %v2495 = vpop.f32.mrb[0].mxu0
      %v2496 = vadd.f32 0.0, %v2495
      %v2497 = vpop.f32.mrb[0].mxu0
      %v2498 = vpop.f32.mrb[0].mxu0
      %v2499 = vadd.f32 0.0, %v2498
      %v2500 = vpop.f32.mrb[0].mxu0
      %2501 = vmatprep.mubr.bf16.mxu0 %v757
      %2502 = vmatmul.mubr.bf16.gmra.mrb[0].mxu0 %v560
      %v2503 = vpop.f32.mrb[0].mxu0
      %v2504 = vadd.f32 0.0, %v2503
      %v2505 = vpop.f32.mrb[0].mxu0
      %v2506 = vpop.f32.mrb[0].mxu0
      %v2507 = vadd.f32 0.0, %v2506
      %v2508 = vpop.f32.mrb[0].mxu0
      %2509 = vmatprep.mubr.bf16.mxu0 %v769
      %2510 = vmatmul.mubr.bf16.gmra.mrb[0].mxu0 %v561
      %v2511 = vpop.f32.mrb[0].mxu0
      %v2512 = vadd.f32 0.0, %v2511
      %v2513 = vpop.f32.mrb[0].mxu0
      %v2514 = vpop.f32.mrb[0].mxu0
      %v2515 = vadd.f32 0.0, %v2514
      %v2516 = vpop.f32.mrb[0].mxu0
      %2517 = vmatprep.mubr.bf16.mxu0 %v777
      %2518 = vmatmul.mubr.bf16.gmra.mrb[0].mxu0 %v562
      %v2519 = vpop.f32.mrb[0].mxu0
      %v2520 = vadd.f32 0.0, %v2519
      %v2521 = vpop.f32.mrb[0].mxu0
      %v2522 = vpop.f32.mrb[0].mxu0
      %v2523 = vadd.f32 0.0, %v2522
      %v2524 = vpop.f32.mrb[0].mxu0
      %2525 = vmatprep.mubr.bf16.mxu0 %v789
      %2526 = vmatmul.mubr.bf16.gmra.mrb[0].mxu0 %v563
      %v2527 = vpop.f32.mrb[0].mxu0
      %v2528 = vadd.f32 0.0, %v2527
      %v2529 = vpop.f32.mrb[0].mxu0
      %v2530 = vpop.f32.mrb[0].mxu0
      %v2531 = vadd.f32 0.0, %v2530
      %v2532 = vpop.f32.mrb[0].mxu0
      %2533 = vmatprep.mubr.bf16.mxu0 %v797
      %2534 = vmatmul.mubr.bf16.gmra.mrb[0].mxu0 %v564
      %v2535 = vpop.f32.mrb[0].mxu0
      %v2536 = vadd.f32 0.0, %v2535
      %v2537 = vpop.f32.mrb[0].mxu0
      %v2538 = vpop.f32.mrb[0].mxu0
      %v2539 = vadd.f32 0.0, %v2538
      %v2540 = vpop.f32.mrb[0].mxu0
      %2541 = vmatprep.mubr.bf16.mxu0 %v809
      %2542 = vmatmul.mubr.bf16.gmra.mrb[0].mxu0 %v565
      %v2543 = vpop.f32.mrb[0].mxu0
      %v2544 = vadd.f32 0.0, %v2543
      %v2545 = vpop.f32.mrb[0].mxu0
      %v2546 = vpop.f32.mrb[0].mxu0
      %v2547 = vadd.f32 0.0, %v2546
      %v2548 = vpop.f32.mrb[0].mxu0
      %2549 = vmatprep.mubr.bf16.mxu0 %v817
      %2550 = vmatmul.mubr.bf16.gmra.mrb[0].mxu0 %v566
      %v2551 = vpop.f32.mrb[0].mxu0
      %v2552 = vadd.f32 0.0, %v2551
      %v2553 = vpop.f32.mrb[0].mxu0
      %v2554 = vpop.f32.mrb[0].mxu0
      %v2555 = vadd.f32 0.0, %v2554
      %v2556 = vpop.f32.mrb[0].mxu0
      %2557 = vdwg.mxu0
      %2558 = vmatprep.subr.bf16.mxu0 0
      %2559 = vmatpush1.bf16.msra.mxu0 %v2237
      %2560 = vmatprep.subr.bf16.mxu0 0
      %2561 = vmatpush1.bf16.msra.mxu0 %v2238
      %2562 = vmatprep.subr.bf16.mxu0 0
      %2563 = vmatpush1.bf16.msra.mxu0 %v2239
      %2564 = vmatprep.subr.bf16.mxu0 0
      %2565 = vmatpush1.bf16.msra.mxu0 %v2240
      %2566 = vmatprep.subr.bf16.mxu0 0
      %2567 = vmatpush1.bf16.msra.mxu0 %v2241
      %2568 = vmatprep.subr.bf16.mxu0 0
      %2569 = vmatpush1.bf16.msra.mxu0 %v2242
      %2570 = vmatprep.subr.bf16.mxu0 0
      %2571 = vmatpush1.bf16.msra.mxu0 %v2243
      %2572 = vmatprep.subr.bf16.mxu0 0
      %2573 = vmatpush1.bf16.msra.mxu0 %v2244
      %2574 = vmatprep.subr.bf16.mxu0 0
      %2575 = vmatpush1.bf16.msra.mxu0 %v2245
      %2576 = vmatprep.subr.bf16.mxu0 0
      %2577 = vmatpush1.bf16.msra.mxu0 %v2246
      %2578 = vmatprep.subr.bf16.mxu0 0
      %2579 = vmatpush1.bf16.msra.mxu0 %v2247
      %2580 = vmatprep.subr.bf16.mxu0 0
      %2581 = vmatpush1.bf16.msra.mxu0 %v2248
      %2582 = vmatprep.subr.bf16.mxu0 0
      %2583 = vmatpush1.bf16.msra.mxu0 %v2249
      %2584 = vmatprep.subr.bf16.mxu0 0
      %2585 = vmatpush1.bf16.msra.mxu0 %v2250
      %2586 = vmatprep.subr.bf16.mxu0 0
      %2587 = vmatpush1.bf16.msra.mxu0 %v2251
      %2588 = vmatprep.subr.bf16.mxu0 0
      %2589 = vmatpush1.bf16.msra.mxu0 %v2252
      %2590 = vmatprep.mubr.bf16.mxu0 %v989
      %2591 = vmatmul.mubr.bf16.gmra.mrb[0].mxu0 %v841
      %v2592 = vpop.f32.mrb[0].mxu0
      %v2593 = vadd.f32 %v2400, %v2592
      %v2594 = vpop.f32.mrb[0].mxu0
      %v2595 = vpop.f32.mrb[0].mxu0
      %v2596 = vadd.f32 %v2403, %v2595
      %v2597 = vpop.f32.mrb[0].mxu0
      %2598 = vmatprep.mubr.bf16.mxu0 %v990
      %2599 = vmatmul.mubr.bf16.gmra.mrb[0].mxu0 %v843
      %v2600 = vpop.f32.mrb[0].mxu0
      %v2601 = vadd.f32 %v2408, %v2600
      %v2602 = vpop.f32.mrb[0].mxu0
      %v2603 = vpop.f32.mrb[0].mxu0
      %v2604 = vadd.f32 %v2411, %v2603
      %v2605 = vpop.f32.mrb[0].mxu0
      %2606 = vmatprep.mubr.bf16.mxu0 %v991
      %2607 = vmatmul.mubr.bf16.gmra.mrb[0].mxu0 %v846
      %v2608 = vpop.f32.mrb[0].mxu0
      %v2609 = vadd.f32 %v2416, %v2608
      %v2610 = vpop.f32.mrb[0].mxu0
      %v2611 = vpop.f32.mrb[0].mxu0
      %v2612 = vadd.f32 %v2419, %v2611
      %v2613 = vpop.f32.mrb[0].mxu0
      %2614 = vmatprep.mubr.bf16.mxu0 %v992
      %2615 = vmatmul.mubr.bf16.gmra.mrb[0].mxu0 %v848
      %v2616 = vpop.f32.mrb[0].mxu0
      %v2617 = vadd.f32 %v2424, %v2616
      %v2618 = vpop.f32.mrb[0].mxu0
      %v2619 = vpop.f32.mrb[0].mxu0
      %v2620 = vadd.f32 %v2427, %v2619
      %v2621 = vpop.f32.mrb[0].mxu0
      %2622 = vmatprep.mubr.bf16.mxu0 %v993
      %2623 = vmatmul.mubr.bf16.gmra.mrb[0].mxu0 %v851
      %v2624 = vpop.f32.mrb[0].mxu0
      %v2625 = vadd.f32 %v2432, %v2624
      %v2626 = vpop.f32.mrb[0].mxu0
      %v2627 = vpop.f32.mrb[0].mxu0
      %v2628 = vadd.f32 %v2435, %v2627
      %v2629 = vpop.f32.mrb[0].mxu0
      %2630 = vmatprep.mubr.bf16.mxu0 %v994
      %2631 = vmatmul.mubr.bf16.gmra.mrb[0].mxu0 %v853
      %v2632 = vpop.f32.mrb[0].mxu0
      %v2633 = vadd.f32 %v2440, %v2632
      %v2634 = vpop.f32.mrb[0].mxu0
      %v2635 = vpop.f32.mrb[0].mxu0
      %v2636 = vadd.f32 %v2443, %v2635
      %v2637 = vpop.f32.mrb[0].mxu0
      %2638 = vmatprep.mubr.bf16.mxu0 %v995
      %2639 = vmatmul.mubr.bf16.gmra.mrb[0].mxu0 %v856
      %v2640 = vpop.f32.mrb[0].mxu0
      %v2641 = vadd.f32 %v2448, %v2640
      %v2642 = vpop.f32.mrb[0].mxu0
      %v2643 = vpop.f32.mrb[0].mxu0
      %v2644 = vadd.f32 %v2451, %v2643
      %v2645 = vpop.f32.mrb[0].mxu0
      %2646 = vmatprep.mubr.bf16.mxu0 %v996
      %2647 = vmatmul.mubr.bf16.gmra.mrb[0].mxu0 %v858
      %v2648 = vpop.f32.mrb[0].mxu0
      %v2649 = vadd.f32 %v2456, %v2648
      %v2650 = vpop.f32.mrb[0].mxu0
      %v2651 = vpop.f32.mrb[0].mxu0
      %v2652 = vadd.f32 %v2459, %v2651
      %v2653 = vpop.f32.mrb[0].mxu0
      %2654 = vmatprep.mubr.bf16.mxu0 %v997
      %2655 = vmatmul.mubr.bf16.gmra.mrb[0].mxu0 %v861
      %v2656 = vpop.f32.mrb[0].mxu0
      %v2657 = vadd.f32 %v2464, %v2656
      %v2658 = vpop.f32.mrb[0].mxu0
      %v2659 = vpop.f32.mrb[0].mxu0
      %v2660 = vadd.f32 %v2467, %v2659
      %v2661 = vpop.f32.mrb[0].mxu0
      %2662 = vmatprep.mubr.bf16.mxu0 %v998
      %2663 = vmatmul.mubr.bf16.gmra.mrb[0].mxu0 %v863
      %v2664 = vpop.f32.mrb[0].mxu0
      %v2665 = vadd.f32 %v2472, %v2664
      %v2666 = vpop.f32.mrb[0].mxu0
      %v2667 = vpop.f32.mrb[0].mxu0
      %v2668 = vadd.f32 %v2475, %v2667
      %v2669 = vpop.f32.mrb[0].mxu0
      %2670 = vmatprep.mubr.bf16.mxu0 %v999
      %2671 = vmatmul.mubr.bf16.gmra.mrb[0].mxu0 %v866
      %v2672 = vpop.f32.mrb[0].mxu0
      %v2673 = vadd.f32 %v2480, %v2672
      %v2674 = vpop.f32.mrb[0].mxu0
      %v2675 = vpop.f32.mrb[0].mxu0
      %v2676 = vadd.f32 %v2483, %v2675
      %v2677 = vpop.f32.mrb[0].mxu0
      %2678 = vmatprep.mubr.bf16.mxu0 %v1000
      %2679 = vmatmul.mubr.bf16.gmra.mrb[0].mxu0 %v868
      %v2680 = vpop.f32.mrb[0].mxu0
      %v2681 = vadd.f32 %v2488, %v2680
      %v2682 = vpop.f32.mrb[0].mxu0
      %v2683 = vpop.f32.mrb[0].mxu0
      %v2684 = vadd.f32 %v2491, %v2683
      %v2685 = vpop.f32.mrb[0].mxu0
      %2686 = vmatprep.mubr.bf16.mxu0 %v1001
      %2687 = vmatmul.mubr.bf16.gmra.mrb[0].mxu0 %v871
      %v2688 = vpop.f32.mrb[0].mxu0
      %v2689 = vadd.f32 %v2496, %v2688
      %v2690 = vpop.f32.mrb[0].mxu0
      %v2691 = vpop.f32.mrb[0].mxu0
      %v2692 = vadd.f32 %v2499, %v2691
      %v2693 = vpop.f32.mrb[0].mxu0
      %2694 = vmatprep.mubr.bf16.mxu0 %v1002
      %2695 = vmatmul.mubr.bf16.gmra.mrb[0].mxu0 %v873
      %v2696 = vpop.f32.mrb[0].mxu0
      %v2697 = vadd.f32 %v2504, %v2696
      %v2698 = vpop.f32.mrb[0].mxu0
      %v2699 = vpop.f32.mrb[0].mxu0
      %v2700 = vadd.f32 %v2507, %v2699
      %v2701 = vpop.f32.mrb[0].mxu0
      %2702 = vmatprep.mubr.bf16.mxu0 %v1003
      %2703 = vmatmul.mubr.bf16.gmra.mrb[0].mxu0 %v876
      %v2704 = vpop.f32.mrb[0].mxu0
      %v2705 = vadd.f32 %v2512, %v2704
      %v2706 = vpop.f32.mrb[0].mxu0
      %v2707 = vpop.f32.mrb[0].mxu0
      %v2708 = vadd.f32 %v2515, %v2707
      %v2709 = vpop.f32.mrb[0].mxu0
      %2710 = vmatprep.mubr.bf16.mxu0 %v1004
      %2711 = vmatmul.mubr.bf16.gmra.mrb[0].mxu0 %v878
      %v2712 = vpop.f32.mrb[0].mxu0
      %v2713 = vadd.f32 %v2520, %v2712
      %v2714 = vpop.f32.mrb[0].mxu0
      %v2715 = vpop.f32.mrb[0].mxu0
      %v2716 = vadd.f32 %v2523, %v2715
      %v2717 = vpop.f32.mrb[0].mxu0
      %2718 = vmatprep.mubr.bf16.mxu0 %v1005
      %2719 = vmatmul.mubr.bf16.gmra.mrb[0].mxu0 %v881
      %v2720 = vpop.f32.mrb[0].mxu0
      %v2721 = vadd.f32 %v2528, %v2720
      %v2722 = vpop.f32.mrb[0].mxu0
      %v2723 = vpop.f32.mrb[0].mxu0
      %v2724 = vadd.f32 %v2531, %v2723
      %v2725 = vpop.f32.mrb[0].mxu0
      %2726 = vmatprep.mubr.bf16.mxu0 %v1006
      %2727 = vmatmul.mubr.bf16.gmra.mrb[0].mxu0 %v883
      %v2728 = vpop.f32.mrb[0].mxu0
      %v2729 = vadd.f32 %v2536, %v2728
      %v2730 = vpop.f32.mrb[0].mxu0
      %v2731 = vpop.f32.mrb[0].mxu0
      %v2732 = vadd.f32 %v2539, %v2731
      %v2733 = vpop.f32.mrb[0].mxu0
      %2734 = vmatprep.mubr.bf16.mxu0 %v1007
      %2735 = vmatmul.mubr.bf16.gmra.mrb[0].mxu0 %v886
      %v2736 = vpop.f32.mrb[0].mxu0
      %v2737 = vadd.f32 %v2544, %v2736
      %v2738 = vpop.f32.mrb[0].mxu0
      %v2739 = vpop.f32.mrb[0].mxu0
      %v2740 = vadd.f32 %v2547, %v2739
      %v2741 = vpop.f32.mrb[0].mxu0
      %2742 = vmatprep.mubr.bf16.mxu0 %v1008
      %2743 = vmatmul.mubr.bf16.gmra.mrb[0].mxu0 %v888
      %v2744 = vpop.f32.mrb[0].mxu0
      %v2745 = vadd.f32 %v2552, %v2744
      %v2746 = vpop.f32.mrb[0].mxu0
      %v2747 = vpop.f32.mrb[0].mxu0
      %v2748 = vadd.f32 %v2555, %v2747
      %v2749 = vpop.f32.mrb[0].mxu0
      %2750 = vdwg.mxu0
      %2751 = vmatprep.subr.bf16.mxu0 0
      %2752 = vmatpush1.bf16.msra.mxu0 %v2253
      %2753 = vmatprep.subr.bf16.mxu0 0
      %2754 = vmatpush1.bf16.msra.mxu0 %v2254
      %2755 = vmatprep.subr.bf16.mxu0 0
      %2756 = vmatpush1.bf16.msra.mxu0 %v2255
      %2757 = vmatprep.subr.bf16.mxu0 0
      %2758 = vmatpush1.bf16.msra.mxu0 %v2256
      %2759 = vmatprep.subr.bf16.mxu0 0
      %2760 = vmatpush1.bf16.msra.mxu0 %v2257
      %2761 = vmatprep.subr.bf16.mxu0 0
      %2762 = vmatpush1.bf16.msra.mxu0 %v2258
      %2763 = vmatprep.subr.bf16.mxu0 0
      %2764 = vmatpush1.bf16.msra.mxu0 %v2259
      %2765 = vmatprep.subr.bf16.mxu0 0
      %2766 = vmatpush1.bf16.msra.mxu0 %v2260
      %2767 = vmatprep.subr.bf16.mxu0 0
      %2768 = vmatpush1.bf16.msra.mxu0 %v2261
      %2769 = vmatprep.subr.bf16.mxu0 0
      %2770 = vmatpush1.bf16.msra.mxu0 %v2262
      %2771 = vmatprep.subr.bf16.mxu0 0
      %2772 = vmatpush1.bf16.msra.mxu0 %v2263
      %2773 = vmatprep.subr.bf16.mxu0 0
      %2774 = vmatpush1.bf16.msra.mxu0 %v2264
      %2775 = vmatprep.subr.bf16.mxu0 0
      %2776 = vmatpush1.bf16.msra.mxu0 %v2265
      %2777 = vmatprep.subr.bf16.mxu0 0
      %2778 = vmatpush1.bf16.msra.mxu0 %v2266
      %2779 = vmatprep.subr.bf16.mxu0 0
      %2780 = vmatpush1.bf16.msra.mxu0 %v2267
      %2781 = vmatprep.subr.bf16.mxu0 0
      %2782 = vmatpush1.bf16.msra.mxu0 %v2268
      %2783 = vmatprep.mubr.bf16.mxu0 %v1281
      %2784 = vmatmul.mubr.bf16.gmra.mrb[0].mxu0 %v1070
      %v2785 = vpop.f32.mrb[0].mxu0
      %v2786 = vadd.f32 %v2593, %v2785
      %v2787 = vpop.f32.mrb[0].mxu0
      %v2788 = vpop.f32.mrb[0].mxu0
      %v2789 = vadd.f32 %v2596, %v2788
      %v2790 = vpop.f32.mrb[0].mxu0
      %2791 = vmatprep.mubr.bf16.mxu0 %v1283
      %2792 = vmatmul.mubr.bf16.gmra.mrb[0].mxu0 %v1078
      %v2793 = vpop.f32.mrb[0].mxu0
      %v2794 = vadd.f32 %v2601, %v2793
      %v2795 = vpop.f32.mrb[0].mxu0
      %v2796 = vpop.f32.mrb[0].mxu0
      %v2797 = vadd.f32 %v2604, %v2796
      %v2798 = vpop.f32.mrb[0].mxu0
      %2799 = vmatprep.mubr.bf16.mxu0 %v1286
      %2800 = vmatmul.mubr.bf16.gmra.mrb[0].mxu0 %v1090
      %v2801 = vpop.f32.mrb[0].mxu0
      %v2802 = vadd.f32 %v2609, %v2801
      %v2803 = vpop.f32.mrb[0].mxu0
      %v2804 = vpop.f32.mrb[0].mxu0
      %v2805 = vadd.f32 %v2612, %v2804
      %v2806 = vpop.f32.mrb[0].mxu0
      %2807 = vmatprep.mubr.bf16.mxu0 %v1288
      %2808 = vmatmul.mubr.bf16.gmra.mrb[0].mxu0 %v1098
      %v2809 = vpop.f32.mrb[0].mxu0
      %v2810 = vadd.f32 %v2617, %v2809
      %v2811 = vpop.f32.mrb[0].mxu0
      %v2812 = vpop.f32.mrb[0].mxu0
      %v2813 = vadd.f32 %v2620, %v2812
      %v2814 = vpop.f32.mrb[0].mxu0
      %2815 = vmatprep.mubr.bf16.mxu0 %v1291
      %2816 = vmatmul.mubr.bf16.gmra.mrb[0].mxu0 %v1110
      %v2817 = vpop.f32.mrb[0].mxu0
      %v2818 = vadd.f32 %v2625, %v2817
      %v2819 = vpop.f32.mrb[0].mxu0
      %v2820 = vpop.f32.mrb[0].mxu0
      %v2821 = vadd.f32 %v2628, %v2820
      %v2822 = vpop.f32.mrb[0].mxu0
      %2823 = vmatprep.mubr.bf16.mxu0 %v1293
      %2824 = vmatmul.mubr.bf16.gmra.mrb[0].mxu0 %v1118
      %v2825 = vpop.f32.mrb[0].mxu0
      %v2826 = vadd.f32 %v2633, %v2825
      %v2827 = vpop.f32.mrb[0].mxu0
      %v2828 = vpop.f32.mrb[0].mxu0
      %v2829 = vadd.f32 %v2636, %v2828
      %v2830 = vpop.f32.mrb[0].mxu0
      %2831 = vmatprep.mubr.bf16.mxu0 %v1296
      %2832 = vmatmul.mubr.bf16.gmra.mrb[0].mxu0 %v1130
      %v2833 = vpop.f32.mrb[0].mxu0
      %v2834 = vadd.f32 %v2641, %v2833
      %v2835 = vpop.f32.mrb[0].mxu0
      %v2836 = vpop.f32.mrb[0].mxu0
      %v2837 = vadd.f32 %v2644, %v2836
      %v2838 = vpop.f32.mrb[0].mxu0
      %2839 = vmatprep.mubr.bf16.mxu0 %v1298
      %2840 = vmatmul.mubr.bf16.gmra.mrb[0].mxu0 %v1138
      %v2841 = vpop.f32.mrb[0].mxu0
      %v2842 = vadd.f32 %v2649, %v2841
      %v2843 = vpop.f32.mrb[0].mxu0
      %v2844 = vpop.f32.mrb[0].mxu0
      %v2845 = vadd.f32 %v2652, %v2844
      %v2846 = vpop.f32.mrb[0].mxu0
      %2847 = vmatprep.mubr.bf16.mxu0 %v1301
      %2848 = vmatmul.mubr.bf16.gmra.mrb[0].mxu0 %v1150
      %v2849 = vpop.f32.mrb[0].mxu0
      %v2850 = vadd.f32 %v2657, %v2849
      %v2851 = vpop.f32.mrb[0].mxu0
      %v2852 = vpop.f32.mrb[0].mxu0
      %v2853 = vadd.f32 %v2660, %v2852
      %v2854 = vpop.f32.mrb[0].mxu0
      %2855 = vmatprep.mubr.bf16.mxu0 %v1303
      %2856 = vmatmul.mubr.bf16.gmra.mrb[0].mxu0 %v1158
      %v2857 = vpop.f32.mrb[0].mxu0
      %v2858 = vadd.f32 %v2665, %v2857
      %v2859 = vpop.f32.mrb[0].mxu0
      %v2860 = vpop.f32.mrb[0].mxu0
      %v2861 = vadd.f32 %v2668, %v2860
      %v2862 = vpop.f32.mrb[0].mxu0
      %2863 = vmatprep.mubr.bf16.mxu0 %v1306
      %2864 = vmatmul.mubr.bf16.gmra.mrb[0].mxu0 %v1170
      %v2865 = vpop.f32.mrb[0].mxu0
      %v2866 = vadd.f32 %v2673, %v2865
      %v2867 = vpop.f32.mrb[0].mxu0
      %v2868 = vpop.f32.mrb[0].mxu0
      %v2869 = vadd.f32 %v2676, %v2868
      %v2870 = vpop.f32.mrb[0].mxu0
      %2871 = vmatprep.mubr.bf16.mxu0 %v1308
      %2872 = vmatmul.mubr.bf16.gmra.mrb[0].mxu0 %v1178
      %v2873 = vpop.f32.mrb[0].mxu0
      %v2874 = vadd.f32 %v2681, %v2873
      %v2875 = vpop.f32.mrb[0].mxu0
      %v2876 = vpop.f32.mrb[0].mxu0
      %v2877 = vadd.f32 %v2684, %v2876
      %v2878 = vpop.f32.mrb[0].mxu0
      %2879 = vmatprep.mubr.bf16.mxu0 %v1311
      %2880 = vmatmul.mubr.bf16.gmra.mrb[0].mxu0 %v1190
      %v2881 = vpop.f32.mrb[0].mxu0
      %v2882 = vadd.f32 %v2689, %v2881
      %v2883 = vpop.f32.mrb[0].mxu0
      %v2884 = vpop.f32.mrb[0].mxu0
      %v2885 = vadd.f32 %v2692, %v2884
      %v2886 = vpop.f32.mrb[0].mxu0
      %2887 = vmatprep.mubr.bf16.mxu0 %v1313
      %2888 = vmatmul.mubr.bf16.gmra.mrb[0].mxu0 %v1198
      %v2889 = vpop.f32.mrb[0].mxu0
      %v2890 = vadd.f32 %v2697, %v2889
      %v2891 = vpop.f32.mrb[0].mxu0
      %v2892 = vpop.f32.mrb[0].mxu0
      %v2893 = vadd.f32 %v2700, %v2892
      %v2894 = vpop.f32.mrb[0].mxu0
      %2895 = vmatprep.mubr.bf16.mxu0 %v1316
      %2896 = vmatmul.mubr.bf16.gmra.mrb[0].mxu0 %v1210
      %v2897 = vpop.f32.mrb[0].mxu0
      %v2898 = vadd.f32 %v2705, %v2897
      %v2899 = vpop.f32.mrb[0].mxu0
      %v2900 = vpop.f32.mrb[0].mxu0
      %v2901 = vadd.f32 %v2708, %v2900
      %v2902 = vpop.f32.mrb[0].mxu0
      %2903 = vmatprep.mubr.bf16.mxu0 %v1318
      %2904 = vmatmul.mubr.bf16.gmra.mrb[0].mxu0 %v1218
      %v2905 = vpop.f32.mrb[0].mxu0
      %v2906 = vadd.f32 %v2713, %v2905
      %v2907 = vpop.f32.mrb[0].mxu0
      %v2908 = vpop.f32.mrb[0].mxu0
      %v2909 = vadd.f32 %v2716, %v2908
      %v2910 = vpop.f32.mrb[0].mxu0
      %2911 = vmatprep.mubr.bf16.mxu0 %v1321
      %2912 = vmatmul.mubr.bf16.gmra.mrb[0].mxu0 %v1230
      %v2913 = vpop.f32.mrb[0].mxu0
      %v2914 = vadd.f32 %v2721, %v2913
      %v2915 = vpop.f32.mrb[0].mxu0
      %v2916 = vpop.f32.mrb[0].mxu0
      %v2917 = vadd.f32 %v2724, %v2916
      %v2918 = vpop.f32.mrb[0].mxu0
      %2919 = vmatprep.mubr.bf16.mxu0 %v1323
      %2920 = vmatmul.mubr.bf16.gmra.mrb[0].mxu0 %v1238
      %v2921 = vpop.f32.mrb[0].mxu0
      %v2922 = vadd.f32 %v2729, %v2921
      %v2923 = vpop.f32.mrb[0].mxu0
      %v2924 = vpop.f32.mrb[0].mxu0
      %v2925 = vadd.f32 %v2732, %v2924
      %v2926 = vpop.f32.mrb[0].mxu0
      %2927 = vmatprep.mubr.bf16.mxu0 %v1326
      %2928 = vmatmul.mubr.bf16.gmra.mrb[0].mxu0 %v1250
      %v2929 = vpop.f32.mrb[0].mxu0
      %v2930 = vadd.f32 %v2737, %v2929
      %v2931 = vpop.f32.mrb[0].mxu0
      %v2932 = vpop.f32.mrb[0].mxu0
      %v2933 = vadd.f32 %v2740, %v2932
      %v2934 = vpop.f32.mrb[0].mxu0
      %2935 = vmatprep.mubr.bf16.mxu0 %v1328
      %2936 = vmatmul.mubr.bf16.gmra.mrb[0].mxu0 %v1258
      %v2937 = vpop.f32.mrb[0].mxu0
      %v2938 = vadd.f32 %v2745, %v2937
      %v2939 = vpop.f32.mrb[0].mxu0
      %v2940 = vpop.f32.mrb[0].mxu0
      %v2941 = vadd.f32 %v2748, %v2940
      %v2942 = vpop.f32.mrb[0].mxu0
      %2943 = vdwg.mxu0
      %2944 = vmatprep.subr.bf16.mxu0 0
      %2945 = vmatpush1.bf16.msra.mxu0 %v2269
      %2946 = vmatprep.subr.bf16.mxu0 0
      %2947 = vmatpush1.bf16.msra.mxu0 %v2270
      %2948 = vmatprep.subr.bf16.mxu0 0
      %2949 = vmatpush1.bf16.msra.mxu0 %v2271
      %2950 = vmatprep.subr.bf16.mxu0 0
      %2951 = vmatpush1.bf16.msra.mxu0 %v2272
      %2952 = vmatprep.subr.bf16.mxu0 0
      %2953 = vmatpush1.bf16.msra.mxu0 %v2273
      %2954 = vmatprep.subr.bf16.mxu0 0
      %2955 = vmatpush1.bf16.msra.mxu0 %v2274
      %2956 = vmatprep.subr.bf16.mxu0 0
      %2957 = vmatpush1.bf16.msra.mxu0 %v2275
      %2958 = vmatprep.subr.bf16.mxu0 0
      %2959 = vmatpush1.bf16.msra.mxu0 %v2276
      %2960 = vmatprep.subr.bf16.mxu0 0
      %2961 = vmatpush1.bf16.msra.mxu0 %v2277
      %2962 = vmatprep.subr.bf16.mxu0 0
      %2963 = vmatpush1.bf16.msra.mxu0 %v2278
      %2964 = vmatprep.subr.bf16.mxu0 0
      %2965 = vmatpush1.bf16.msra.mxu0 %v2279
      %2966 = vmatprep.subr.bf16.mxu0 0
      %2967 = vmatpush1.bf16.msra.mxu0 %v2280
      %2968 = vmatprep.subr.bf16.mxu0 0
      %2969 = vmatpush1.bf16.msra.mxu0 %v2281
      %2970 = vmatprep.subr.bf16.mxu0 0
      %2971 = vmatpush1.bf16.msra.mxu0 %v2282
      %2972 = vmatprep.subr.bf16.mxu0 0
      %2973 = vmatpush1.bf16.msra.mxu0 %v2283
      %2974 = vmatprep.subr.bf16.mxu0 0
      %2975 = vmatpush1.bf16.msra.mxu0 %v2284
      %2976 = vmatprep.mubr.bf16.mxu0 %v1510
      %2977 = vmatmul.mubr.bf16.gmra.mrb[0].mxu0 %v1429
      %v2978 = vpop.f32.mrb[0].mxu0
      %v2979 = vadd.f32 %v2786, %v2978
      %v2980 = vpop.f32.mrb[0].mxu0
      %v2981 = vpop.f32.mrb[0].mxu0
      %v2982 = vadd.f32 %v2789, %v2981
      %v2983 = vpop.f32.mrb[0].mxu0
      %2984 = vmatprep.mubr.bf16.mxu0 %v1518
      %2985 = vmatmul.mubr.bf16.gmra.mrb[0].mxu0 %v1430
      %v2986 = vpop.f32.mrb[0].mxu0
      %v2987 = vadd.f32 %v2794, %v2986
      %v2988 = vpop.f32.mrb[0].mxu0
      %v2989 = vpop.f32.mrb[0].mxu0
      %v2990 = vadd.f32 %v2797, %v2989
      %v2991 = vpop.f32.mrb[0].mxu0
      %2992 = vmatprep.mubr.bf16.mxu0 %v1530
      %2993 = vmatmul.mubr.bf16.gmra.mrb[0].mxu0 %v1431
      %v2994 = vpop.f32.mrb[0].mxu0
      %v2995 = vadd.f32 %v2802, %v2994
      %v2996 = vpop.f32.mrb[0].mxu0
      %v2997 = vpop.f32.mrb[0].mxu0
      %v2998 = vadd.f32 %v2805, %v2997
      %v2999 = vpop.f32.mrb[0].mxu0
      %3000 = vmatprep.mubr.bf16.mxu0 %v1538
      %3001 = vmatmul.mubr.bf16.gmra.mrb[0].mxu0 %v1432
      %v3002 = vpop.f32.mrb[0].mxu0
      %v3003 = vadd.f32 %v2810, %v3002
      %v3004 = vpop.f32.mrb[0].mxu0
      %v3005 = vpop.f32.mrb[0].mxu0
      %v3006 = vadd.f32 %v2813, %v3005
      %v3007 = vpop.f32.mrb[0].mxu0
      %3008 = vmatprep.mubr.bf16.mxu0 %v1550
      %3009 = vmatmul.mubr.bf16.gmra.mrb[0].mxu0 %v1433
      %v3010 = vpop.f32.mrb[0].mxu0
      %v3011 = vadd.f32 %v2818, %v3010
      %v3012 = vpop.f32.mrb[0].mxu0
      %v3013 = vpop.f32.mrb[0].mxu0
      %v3014 = vadd.f32 %v2821, %v3013
      %v3015 = vpop.f32.mrb[0].mxu0
      %3016 = vmatprep.mubr.bf16.mxu0 %v1558
      %3017 = vmatmul.mubr.bf16.gmra.mrb[0].mxu0 %v1434
      %v3018 = vpop.f32.mrb[0].mxu0
      %v3019 = vadd.f32 %v2826, %v3018
      %v3020 = vpop.f32.mrb[0].mxu0
      %v3021 = vpop.f32.mrb[0].mxu0
      %v3022 = vadd.f32 %v2829, %v3021
      %v3023 = vpop.f32.mrb[0].mxu0
      %3024 = vmatprep.mubr.bf16.mxu0 %v1570
      %3025 = vmatmul.mubr.bf16.gmra.mrb[0].mxu0 %v1435
      %v3026 = vpop.f32.mrb[0].mxu0
      %v3027 = vadd.f32 %v2834, %v3026
      %v3028 = vpop.f32.mrb[0].mxu0
      %v3029 = vpop.f32.mrb[0].mxu0
      %v3030 = vadd.f32 %v2837, %v3029
      %v3031 = vpop.f32.mrb[0].mxu0
      %3032 = vmatprep.mubr.bf16.mxu0 %v1578
      %3033 = vmatmul.mubr.bf16.gmra.mrb[0].mxu0 %v1436
      %v3034 = vpop.f32.mrb[0].mxu0
      %v3035 = vadd.f32 %v2842, %v3034
      %v3036 = vpop.f32.mrb[0].mxu0
      %v3037 = vpop.f32.mrb[0].mxu0
      %v3038 = vadd.f32 %v2845, %v3037
      %v3039 = vpop.f32.mrb[0].mxu0
      %3040 = vmatprep.mubr.bf16.mxu0 %v1590
      %3041 = vmatmul.mubr.bf16.gmra.mrb[0].mxu0 %v1437
      %v3042 = vpop.f32.mrb[0].mxu0
      %v3043 = vadd.f32 %v2850, %v3042
      %v3044 = vpop.f32.mrb[0].mxu0
      %v3045 = vpop.f32.mrb[0].mxu0
      %v3046 = vadd.f32 %v2853, %v3045
      %v3047 = vpop.f32.mrb[0].mxu0
      %3048 = vmatprep.mubr.bf16.mxu0 %v1598
      %3049 = vmatmul.mubr.bf16.gmra.mrb[0].mxu0 %v1438
      %v3050 = vpop.f32.mrb[0].mxu0
      %v3051 = vadd.f32 %v2858, %v3050
      %v3052 = vpop.f32.mrb[0].mxu0
      %v3053 = vpop.f32.mrb[0].mxu0
      %v3054 = vadd.f32 %v2861, %v3053
      %v3055 = vpop.f32.mrb[0].mxu0
      %3056 = vmatprep.mubr.bf16.mxu0 %v1610
      %3057 = vmatmul.mubr.bf16.gmra.mrb[0].mxu0 %v1439
      %v3058 = vpop.f32.mrb[0].mxu0
      %v3059 = vadd.f32 %v2866, %v3058
      %v3060 = vpop.f32.mrb[0].mxu0
      %v3061 = vpop.f32.mrb[0].mxu0
      %v3062 = vadd.f32 %v2869, %v3061
      %v3063 = vpop.f32.mrb[0].mxu0
      %3064 = vmatprep.mubr.bf16.mxu0 %v1618
      %3065 = vmatmul.mubr.bf16.gmra.mrb[0].mxu0 %v1440
      %v3066 = vpop.f32.mrb[0].mxu0
      %v3067 = vadd.f32 %v2874, %v3066
      %v3068 = vpop.f32.mrb[0].mxu0
      %v3069 = vpop.f32.mrb[0].mxu0
      %v3070 = vadd.f32 %v2877, %v3069
      %v3071 = vpop.f32.mrb[0].mxu0
      %3072 = vmatprep.mubr.bf16.mxu0 %v1630
      %3073 = vmatmul.mubr.bf16.gmra.mrb[0].mxu0 %v1441
      %v3074 = vpop.f32.mrb[0].mxu0
      %v3075 = vadd.f32 %v2882, %v3074
      %v3076 = vpop.f32.mrb[0].mxu0
      %v3077 = vpop.f32.mrb[0].mxu0
      %v3078 = vadd.f32 %v2885, %v3077
      %v3079 = vpop.f32.mrb[0].mxu0
      %3080 = vmatprep.mubr.bf16.mxu0 %v1638
      %3081 = vmatmul.mubr.bf16.gmra.mrb[0].mxu0 %v1442
      %v3082 = vpop.f32.mrb[0].mxu0
      %v3083 = vadd.f32 %v2890, %v3082
      %v3084 = vpop.f32.mrb[0].mxu0
      %v3085 = vpop.f32.mrb[0].mxu0
      %v3086 = vadd.f32 %v2893, %v3085
      %v3087 = vpop.f32.mrb[0].mxu0
      %3088 = vmatprep.mubr.bf16.mxu0 %v1650
      %3089 = vmatmul.mubr.bf16.gmra.mrb[0].mxu0 %v1443
      %v3090 = vpop.f32.mrb[0].mxu0
      %v3091 = vadd.f32 %v2898, %v3090
      %v3092 = vpop.f32.mrb[0].mxu0
      %v3093 = vpop.f32.mrb[0].mxu0
      %v3094 = vadd.f32 %v2901, %v3093
      %v3095 = vpop.f32.mrb[0].mxu0
      %3096 = vmatprep.mubr.bf16.mxu0 %v1658
      %3097 = vmatmul.mubr.bf16.gmra.mrb[0].mxu0 %v1444
      %v3098 = vpop.f32.mrb[0].mxu0
      %v3099 = vadd.f32 %v2906, %v3098
      %v3100 = vpop.f32.mrb[0].mxu0
      %v3101 = vpop.f32.mrb[0].mxu0
      %v3102 = vadd.f32 %v2909, %v3101
      %v3103 = vpop.f32.mrb[0].mxu0
      %3104 = vmatprep.mubr.bf16.mxu0 %v1670
      %3105 = vmatmul.mubr.bf16.gmra.mrb[0].mxu0 %v1445
      %v3106 = vpop.f32.mrb[0].mxu0
      %v3107 = vadd.f32 %v2914, %v3106
      %v3108 = vpop.f32.mrb[0].mxu0
      %v3109 = vpop.f32.mrb[0].mxu0
      %v3110 = vadd.f32 %v2917, %v3109
      %v3111 = vpop.f32.mrb[0].mxu0
      %3112 = vmatprep.mubr.bf16.mxu0 %v1678
      %3113 = vmatmul.mubr.bf16.gmra.mrb[0].mxu0 %v1446
      %v3114 = vpop.f32.mrb[0].mxu0
      %v3115 = vadd.f32 %v2922, %v3114
      %v3116 = vpop.f32.mrb[0].mxu0
      %v3117 = vpop.f32.mrb[0].mxu0
      %v3118 = vadd.f32 %v2925, %v3117
      %v3119 = vpop.f32.mrb[0].mxu0
      %3120 = vmatprep.mubr.bf16.mxu0 %v1690
      %3121 = vmatmul.mubr.bf16.gmra.mrb[0].mxu0 %v1447
      %v3122 = vpop.f32.mrb[0].mxu0
      %v3123 = vadd.f32 %v2930, %v3122
      %v3124 = vpop.f32.mrb[0].mxu0
      %v3125 = vpop.f32.mrb[0].mxu0
      %v3126 = vadd.f32 %v2933, %v3125
      %v3127 = vpop.f32.mrb[0].mxu0
      %3128 = vmatprep.mubr.bf16.mxu0 %v1698
      %3129 = vmatmul.mubr.bf16.gmra.mrb[0].mxu0 %v1448
      %v3130 = vpop.f32.mrb[0].mxu0
      %v3131 = vadd.f32 %v2938, %v3130
      %v3132 = vpop.f32.mrb[0].mxu0
      %v3133 = vpop.f32.mrb[0].mxu0
      %v3134 = vadd.f32 %v2941, %v3133
      %v3135 = vpop.f32.mrb[0].mxu0
      %3136 = vdwg.mxu0
      %3137 = vmatprep.subr.bf16.mxu0 0
      %3138 = vmatpush1.bf16.msra.mxu0 %v2285
      %3139 = vmatprep.subr.bf16.mxu0 0
      %3140 = vmatpush1.bf16.msra.mxu0 %v2286
      %3141 = vmatprep.subr.bf16.mxu0 0
      %3142 = vmatpush1.bf16.msra.mxu0 %v2287
      %3143 = vmatprep.subr.bf16.mxu0 0
      %3144 = vmatpush1.bf16.msra.mxu0 %v2288
      %3145 = vmatprep.subr.bf16.mxu0 0
      %3146 = vmatpush1.bf16.msra.mxu0 %v2289
      %3147 = vmatprep.subr.bf16.mxu0 0
      %3148 = vmatpush1.bf16.msra.mxu0 %v2290
      %3149 = vmatprep.subr.bf16.mxu0 0
      %3150 = vmatpush1.bf16.msra.mxu0 %v2291
      %3151 = vmatprep.subr.bf16.mxu0 0
      %3152 = vmatpush1.bf16.msra.mxu0 %v2292
      %3153 = vmatprep.subr.bf16.mxu0 0
      %3154 = vmatpush1.bf16.msra.mxu0 0
      %3155 = vmatprep.subr.bf16.mxu0 0
      %3156 = vmatpush1.bf16.msra.mxu0 0
      %3157 = vmatprep.subr.bf16.mxu0 0
      %3158 = vmatpush1.bf16.msra.mxu0 0
      %3159 = vmatprep.subr.bf16.mxu0 0
      %3160 = vmatpush1.bf16.msra.mxu0 0
      %3161 = vmatprep.subr.bf16.mxu0 0
      %3162 = vmatpush1.bf16.msra.mxu0 0
      %3163 = vmatprep.subr.bf16.mxu0 0
      %3164 = vmatpush1.bf16.msra.mxu0 0
      %3165 = vmatprep.subr.bf16.mxu0 0
      %3166 = vmatpush1.bf16.msra.mxu0 0
      %3167 = vmatprep.subr.bf16.mxu0 0
      %3168 = vmatpush1.bf16.msra.mxu0 0
      %3169 = vmatprep.mubr.bf16.mxu0 0
      %3170 = vmatmul.mubr.bf16.gmra.mrb[0].mxu0 %v1721
      %v3171 = vpop.f32.mrb[0].mxu0
      %v3172 = vadd.f32 %v2979, %v3171
      %v3173 = vpop.f32.mrb[0].mxu0
      %v3174 = vpop.f32.mrb[0].mxu0
      %v3175 = vadd.f32 %v2982, %v3174
      %v3176 = vpop.f32.mrb[0].mxu0
      %3177 = vmatprep.mubr.bf16.mxu0 0
      %3178 = vmatmul.mubr.bf16.gmra.mrb[0].mxu0 %v1723
      %v3179 = vpop.f32.mrb[0].mxu0
      %v3180 = vadd.f32 %v2987, %v3179
      %v3181 = vpop.f32.mrb[0].mxu0
      %v3182 = vpop.f32.mrb[0].mxu0
      %v3183 = vadd.f32 %v2990, %v3182
      %v3184 = vpop.f32.mrb[0].mxu0
      %3185 = vmatprep.mubr.bf16.mxu0 0
      %3186 = vmatmul.mubr.bf16.gmra.mrb[0].mxu0 %v1726
      %v3187 = vpop.f32.mrb[0].mxu0
      %v3188 = vadd.f32 %v2995, %v3187
      %v3189 = vpop.f32.mrb[0].mxu0
      %v3190 = vpop.f32.mrb[0].mxu0
      %v3191 = vadd.f32 %v2998, %v3190
      %v3192 = vpop.f32.mrb[0].mxu0
      %3193 = vmatprep.mubr.bf16.mxu0 0
      %3194 = vmatmul.mubr.bf16.gmra.mrb[0].mxu0 %v1728
      %v3195 = vpop.f32.mrb[0].mxu0
      %v3196 = vadd.f32 %v3003, %v3195
      %v3197 = vpop.f32.mrb[0].mxu0
      %v3198 = vpop.f32.mrb[0].mxu0
      %v3199 = vadd.f32 %v3006, %v3198
      %v3200 = vpop.f32.mrb[0].mxu0
      %3201 = vmatprep.mubr.bf16.mxu0 0
      %3202 = vmatmul.mubr.bf16.gmra.mrb[0].mxu0 %v1731
      %v3203 = vpop.f32.mrb[0].mxu0
      %v3204 = vadd.f32 %v3011, %v3203
      %v3205 = vpop.f32.mrb[0].mxu0
      %v3206 = vpop.f32.mrb[0].mxu0
      %v3207 = vadd.f32 %v3014, %v3206
      %v3208 = vpop.f32.mrb[0].mxu0
      %3209 = vmatprep.mubr.bf16.mxu0 0
      %3210 = vmatmul.mubr.bf16.gmra.mrb[0].mxu0 %v1733
      %v3211 = vpop.f32.mrb[0].mxu0
      %v3212 = vadd.f32 %v3019, %v3211
      %v3213 = vpop.f32.mrb[0].mxu0
      %v3214 = vpop.f32.mrb[0].mxu0
      %v3215 = vadd.f32 %v3022, %v3214
      %v3216 = vpop.f32.mrb[0].mxu0
      %3217 = vmatprep.mubr.bf16.mxu0 0
      %3218 = vmatmul.mubr.bf16.gmra.mrb[0].mxu0 %v1736
      %v3219 = vpop.f32.mrb[0].mxu0
      %v3220 = vadd.f32 %v3027, %v3219
      %v3221 = vpop.f32.mrb[0].mxu0
      %v3222 = vpop.f32.mrb[0].mxu0
      %v3223 = vadd.f32 %v3030, %v3222
      %v3224 = vpop.f32.mrb[0].mxu0
      %3225 = vmatprep.mubr.bf16.mxu0 0
      %3226 = vmatmul.mubr.bf16.gmra.mrb[0].mxu0 %v1738
      %v3227 = vpop.f32.mrb[0].mxu0
      %v3228 = vadd.f32 %v3035, %v3227
      %v3229 = vpop.f32.mrb[0].mxu0
      %v3230 = vpop.f32.mrb[0].mxu0
      %v3231 = vadd.f32 %v3038, %v3230
      %v3232 = vpop.f32.mrb[0].mxu0
      %3233 = vmatprep.mubr.bf16.mxu0 0
      %3234 = vmatmul.mubr.bf16.gmra.mrb[0].mxu0 %v1741
      %v3235 = vpop.f32.mrb[0].mxu0
      %v3236 = vadd.f32 %v3043, %v3235
      %v3237 = vpop.f32.mrb[0].mxu0
      %v3238 = vpop.f32.mrb[0].mxu0
      %v3239 = vadd.f32 %v3046, %v3238
      %v3240 = vpop.f32.mrb[0].mxu0
      %3241 = vmatprep.mubr.bf16.mxu0 0
      %3242 = vmatmul.mubr.bf16.gmra.mrb[0].mxu0 %v1743
      %v3243 = vpop.f32.mrb[0].mxu0
      %v3244 = vadd.f32 %v3051, %v3243
      %v3245 = vpop.f32.mrb[0].mxu0
      %v3246 = vpop.f32.mrb[0].mxu0
      %v3247 = vadd.f32 %v3054, %v3246
      %v3248 = vpop.f32.mrb[0].mxu0
      %3249 = vmatprep.mubr.bf16.mxu0 0
      %3250 = vmatmul.mubr.bf16.gmra.mrb[0].mxu0 %v1746
      %v3251 = vpop.f32.mrb[0].mxu0
      %v3252 = vadd.f32 %v3059, %v3251
      %v3253 = vpop.f32.mrb[0].mxu0
      %v3254 = vpop.f32.mrb[0].mxu0
      %v3255 = vadd.f32 %v3062, %v3254
      %v3256 = vpop.f32.mrb[0].mxu0
      %3257 = vmatprep.mubr.bf16.mxu0 0
      %3258 = vmatmul.mubr.bf16.gmra.mrb[0].mxu0 %v1748
      %v3259 = vpop.f32.mrb[0].mxu0
      %v3260 = vadd.f32 %v3067, %v3259
      %v3261 = vpop.f32.mrb[0].mxu0
      %v3262 = vpop.f32.mrb[0].mxu0
      %v3263 = vadd.f32 %v3070, %v3262
      %v3264 = vpop.f32.mrb[0].mxu0
      %3265 = vmatprep.mubr.bf16.mxu0 0
      %3266 = vmatmul.mubr.bf16.gmra.mrb[0].mxu0 %v1751
      %v3267 = vpop.f32.mrb[0].mxu0
      %v3268 = vadd.f32 %v3075, %v3267
      %v3269 = vpop.f32.mrb[0].mxu0
      %v3270 = vpop.f32.mrb[0].mxu0
      %v3271 = vadd.f32 %v3078, %v3270
      %v3272 = vpop.f32.mrb[0].mxu0
      %3273 = vmatprep.mubr.bf16.mxu0 0
      %3274 = vmatmul.mubr.bf16.gmra.mrb[0].mxu0 %v1753
      %v3275 = vpop.f32.mrb[0].mxu0
      %v3276 = vadd.f32 %v3083, %v3275
      %v3277 = vpop.f32.mrb[0].mxu0
      %v3278 = vpop.f32.mrb[0].mxu0
      %v3279 = vadd.f32 %v3086, %v3278
      %v3280 = vpop.f32.mrb[0].mxu0
      %3281 = vmatprep.mubr.bf16.mxu0 0
      %3282 = vmatmul.mubr.bf16.gmra.mrb[0].mxu0 %v1756
      %v3283 = vpop.f32.mrb[0].mxu0
      %v3284 = vadd.f32 %v3091, %v3283
      %v3285 = vpop.f32.mrb[0].mxu0
      %v3286 = vpop.f32.mrb[0].mxu0
      %v3287 = vadd.f32 %v3094, %v3286
      %v3288 = vpop.f32.mrb[0].mxu0
      %3289 = vmatprep.mubr.bf16.mxu0 0
      %3290 = vmatmul.mubr.bf16.gmra.mrb[0].mxu0 %v1758
      %v3291 = vpop.f32.mrb[0].mxu0
      %v3292 = vadd.f32 %v3099, %v3291
      %v3293 = vpop.f32.mrb[0].mxu0
      %v3294 = vpop.f32.mrb[0].mxu0
      %v3295 = vadd.f32 %v3102, %v3294
      %v3296 = vpop.f32.mrb[0].mxu0
      %3297 = vmatprep.mubr.bf16.mxu0 0
      %3298 = vmatmul.mubr.bf16.gmra.mrb[0].mxu0 %v1761
      %v3299 = vpop.f32.mrb[0].mxu0
      %v3300 = vadd.f32 %v3107, %v3299
      %v3301 = vpop.f32.mrb[0].mxu0
      %v3302 = vpop.f32.mrb[0].mxu0
      %v3303 = vadd.f32 %v3110, %v3302
      %v3304 = vpop.f32.mrb[0].mxu0
      %3305 = vmatprep.mubr.bf16.mxu0 0
      %3306 = vmatmul.mubr.bf16.gmra.mrb[0].mxu0 %v1763
      %v3307 = vpop.f32.mrb[0].mxu0
      %v3308 = vadd.f32 %v3115, %v3307
      %v3309 = vpop.f32.mrb[0].mxu0
      %v3310 = vpop.f32.mrb[0].mxu0
      %v3311 = vadd.f32 %v3118, %v3310
      %v3312 = vpop.f32.mrb[0].mxu0
      %3313 = vmatprep.mubr.bf16.mxu0 0
      %3314 = vmatmul.mubr.bf16.gmra.mrb[0].mxu0 %v1766
      %v3315 = vpop.f32.mrb[0].mxu0
      %v3316 = vadd.f32 %v3123, %v3315
      %v3317 = vpop.f32.mrb[0].mxu0
      %v3318 = vpop.f32.mrb[0].mxu0
      %v3319 = vadd.f32 %v3126, %v3318
      %v3320 = vpop.f32.mrb[0].mxu0
      %3321 = vmatprep.mubr.bf16.mxu0 0
      %3322 = vmatmul.mubr.bf16.gmra.mrb[0].mxu0 %v1768
      %v3323 = vpop.f32.mrb[0].mxu0
      %v3324 = vadd.f32 %v3131, %v3323
      %v3325 = vpop.f32.mrb[0].mxu0
      %v3326 = vpop.f32.mrb[0].mxu0
      %v3327 = vadd.f32 %v3134, %v3326
      %v3328 = vpop.f32.mrb[0].mxu0
      %3329 = vdwg.mxu0
      %v3330 = vld [vmem:[%s2] sm:$0x1]
      %v3332 = vlaneseq
      %v3333 = vshrl.u32 %v3332, 7
      %v3334 = vsub.s32 0, %v3333
      %v3335 = vrot.slane %v3330, %v3334
      %v3337 = vmul.f32 %v3172, %v3335
      %v3338 = vmul.f32 %v3175, %v3335
      %v3339 = vmul.f32 %v3180, %v3335
      %v3340 = vmul.f32 %v3183, %v3335
      %v3341 = vmul.f32 %v3188, %v3335
      %v3342 = vmul.f32 %v3191, %v3335
      %v3343 = vmul.f32 %v3196, %v3335
      %v3344 = vmul.f32 %v3199, %v3335
      %v3345 = vmul.f32 %v3204, %v3335
      %v3346 = vmul.f32 %v3207, %v3335
      %v3347 = vmul.f32 %v3212, %v3335
      %v3348 = vmul.f32 %v3215, %v3335
      %v3349 = vmul.f32 %v3220, %v3335
      %v3350 = vmul.f32 %v3223, %v3335
      %v3351 = vmul.f32 %v3228, %v3335
      %v3352 = vmul.f32 %v3231, %v3335
      %v3353 = vmul.f32 %v3236, %v3335
      %v3354 = vmul.f32 %v3239, %v3335
      %v3355 = vmul.f32 %v3244, %v3335
      %v3356 = vmul.f32 %v3247, %v3335
      %v3357 = vmul.f32 %v3252, %v3335
      %v3358 = vmul.f32 %v3255, %v3335
      %v3359 = vmul.f32 %v3260, %v3335
      %v3360 = vmul.f32 %v3263, %v3335
      %v3361 = vmul.f32 %v3268, %v3335
      %v3362 = vmul.f32 %v3271, %v3335
      %v3363 = vmul.f32 %v3276, %v3335
      %v3364 = vmul.f32 %v3279, %v3335
      %v3365 = vmul.f32 %v3284, %v3335
      %v3366 = vmul.f32 %v3287, %v3335
      %v3367 = vmul.f32 %v3292, %v3335
      %v3368 = vmul.f32 %v3295, %v3335
      %v3369 = vmul.f32 %v3300, %v3335
      %v3370 = vmul.f32 %v3303, %v3335
      %v3371 = vmul.f32 %v3308, %v3335
      %v3372 = vmul.f32 %v3311, %v3335
      %v3373 = vmul.f32 %v3316, %v3335
      %v3374 = vmul.f32 %v3319, %v3335
      %v3375 = vmul.f32 %v3324, %v3335
      %v3376 = vmul.f32 %v3327, %v3335
      %v3377 = vld [vmem:[%s3] sm:$0x1]
      %v3379 = vlaneseq
      %v3380 = vshrl.u32 %v3379, 7
      %v3381 = vsub.s32 0, %v3380
      %v3382 = vrot.slane %v3377, %v3381
      %v3384 = vadd.f32 %v3337, %v3382
      %v3385 = vadd.f32 %v3338, %v3382
      %v3386 = vadd.f32 %v3339, %v3382
      %v3387 = vadd.f32 %v3340, %v3382
      %v3388 = vadd.f32 %v3341, %v3382
      %v3389 = vadd.f32 %v3342, %v3382
      %v3390 = vadd.f32 %v3343, %v3382
      %v3391 = vadd.f32 %v3344, %v3382
      %v3392 = vadd.f32 %v3345, %v3382
      %v3393 = vadd.f32 %v3346, %v3382
      %v3394 = vadd.f32 %v3347, %v3382
      %v3395 = vadd.f32 %v3348, %v3382
      %v3396 = vadd.f32 %v3349, %v3382
      %v3397 = vadd.f32 %v3350, %v3382
      %v3398 = vadd.f32 %v3351, %v3382
      %v3399 = vadd.f32 %v3352, %v3382
      %v3400 = vadd.f32 %v3353, %v3382
      %v3401 = vadd.f32 %v3354, %v3382
      %v3402 = vadd.f32 %v3355, %v3382
      %v3403 = vadd.f32 %v3356, %v3382
      %v3404 = vadd.f32 %v3357, %v3382
      %v3405 = vadd.f32 %v3358, %v3382
      %v3406 = vadd.f32 %v3359, %v3382
      %v3407 = vadd.f32 %v3360, %v3382
      %v3408 = vadd.f32 %v3361, %v3382
      %v3409 = vadd.f32 %v3362, %v3382
      %v3410 = vadd.f32 %v3363, %v3382
      %v3411 = vadd.f32 %v3364, %v3382
      %v3412 = vadd.f32 %v3365, %v3382
      %v3413 = vadd.f32 %v3366, %v3382
      %v3414 = vadd.f32 %v3367, %v3382
      %v3415 = vadd.f32 %v3368, %v3382
      %v3416 = vadd.f32 %v3369, %v3382
      %v3417 = vadd.f32 %v3370, %v3382
      %v3418 = vadd.f32 %v3371, %v3382
      %v3419 = vadd.f32 %v3372, %v3382
      %v3420 = vadd.f32 %v3373, %v3382
      %v3421 = vadd.f32 %v3374, %v3382
      %v3422 = vadd.f32 %v3375, %v3382
      %v3423 = vadd.f32 %v3376, %v3382
      %v3424 = vmax.f32 %v3384, 0.0
      %v3425 = vmax.f32 %v3385, 0.0
      %v3426 = vmax.f32 %v3386, 0.0
      %v3427 = vmax.f32 %v3387, 0.0
      %v3428 = vmax.f32 %v3388, 0.0
      %v3429 = vmax.f32 %v3389, 0.0
      %v3430 = vmax.f32 %v3390, 0.0
      %v3431 = vmax.f32 %v3391, 0.0
      %v3432 = vmax.f32 %v3392, 0.0
      %v3433 = vmax.f32 %v3393, 0.0
      %v3434 = vmax.f32 %v3394, 0.0
      %v3435 = vmax.f32 %v3395, 0.0
      %v3436 = vmax.f32 %v3396, 0.0
      %v3437 = vmax.f32 %v3397, 0.0
      %v3438 = vmax.f32 %v3398, 0.0
      %v3439 = vmax.f32 %v3399, 0.0
      %v3440 = vmax.f32 %v3400, 0.0
      %v3441 = vmax.f32 %v3401, 0.0
      %v3442 = vmax.f32 %v3402, 0.0
      %v3443 = vmax.f32 %v3403, 0.0
      %v3444 = vmax.f32 %v3404, 0.0
      %v3445 = vmax.f32 %v3405, 0.0
      %v3446 = vmax.f32 %v3406, 0.0
      %v3447 = vmax.f32 %v3407, 0.0
      %v3448 = vmax.f32 %v3408, 0.0
      %v3449 = vmax.f32 %v3409, 0.0
      %v3450 = vmax.f32 %v3410, 0.0
      %v3451 = vmax.f32 %v3411, 0.0
      %v3452 = vmax.f32 %v3412, 0.0
      %v3453 = vmax.f32 %v3413, 0.0
      %v3454 = vmax.f32 %v3414, 0.0
      %v3455 = vmax.f32 %v3415, 0.0
      %v3456 = vmax.f32 %v3416, 0.0
      %v3457 = vmax.f32 %v3417, 0.0
      %v3458 = vmax.f32 %v3418, 0.0
      %v3459 = vmax.f32 %v3419, 0.0
      %v3460 = vmax.f32 %v3420, 0.0
      %v3461 = vmax.f32 %v3421, 0.0
      %v3462 = vmax.f32 %v3422, 0.0
      %v3463 = vmax.f32 %v3423, 0.0
      %s3464 = ssub.s32 %s305, 1
      %v3465 = vstv %s3464
      %v3466 = vadd.s32 %v3465, 1
      %v3467 = vadd.s32 %v3465, 2
      %v3468 = vadd.s32 %v3465, 3
      %v3469 = vadd.s32 %v3465, 4
      %v3470 = vadd.s32 %v3465, 5
      %v3471 = vadd.s32 %v3465, 6
      %v3472 = vadd.s32 %v3465, 7
      %v3473 = vadd.s32 %v3465, 8
      %v3474 = vadd.s32 %v3465, 9
      %v3475 = vlaneseq
      %v3476 = vshrl.u32 %v3475, 7
      %v3477 = vadd.s32 %v3476, 8
      %v3478 = vadd.s32 %v3476, 16
      %v3479 = vadd.s32 %v3476, 24
      %v3480 = vsub.s32 %v3476, 1
      %v3481 = vsub.s32 %v3477, 1
      %v3482 = vsub.s32 %v3478, 1
      %v3483 = vsub.s32 %v3479, 1
      %vm3484 = vcmp.ge.s32.totalorder %v3465, 0
      %vm3485 = vcmp.ge.s32.totalorder %v3466, 0
      %vm3486 = vcmp.ge.s32.totalorder %v3467, 0
      %vm3487 = vcmp.ge.s32.totalorder %v3468, 0
      %vm3488 = vcmp.ge.s32.totalorder %v3469, 0
      %vm3489 = vcmp.ge.s32.totalorder %v3470, 0
      %vm3490 = vcmp.ge.s32.totalorder %v3471, 0
      %vm3491 = vcmp.ge.s32.totalorder %v3472, 0
      %vm3492 = vcmp.ge.s32.totalorder %v3473, 0
      %vm3493 = vcmp.ge.s32.totalorder %v3474, 0
      %vm3494 = vcmp.lt.s32.totalorder %v3465, 16
      %vm3495 = vcmp.lt.s32.totalorder %v3466, 16
      %vm3496 = vcmp.lt.s32.totalorder %v3467, 16
      %vm3497 = vcmp.lt.s32.totalorder %v3468, 16
      %vm3498 = vcmp.lt.s32.totalorder %v3469, 16
      %vm3499 = vcmp.lt.s32.totalorder %v3470, 16
      %vm3500 = vcmp.lt.s32.totalorder %v3471, 16
      %vm3501 = vcmp.lt.s32.totalorder %v3472, 16
      %vm3502 = vcmp.lt.s32.totalorder %v3473, 16
      %vm3503 = vcmp.lt.s32.totalorder %v3474, 16
      %vm3504 = vmand %vm3484, %vm3494
      %vm3505 = vmand %vm3485, %vm3495
      %vm3506 = vmand %vm3486, %vm3496
      %vm3507 = vmand %vm3487, %vm3497
      %vm3508 = vmand %vm3488, %vm3498
      %vm3509 = vmand %vm3489, %vm3499
      %vm3510 = vmand %vm3490, %vm3500
      %vm3511 = vmand %vm3491, %vm3501
      %vm3512 = vmand %vm3492, %vm3502
      %vm3513 = vmand %vm3493, %vm3503
      %vm3514 = vcmp.ge.s32.totalorder %v3480, 0
      %vm3515 = vcmp.ge.s32.totalorder %v3481, 0
      %vm3516 = vcmp.ge.s32.totalorder %v3482, 0
      %vm3517 = vcmp.ge.s32.totalorder %v3483, 0
      %vm3518 = vmand %vm3504, %vm3514
      %vm3519 = vmand %vm3504, %vm3515
      %vm3520 = vmand %vm3504, %vm3516
      %vm3521 = vmand %vm3504, %vm3517
      %vm3522 = vmand %vm3505, %vm3514
      %vm3523 = vmand %vm3505, %vm3515
      %vm3524 = vmand %vm3505, %vm3516
      %vm3525 = vmand %vm3505, %vm3517
      %vm3526 = vmand %vm3506, %vm3514
      %vm3527 = vmand %vm3506, %vm3515
      %vm3528 = vmand %vm3506, %vm3516
      %vm3529 = vmand %vm3506, %vm3517
      %vm3530 = vmand %vm3507, %vm3514
      %vm3531 = vmand %vm3507, %vm3515
      %vm3532 = vmand %vm3507, %vm3516
      %vm3533 = vmand %vm3507, %vm3517
      %vm3534 = vmand %vm3508, %vm3514
      %vm3535 = vmand %vm3508, %vm3515
      %vm3536 = vmand %vm3508, %vm3516
      %vm3537 = vmand %vm3508, %vm3517
      %vm3538 = vmand %vm3509, %vm3514
      %vm3539 = vmand %vm3509, %vm3515
      %vm3540 = vmand %vm3509, %vm3516
      %vm3541 = vmand %vm3509, %vm3517
      %vm3542 = vmand %vm3510, %vm3514
      %vm3543 = vmand %vm3510, %vm3515
      %vm3544 = vmand %vm3510, %vm3516
      %vm3545 = vmand %vm3510, %vm3517
      %vm3546 = vmand %vm3511, %vm3514
      %vm3547 = vmand %vm3511, %vm3515
      %vm3548 = vmand %vm3511, %vm3516
      %vm3549 = vmand %vm3511, %vm3517
      %vm3550 = vmand %vm3512, %vm3514
      %vm3551 = vmand %vm3512, %vm3515
      %vm3552 = vmand %vm3512, %vm3516
      %vm3553 = vmand %vm3512, %vm3517
      %vm3554 = vmand %vm3513, %vm3514
      %vm3555 = vmand %vm3513, %vm3515
      %vm3556 = vmand %vm3513, %vm3516
      %vm3557 = vmand %vm3513, %vm3517
      %vm3558 = vcmp.lt.s32.totalorder %v3480, 16
      %vm3559 = vcmp.lt.s32.totalorder %v3481, 16
      %vm3560 = vcmp.lt.s32.totalorder %v3482, 16
      %vm3561 = vcmp.lt.s32.totalorder %v3483, 16
      %vm3562 = vmand %vm3518, %vm3558
      %vm3563 = vmand %vm3519, %vm3559
      %vm3564 = vmand %vm3520, %vm3560
      %vm3565 = vmand %vm3521, %vm3561
      %vm3566 = vmand %vm3522, %vm3558
      %vm3567 = vmand %vm3523, %vm3559
      %vm3568 = vmand %vm3524, %vm3560
      %vm3569 = vmand %vm3525, %vm3561
      %vm3570 = vmand %vm3526, %vm3558
      %vm3571 = vmand %vm3527, %vm3559
      %vm3572 = vmand %vm3528, %vm3560
      %vm3573 = vmand %vm3529, %vm3561
      %vm3574 = vmand %vm3530, %vm3558
      %vm3575 = vmand %vm3531, %vm3559
      %vm3576 = vmand %vm3532, %vm3560
      %vm3577 = vmand %vm3533, %vm3561
      %vm3578 = vmand %vm3534, %vm3558
      %vm3579 = vmand %vm3535, %vm3559
      %vm3580 = vmand %vm3536, %vm3560
      %vm3581 = vmand %vm3537, %vm3561
      %vm3582 = vmand %vm3538, %vm3558
      %vm3583 = vmand %vm3539, %vm3559
      %vm3584 = vmand %vm3540, %vm3560
      %vm3585 = vmand %vm3541, %vm3561
      %vm3586 = vmand %vm3542, %vm3558
      %vm3587 = vmand %vm3543, %vm3559
      %vm3588 = vmand %vm3544, %vm3560
      %vm3589 = vmand %vm3545, %vm3561
      %vm3590 = vmand %vm3546, %vm3558
      %vm3591 = vmand %vm3547, %vm3559
      %vm3592 = vmand %vm3548, %vm3560
      %vm3593 = vmand %vm3549, %vm3561
      %vm3594 = vmand %vm3550, %vm3558
      %vm3595 = vmand %vm3551, %vm3559
      %vm3596 = vmand %vm3552, %vm3560
      %vm3597 = vmand %vm3553, %vm3561
      %vm3598 = vmand %vm3554, %vm3558
      %vm3599 = vmand %vm3555, %vm3559
      %vm3600 = vmand %vm3556, %vm3560
      %vm3601 = vmand %vm3557, %vm3561
      %v3602 = vsel %vm3562, %v3424, 0.0
      %v3603 = vsel %vm3563, %v3425, 0.0
      %v3604 = vsel %vm3564, %v3426, 0.0
      %v3605 = vsel %vm3565, %v3427, 0.0
      %v3606 = vsel %vm3566, %v3428, 0.0
      %v3607 = vsel %vm3567, %v3429, 0.0
      %v3608 = vsel %vm3568, %v3430, 0.0
      %v3609 = vsel %vm3569, %v3431, 0.0
      %v3610 = vsel %vm3570, %v3432, 0.0
      %v3611 = vsel %vm3571, %v3433, 0.0
      %v3612 = vsel %vm3572, %v3434, 0.0
      %v3613 = vsel %vm3573, %v3435, 0.0
      %v3614 = vsel %vm3574, %v3436, 0.0
      %v3615 = vsel %vm3575, %v3437, 0.0
      %v3616 = vsel %vm3576, %v3438, 0.0
      %v3617 = vsel %vm3577, %v3439, 0.0
      %v3618 = vsel %vm3578, %v3440, 0.0
      %v3619 = vsel %vm3579, %v3441, 0.0
      %v3620 = vsel %vm3580, %v3442, 0.0
      %v3621 = vsel %vm3581, %v3443, 0.0
      %v3622 = vsel %vm3582, %v3444, 0.0
      %v3623 = vsel %vm3583, %v3445, 0.0
      %v3624 = vsel %vm3584, %v3446, 0.0
      %v3625 = vsel %vm3585, %v3447, 0.0
      %v3626 = vsel %vm3586, %v3448, 0.0
      %v3627 = vsel %vm3587, %v3449, 0.0
      %v3628 = vsel %vm3588, %v3450, 0.0
      %v3629 = vsel %vm3589, %v3451, 0.0
      %v3630 = vsel %vm3590, %v3452, 0.0
      %v3631 = vsel %vm3591, %v3453, 0.0
      %v3632 = vsel %vm3592, %v3454, 0.0
      %v3633 = vsel %vm3593, %v3455, 0.0
      %v3634 = vsel %vm3594, %v3456, 0.0
      %v3635 = vsel %vm3595, %v3457, 0.0
      %v3636 = vsel %vm3596, %v3458, 0.0
      %v3637 = vsel %vm3597, %v3459, 0.0
      %v3638 = vsel %vm3598, %v3460, 0.0
      %v3639 = vsel %vm3599, %v3461, 0.0
      %v3640 = vsel %vm3600, %v3462, 0.0
      %v3641 = vsel %vm3601, %v3463, 0.0
      %v3642 = vpack.c.bf16 %v3603, %v3602
      %v3643 = vpack.c.bf16 %v3605, %v3604
      %v3644 = vpack.c.bf16 %v3607, %v3606
      %v3645 = vpack.c.bf16 %v3609, %v3608
      %v3646 = vpack.c.bf16 %v3611, %v3610
      %v3647 = vpack.c.bf16 %v3613, %v3612
      %v3648 = vpack.c.bf16 %v3615, %v3614
      %v3649 = vpack.c.bf16 %v3617, %v3616
      %v3650 = vpack.c.bf16 %v3619, %v3618
      %v3651 = vpack.c.bf16 %v3621, %v3620
      %v3652 = vpack.c.bf16 %v3623, %v3622
      %v3653 = vpack.c.bf16 %v3625, %v3624
      %v3654 = vpack.c.bf16 %v3627, %v3626
      %v3655 = vpack.c.bf16 %v3629, %v3628
      %v3656 = vpack.c.bf16 %v3631, %v3630
      %v3657 = vpack.c.bf16 %v3633, %v3632
      %v3658 = vpack.c.bf16 %v3635, %v3634
      %v3659 = vpack.c.bf16 %v3637, %v3636
      %v3660 = vpack.c.bf16 %v3639, %v3638
      %v3661 = vpack.c.bf16 %v3641, %v3640
      %3662 = vst [vmem:[#allocation2] sm:$0xff] %v3642
      %3663 = vst [vmem:[#allocation2 + $0x8] sm:$0xff] %v3643
      %3664 = vst [vmem:[#allocation2 + $0x10] sm:$0xff] %v3644
      %3665 = vst [vmem:[#allocation2 + $0x18] sm:$0xff] %v3645
      %3666 = vst [vmem:[#allocation2 + $0x20] sm:$0xff] %v3646
      %3667 = vst [vmem:[#allocation2 + $0x28] sm:$0xff] %v3647
      %3668 = vst [vmem:[#allocation2 + $0x30] sm:$0xff] %v3648
      %3669 = vst [vmem:[#allocation2 + $0x38] sm:$0xff] %v3649
      %3670 = vst [vmem:[#allocation2 + $0x40] sm:$0xff] %v3650
      %3671 = vst [vmem:[#allocation2 + $0x48] sm:$0xff] %v3651
      %3672 = vst [vmem:[#allocation2 + $0x50] sm:$0xff] %v3652
      %3673 = vst [vmem:[#allocation2 + $0x58] sm:$0xff] %v3653
      %3674 = vst [vmem:[#allocation2 + $0x60] sm:$0xff] %v3654
      %3675 = vst [vmem:[#allocation2 + $0x68] sm:$0xff] %v3655
      %3676 = vst [vmem:[#allocation2 + $0x70] sm:$0xff] %v3656
      %3677 = vst [vmem:[#allocation2 + $0x78] sm:$0xff] %v3657
      %3678 = vst [vmem:[#allocation2 + $0x80] sm:$0xff] %v3658
      %3679 = vst [vmem:[#allocation2 + $0x88] sm:$0xff] %v3659
      %3680 = vst [vmem:[#allocation2 + $0x90] sm:$0xff] %v3660
      %3681 = vst [vmem:[#allocation2 + $0x98] sm:$0xff] %v3661
      %v3682 = vld [vmem:[#allocation2] sm:$0xff]
      %v3683 = vld [vmem:[#allocation2 + $0x10] sm:$0xff]
      %v3684 = vld [vmem:[#allocation2 + $0x20] sm:$0xff]
      %v3685 = vld [vmem:[#allocation2 + $0x30] sm:$0xff]
      %v3686 = vld [vmem:[#allocation2 + $0x40] sm:$0xff]
      %v3687 = vld [vmem:[#allocation2 + $0x50] sm:$0xff]
      %v3688 = vld [vmem:[#allocation2 + $0x60] sm:$0xff]
      %v3689 = vld [vmem:[#allocation2 + $0x70] sm:$0xff]
      %v3690 = vld [vmem:[#allocation2 + $0x8] sm:$0x1]
      %v3691 = vld [vmem:[#allocation2 + $0x18] sm:$0x1]
      %v3692 = vld [vmem:[#allocation2 + $0x28] sm:$0x1]
      %v3693 = vld [vmem:[#allocation2 + $0x38] sm:$0x1]
      %v3694 = vld [vmem:[#allocation2 + $0x48] sm:$0x1]
      %v3695 = vld [vmem:[#allocation2 + $0x58] sm:$0x1]
      %v3696 = vld [vmem:[#allocation2 + $0x68] sm:$0x1]
      %v3697 = vld [vmem:[#allocation2 + $0x78] sm:$0x1]
      %v3698 = vld [vmem:[#allocation2] sm:$0xfe]
      %v3699 = vld [vmem:[#allocation2 + $0x10] sm:$0xfe]
      %v3700 = vld [vmem:[#allocation2 + $0x20] sm:$0xfe]
      %v3701 = vld [vmem:[#allocation2 + $0x30] sm:$0xfe]
      %v3702 = vld [vmem:[#allocation2 + $0x40] sm:$0xfe]
      %v3703 = vld [vmem:[#allocation2 + $0x50] sm:$0xfe]
      %v3704 = vld [vmem:[#allocation2 + $0x60] sm:$0xfe]
      %v3705 = vld [vmem:[#allocation2 + $0x70] sm:$0xfe]
      %s3706 = scalar_lea.vmem [#allocation2], 16
      %v3707 = vld [vmem:[%s3706] sm:$0xff]
      %v3708 = vld [vmem:[%s3706 + $0x10] sm:$0xff]
      %v3709 = vld [vmem:[%s3706 + $0x20] sm:$0xff]
      %v3710 = vld [vmem:[%s3706 + $0x30] sm:$0xff]
      %v3711 = vld [vmem:[%s3706 + $0x40] sm:$0xff]
      %v3712 = vld [vmem:[%s3706 + $0x50] sm:$0xff]
      %v3713 = vld [vmem:[%s3706 + $0x60] sm:$0xff]
      %v3714 = vld [vmem:[%s3706 + $0x70] sm:$0xff]
      %v3715 = vld [vmem:[%s3706 + $0x8] sm:$0x1]
      %v3716 = vld [vmem:[%s3706 + $0x18] sm:$0x1]
      %v3717 = vld [vmem:[%s3706 + $0x28] sm:$0x1]
      %v3718 = vld [vmem:[%s3706 + $0x38] sm:$0x1]
      %v3719 = vld [vmem:[%s3706 + $0x48] sm:$0x1]
      %v3720 = vld [vmem:[%s3706 + $0x58] sm:$0x1]
      %v3721 = vld [vmem:[%s3706 + $0x68] sm:$0x1]
      %v3722 = vld [vmem:[%s3706 + $0x78] sm:$0x1]
      %v3723 = vld [vmem:[%s3706] sm:$0xfe]
      %v3724 = vld [vmem:[%s3706 + $0x10] sm:$0xfe]
      %v3725 = vld [vmem:[%s3706 + $0x20] sm:$0xfe]
      %v3726 = vld [vmem:[%s3706 + $0x30] sm:$0xfe]
      %v3727 = vld [vmem:[%s3706 + $0x40] sm:$0xfe]
      %v3728 = vld [vmem:[%s3706 + $0x50] sm:$0xfe]
      %v3729 = vld [vmem:[%s3706 + $0x60] sm:$0xfe]
      %v3730 = vld [vmem:[%s3706 + $0x70] sm:$0xfe]
      %s3731 = scalar_lea.vmem [#allocation2], 32
      %v3732 = vld [vmem:[%s3731] sm:$0xff]
      %v3733 = vld [vmem:[%s3731 + $0x10] sm:$0xff]
      %v3734 = vld [vmem:[%s3731 + $0x20] sm:$0xff]
      %v3735 = vld [vmem:[%s3731 + $0x30] sm:$0xff]
      %v3736 = vld [vmem:[%s3731 + $0x40] sm:$0xff]
      %v3737 = vld [vmem:[%s3731 + $0x50] sm:$0xff]
      %v3738 = vld [vmem:[%s3731 + $0x60] sm:$0xff]
      %v3739 = vld [vmem:[%s3731 + $0x70] sm:$0xff]
      %v3740 = vld [vmem:[%s3731 + $0x8] sm:$0x1]
      %v3741 = vld [vmem:[%s3731 + $0x18] sm:$0x1]
      %v3742 = vld [vmem:[%s3731 + $0x28] sm:$0x1]
      %v3743 = vld [vmem:[%s3731 + $0x38] sm:$0x1]
      %v3744 = vld [vmem:[%s3731 + $0x48] sm:$0x1]
      %v3745 = vld [vmem:[%s3731 + $0x58] sm:$0x1]
      %v3746 = vld [vmem:[%s3731 + $0x68] sm:$0x1]
      %v3747 = vld [vmem:[%s3731 + $0x78] sm:$0x1]
      %v3748 = vld [vmem:[%s3731] sm:$0xfe]
      %v3749 = vld [vmem:[%s3731 + $0x10] sm:$0xfe]
      %v3750 = vld [vmem:[%s3731 + $0x20] sm:$0xfe]
      %v3751 = vld [vmem:[%s3731 + $0x30] sm:$0xfe]
      %v3752 = vld [vmem:[%s3731 + $0x40] sm:$0xfe]
      %v3753 = vld [vmem:[%s3731 + $0x50] sm:$0xfe]
      %v3754 = vld [vmem:[%s3731 + $0x60] sm:$0xfe]
      %v3755 = vld [vmem:[%s3731 + $0x70] sm:$0xfe]
      %v3757 = vshrl.u32 %v3682, 16
      %v3759 = vshll.u32 %v3682, 16
      %v3761 = vrot.slane %v3759, 1
      %v3762 = vor.u32 %v3757, %v3761
      %v3764 = vshll.u32 %v3690, 16
      %v3766 = vrot.slane %v3764, 1
      %v3767 = vsel %vm617, %v3762, %v3766
      %v3769 = vshrl.u32 %v3683, 16
      %v3771 = vshll.u32 %v3683, 16
      %v3773 = vrot.slane %v3771, 1
      %v3774 = vor.u32 %v3769, %v3773
      %v3776 = vshll.u32 %v3691, 16
      %v3778 = vrot.slane %v3776, 1
      %v3779 = vsel %vm617, %v3774, %v3778
      %v3781 = vshrl.u32 %v3684, 16
      %v3783 = vshll.u32 %v3684, 16
      %v3785 = vrot.slane %v3783, 1
      %v3786 = vor.u32 %v3781, %v3785
      %v3788 = vshll.u32 %v3692, 16
      %v3790 = vrot.slane %v3788, 1
      %v3791 = vsel %vm617, %v3786, %v3790
      %v3793 = vshrl.u32 %v3685, 16
      %v3795 = vshll.u32 %v3685, 16
      %v3797 = vrot.slane %v3795, 1
      %v3798 = vor.u32 %v3793, %v3797
      %v3800 = vshll.u32 %v3693, 16
      %v3802 = vrot.slane %v3800, 1
      %v3803 = vsel %vm617, %v3798, %v3802
      %v3805 = vshrl.u32 %v3686, 16
      %v3807 = vshll.u32 %v3686, 16
      %v3809 = vrot.slane %v3807, 1
      %v3810 = vor.u32 %v3805, %v3809
      %v3812 = vshll.u32 %v3694, 16
      %v3814 = vrot.slane %v3812, 1
      %v3815 = vsel %vm617, %v3810, %v3814
      %v3817 = vshrl.u32 %v3687, 16
      %v3819 = vshll.u32 %v3687, 16
      %v3821 = vrot.slane %v3819, 1
      %v3822 = vor.u32 %v3817, %v3821
      %v3824 = vshll.u32 %v3695, 16
      %v3826 = vrot.slane %v3824, 1
      %v3827 = vsel %vm617, %v3822, %v3826
      %v3829 = vshrl.u32 %v3688, 16
      %v3831 = vshll.u32 %v3688, 16
      %v3833 = vrot.slane %v3831, 1
      %v3834 = vor.u32 %v3829, %v3833
      %v3836 = vshll.u32 %v3696, 16
      %v3838 = vrot.slane %v3836, 1
      %v3839 = vsel %vm617, %v3834, %v3838
      %v3841 = vshrl.u32 %v3689, 16
      %v3843 = vshll.u32 %v3689, 16
      %v3845 = vrot.slane %v3843, 1
      %v3846 = vor.u32 %v3841, %v3845
      %v3848 = vshll.u32 %v3697, 16
      %v3850 = vrot.slane %v3848, 1
      %v3851 = vsel %vm617, %v3846, %v3850
      %v3876 = vrot.slane %v3698, 1
      %v3877 = vrot.slane %v3690, 1
      %v3878 = vsel %vm838, %v3876, %v3877
      %v3879 = vrot.slane %v3699, 1
      %v3880 = vrot.slane %v3691, 1
      %v3881 = vsel %vm838, %v3879, %v3880
      %v3882 = vrot.slane %v3700, 1
      %v3883 = vrot.slane %v3692, 1
      %v3884 = vsel %vm838, %v3882, %v3883
      %v3885 = vrot.slane %v3701, 1
      %v3886 = vrot.slane %v3693, 1
      %v3887 = vsel %vm838, %v3885, %v3886
      %v3888 = vrot.slane %v3702, 1
      %v3889 = vrot.slane %v3694, 1
      %v3890 = vsel %vm838, %v3888, %v3889
      %v3891 = vrot.slane %v3703, 1
      %v3892 = vrot.slane %v3695, 1
      %v3893 = vsel %vm838, %v3891, %v3892
      %v3894 = vrot.slane %v3704, 1
      %v3895 = vrot.slane %v3696, 1
      %v3896 = vsel %vm838, %v3894, %v3895
      %v3897 = vrot.slane %v3705, 1
      %v3898 = vrot.slane %v3697, 1
      %v3899 = vsel %vm838, %v3897, %v3898
      %v3909 = vshrl.u32 %v3707, 16
      %v3911 = vshll.u32 %v3707, 16
      %v3913 = vrot.slane %v3911, 1
      %v3914 = vor.u32 %v3909, %v3913
      %v3916 = vshll.u32 %v3715, 16
      %v3918 = vrot.slane %v3916, 1
      %v3919 = vsel %vm617, %v3914, %v3918
      %v3921 = vshrl.u32 %v3708, 16
      %v3923 = vshll.u32 %v3708, 16
      %v3925 = vrot.slane %v3923, 1
      %v3926 = vor.u32 %v3921, %v3925
      %v3928 = vshll.u32 %v3716, 16
      %v3930 = vrot.slane %v3928, 1
      %v3931 = vsel %vm617, %v3926, %v3930
      %v3933 = vshrl.u32 %v3709, 16
      %v3935 = vshll.u32 %v3709, 16
      %v3937 = vrot.slane %v3935, 1
      %v3938 = vor.u32 %v3933, %v3937
      %v3940 = vshll.u32 %v3717, 16
      %v3942 = vrot.slane %v3940, 1
      %v3943 = vsel %vm617, %v3938, %v3942
      %v3945 = vshrl.u32 %v3710, 16
      %v3947 = vshll.u32 %v3710, 16
      %v3949 = vrot.slane %v3947, 1
      %v3950 = vor.u32 %v3945, %v3949
      %v3952 = vshll.u32 %v3718, 16
      %v3954 = vrot.slane %v3952, 1
      %v3955 = vsel %vm617, %v3950, %v3954
      %v3957 = vshrl.u32 %v3711, 16
      %v3959 = vshll.u32 %v3711, 16
      %v3961 = vrot.slane %v3959, 1
      %v3962 = vor.u32 %v3957, %v3961
      %v3964 = vshll.u32 %v3719, 16
      %v3966 = vrot.slane %v3964, 1
      %v3967 = vsel %vm617, %v3962, %v3966
      %v3969 = vshrl.u32 %v3712, 16
      %v3971 = vshll.u32 %v3712, 16
      %v3973 = vrot.slane %v3971, 1
      %v3974 = vor.u32 %v3969, %v3973
      %v3976 = vshll.u32 %v3720, 16
      %v3978 = vrot.slane %v3976, 1
      %v3979 = vsel %vm617, %v3974, %v3978
      %v3981 = vshrl.u32 %v3713, 16
      %v3983 = vshll.u32 %v3713, 16
      %v3985 = vrot.slane %v3983, 1
      %v3986 = vor.u32 %v3981, %v3985
      %v3988 = vshll.u32 %v3721, 16
      %v3990 = vrot.slane %v3988, 1
      %v3991 = vsel %vm617, %v3986, %v3990
      %v3993 = vshrl.u32 %v3714, 16
      %v3995 = vshll.u32 %v3714, 16
      %v3997 = vrot.slane %v3995, 1
      %v3998 = vor.u32 %v3993, %v3997
      %v4000 = vshll.u32 %v3722, 16
      %v4002 = vrot.slane %v4000, 1
      %v4003 = vsel %vm617, %v3998, %v4002
      %v4028 = vrot.slane %v3723, 1
      %v4029 = vrot.slane %v3715, 1
      %v4030 = vsel %vm838, %v4028, %v4029
      %v4031 = vrot.slane %v3724, 1
      %v4032 = vrot.slane %v3716, 1
      %v4033 = vsel %vm838, %v4031, %v4032
      %v4034 = vrot.slane %v3725, 1
      %v4035 = vrot.slane %v3717, 1
      %v4036 = vsel %vm838, %v4034, %v4035
      %v4037 = vrot.slane %v3726, 1
      %v4038 = vrot.slane %v3718, 1
      %v4039 = vsel %vm838, %v4037, %v4038
      %v4040 = vrot.slane %v3727, 1
      %v4041 = vrot.slane %v3719, 1
      %v4042 = vsel %vm838, %v4040, %v4041
      %v4043 = vrot.slane %v3728, 1
      %v4044 = vrot.slane %v3720, 1
      %v4045 = vsel %vm838, %v4043, %v4044
      %v4046 = vrot.slane %v3729, 1
      %v4047 = vrot.slane %v3721, 1
      %v4048 = vsel %vm838, %v4046, %v4047
      %v4049 = vrot.slane %v3730, 1
      %v4050 = vrot.slane %v3722, 1
      %v4051 = vsel %vm838, %v4049, %v4050
      %v4061 = vshrl.u32 %v3732, 16
      %v4063 = vshll.u32 %v3732, 16
      %v4065 = vrot.slane %v4063, 1
      %v4066 = vor.u32 %v4061, %v4065
      %v4068 = vshll.u32 %v3740, 16
      %v4070 = vrot.slane %v4068, 1
      %v4071 = vsel %vm617, %v4066, %v4070
      %v4073 = vshrl.u32 %v3733, 16
      %v4075 = vshll.u32 %v3733, 16
      %v4077 = vrot.slane %v4075, 1
      %v4078 = vor.u32 %v4073, %v4077
      %v4080 = vshll.u32 %v3741, 16
      %v4082 = vrot.slane %v4080, 1
      %v4083 = vsel %vm617, %v4078, %v4082
      %v4085 = vshrl.u32 %v3734, 16
      %v4087 = vshll.u32 %v3734, 16
      %v4089 = vrot.slane %v4087, 1
      %v4090 = vor.u32 %v4085, %v4089
      %v4092 = vshll.u32 %v3742, 16
      %v4094 = vrot.slane %v4092, 1
      %v4095 = vsel %vm617, %v4090, %v4094
      %v4097 = vshrl.u32 %v3735, 16
      %v4099 = vshll.u32 %v3735, 16
      %v4101 = vrot.slane %v4099, 1
      %v4102 = vor.u32 %v4097, %v4101
      %v4104 = vshll.u32 %v3743, 16
      %v4106 = vrot.slane %v4104, 1
      %v4107 = vsel %vm617, %v4102, %v4106
      %v4109 = vshrl.u32 %v3736, 16
      %v4111 = vshll.u32 %v3736, 16
      %v4113 = vrot.slane %v4111, 1
      %v4114 = vor.u32 %v4109, %v4113
      %v4116 = vshll.u32 %v3744, 16
      %v4118 = vrot.slane %v4116, 1
      %v4119 = vsel %vm617, %v4114, %v4118
      %v4121 = vshrl.u32 %v3737, 16
      %v4123 = vshll.u32 %v3737, 16
      %v4125 = vrot.slane %v4123, 1
      %v4126 = vor.u32 %v4121, %v4125
      %v4128 = vshll.u32 %v3745, 16
      %v4130 = vrot.slane %v4128, 1
      %v4131 = vsel %vm617, %v4126, %v4130
      %v4133 = vshrl.u32 %v3738, 16
      %v4135 = vshll.u32 %v3738, 16
      %v4137 = vrot.slane %v4135, 1
      %v4138 = vor.u32 %v4133, %v4137
      %v4140 = vshll.u32 %v3746, 16
      %v4142 = vrot.slane %v4140, 1
      %v4143 = vsel %vm617, %v4138, %v4142
      %v4145 = vshrl.u32 %v3739, 16
      %v4147 = vshll.u32 %v3739, 16
      %v4149 = vrot.slane %v4147, 1
      %v4150 = vor.u32 %v4145, %v4149
      %v4152 = vshll.u32 %v3747, 16
      %v4154 = vrot.slane %v4152, 1
      %v4155 = vsel %vm617, %v4150, %v4154
      %v4180 = vrot.slane %v3748, 1
      %v4181 = vrot.slane %v3740, 1
      %v4182 = vsel %vm838, %v4180, %v4181
      %v4183 = vrot.slane %v3749, 1
      %v4184 = vrot.slane %v3741, 1
      %v4185 = vsel %vm838, %v4183, %v4184
      %v4186 = vrot.slane %v3750, 1
      %v4187 = vrot.slane %v3742, 1
      %v4188 = vsel %vm838, %v4186, %v4187
      %v4189 = vrot.slane %v3751, 1
      %v4190 = vrot.slane %v3743, 1
      %v4191 = vsel %vm838, %v4189, %v4190
      %v4192 = vrot.slane %v3752, 1
      %v4193 = vrot.slane %v3744, 1
      %v4194 = vsel %vm838, %v4192, %v4193
      %v4195 = vrot.slane %v3753, 1
      %v4196 = vrot.slane %v3745, 1
      %v4197 = vsel %vm838, %v4195, %v4196
      %v4198 = vrot.slane %v3754, 1
      %v4199 = vrot.slane %v3746, 1
      %v4200 = vsel %vm838, %v4198, %v4199
      %v4201 = vrot.slane %v3755, 1
      %v4202 = vrot.slane %v3747, 1
      %v4203 = vsel %vm838, %v4201, %v4202
      %v4212 = vld [vmem:[%s4] sm:$0xf]
      %v4213 = vld [vmem:[%s4 + $0x4] sm:$0xf]
      %v4214 = vld [vmem:[%s4 + $0x8] sm:$0xf]
      %v4215 = vld [vmem:[%s4 + $0xc] sm:$0xf]
      %v4216 = vld [vmem:[%s4 + $0x10] sm:$0xf]
      %v4217 = vld [vmem:[%s4 + $0x14] sm:$0xf]
      %v4218 = vld [vmem:[%s4 + $0x18] sm:$0xf]
      %v4219 = vld [vmem:[%s4 + $0x1c] sm:$0xf]
      %v4220 = vld [vmem:[%s4 + $0x20] sm:$0xf]
      %v4221 = vld [vmem:[%s4 + $0x24] sm:$0xf]
      %v4222 = vld [vmem:[%s4 + $0x28] sm:$0xf]
      %v4223 = vld [vmem:[%s4 + $0x2c] sm:$0xf]
      %v4224 = vld [vmem:[%s4 + $0x30] sm:$0xf]
      %v4225 = vld [vmem:[%s4 + $0x34] sm:$0xf]
      %v4226 = vld [vmem:[%s4 + $0x38] sm:$0xf]
      %v4227 = vld [vmem:[%s4 + $0x3c] sm:$0xf]
      %v4228 = vld [vmem:[%s4 + $0x40] sm:$0xf]
      %v4229 = vld [vmem:[%s4 + $0x44] sm:$0xf]
      %v4230 = vld [vmem:[%s4 + $0x48] sm:$0xf]
      %v4231 = vld [vmem:[%s4 + $0x4c] sm:$0xf]
      %v4232 = vld [vmem:[%s4 + $0x50] sm:$0xf]
      %v4233 = vld [vmem:[%s4 + $0x54] sm:$0xf]
      %v4234 = vld [vmem:[%s4 + $0x58] sm:$0xf]
      %v4235 = vld [vmem:[%s4 + $0x5c] sm:$0xf]
      %v4236 = vld [vmem:[%s4 + $0x60] sm:$0xf]
      %v4237 = vld [vmem:[%s4 + $0x64] sm:$0xf]
      %v4238 = vld [vmem:[%s4 + $0x68] sm:$0xf]
      %v4239 = vld [vmem:[%s4 + $0x6c] sm:$0xf]
      %v4240 = vld [vmem:[%s4 + $0x70] sm:$0xf]
      %v4241 = vld [vmem:[%s4 + $0x74] sm:$0xf]
      %v4242 = vld [vmem:[%s4 + $0x78] sm:$0xf]
      %v4243 = vld [vmem:[%s4 + $0x7c] sm:$0xf]
      %v4244 = vld [vmem:[%s4 + $0x80] sm:$0xf]
      %v4245 = vld [vmem:[%s4 + $0x84] sm:$0xf]
      %v4246 = vld [vmem:[%s4 + $0x88] sm:$0xf]
      %v4247 = vld [vmem:[%s4 + $0x8c] sm:$0xf]
      %v4248 = vld [vmem:[%s4 + $0x90] sm:$0xf]
      %v4249 = vld [vmem:[%s4 + $0x94] sm:$0xf]
      %v4250 = vld [vmem:[%s4 + $0x98] sm:$0xf]
      %v4251 = vld [vmem:[%s4 + $0x9c] sm:$0xf]
      %v4252 = vld [vmem:[%s4 + $0xa0] sm:$0xf]
      %v4253 = vld [vmem:[%s4 + $0xa4] sm:$0xf]
      %v4254 = vld [vmem:[%s4 + $0xa8] sm:$0xf]
      %v4255 = vld [vmem:[%s4 + $0xac] sm:$0xf]
      %v4256 = vld [vmem:[%s4 + $0xb0] sm:$0xf]
      %v4257 = vld [vmem:[%s4 + $0xb4] sm:$0xf]
      %v4258 = vld [vmem:[%s4 + $0xb8] sm:$0xf]
      %v4259 = vld [vmem:[%s4 + $0xbc] sm:$0xf]
      %v4260 = vld [vmem:[%s4 + $0xc0] sm:$0xf]
      %v4261 = vld [vmem:[%s4 + $0xc4] sm:$0xf]
      %v4262 = vld [vmem:[%s4 + $0xc8] sm:$0xf]
      %v4263 = vld [vmem:[%s4 + $0xcc] sm:$0xf]
      %v4264 = vld [vmem:[%s4 + $0xd0] sm:$0xf]
      %v4265 = vld [vmem:[%s4 + $0xd4] sm:$0xf]
      %v4266 = vld [vmem:[%s4 + $0xd8] sm:$0xf]
      %v4267 = vld [vmem:[%s4 + $0xdc] sm:$0xf]
      %v4268 = vld [vmem:[%s4 + $0xe0] sm:$0xf]
      %v4269 = vld [vmem:[%s4 + $0xe4] sm:$0xf]
      %v4270 = vld [vmem:[%s4 + $0xe8] sm:$0xf]
      %v4271 = vld [vmem:[%s4 + $0xec] sm:$0xf]
      %v4272 = vld [vmem:[%s4 + $0xf0] sm:$0xf]
      %v4273 = vld [vmem:[%s4 + $0xf4] sm:$0xf]
      %v4274 = vld [vmem:[%s4 + $0xf8] sm:$0xf]
      %v4275 = vld [vmem:[%s4 + $0xfc] sm:$0xf]
      %v4276 = vld [vmem:[%s4 + $0x100] sm:$0xf]
      %v4277 = vld [vmem:[%s4 + $0x104] sm:$0xf]
      %v4278 = vld [vmem:[%s4 + $0x108] sm:$0xf]
      %v4279 = vld [vmem:[%s4 + $0x10c] sm:$0xf]
      %v4280 = vld [vmem:[%s4 + $0x110] sm:$0xf]
      %v4281 = vld [vmem:[%s4 + $0x114] sm:$0xf]
      %v4282 = vld [vmem:[%s4 + $0x118] sm:$0xf]
      %v4283 = vld [vmem:[%s4 + $0x11c] sm:$0xf]
      %v4284 = vld [vmem:[%s4 + $0x120] sm:$0xf]
      %v4285 = vld [vmem:[%s4 + $0x124] sm:$0xf]
      %v4286 = vld [vmem:[%s4 + $0x128] sm:$0xf]
      %v4287 = vld [vmem:[%s4 + $0x12c] sm:$0xf]
      %v4288 = vld [vmem:[%s4 + $0x130] sm:$0xf]
      %v4289 = vld [vmem:[%s4 + $0x134] sm:$0xf]
      %v4290 = vld [vmem:[%s4 + $0x138] sm:$0xf]
      %v4291 = vld [vmem:[%s4 + $0x13c] sm:$0xf]
      %v4292 = vld [vmem:[%s4 + $0x140] sm:$0xf]
      %v4293 = vld [vmem:[%s4 + $0x144] sm:$0xf]
      %v4294 = vld [vmem:[%s4 + $0x148] sm:$0xf]
      %v4295 = vld [vmem:[%s4 + $0x14c] sm:$0xf]
      %v4296 = vld [vmem:[%s4 + $0x150] sm:$0xf]
      %v4297 = vld [vmem:[%s4 + $0x154] sm:$0xf]
      %v4298 = vld [vmem:[%s4 + $0x158] sm:$0xf]
      %v4299 = vld [vmem:[%s4 + $0x15c] sm:$0xf]
      %v4300 = vld [vmem:[%s4 + $0x160] sm:$0xf]
      %v4301 = vld [vmem:[%s4 + $0x164] sm:$0xf]
      %v4302 = vld [vmem:[%s4 + $0x168] sm:$0xf]
      %v4303 = vld [vmem:[%s4 + $0x16c] sm:$0xf]
      %v4304 = vld [vmem:[%s4 + $0x170] sm:$0xf]
      %v4305 = vld [vmem:[%s4 + $0x174] sm:$0xf]
      %v4306 = vld [vmem:[%s4 + $0x178] sm:$0xf]
      %v4307 = vld [vmem:[%s4 + $0x17c] sm:$0xf]
      %v4308 = vld [vmem:[%s4 + $0x180] sm:$0xf]
      %v4309 = vld [vmem:[%s4 + $0x184] sm:$0xf]
      %v4310 = vld [vmem:[%s4 + $0x188] sm:$0xf]
      %v4311 = vld [vmem:[%s4 + $0x18c] sm:$0xf]
      %v4312 = vld [vmem:[%s4 + $0x190] sm:$0xf]
      %v4313 = vld [vmem:[%s4 + $0x194] sm:$0xf]
      %v4314 = vld [vmem:[%s4 + $0x198] sm:$0xf]
      %v4315 = vld [vmem:[%s4 + $0x19c] sm:$0xf]
      %v4316 = vld [vmem:[%s4 + $0x1a0] sm:$0xf]
      %v4317 = vld [vmem:[%s4 + $0x1a4] sm:$0xf]
      %v4318 = vld [vmem:[%s4 + $0x1a8] sm:$0xf]
      %v4319 = vld [vmem:[%s4 + $0x1ac] sm:$0xf]
      %v4320 = vld [vmem:[%s4 + $0x1b0] sm:$0xf]
      %v4321 = vld [vmem:[%s4 + $0x1b4] sm:$0xf]
      %v4322 = vld [vmem:[%s4 + $0x1b8] sm:$0xf]
      %v4323 = vld [vmem:[%s4 + $0x1bc] sm:$0xf]
      %v4324 = vld [vmem:[%s4 + $0x1c0] sm:$0xf]
      %v4325 = vld [vmem:[%s4 + $0x1c4] sm:$0xf]
      %v4326 = vld [vmem:[%s4 + $0x1c8] sm:$0xf]
      %v4327 = vld [vmem:[%s4 + $0x1cc] sm:$0xf]
      %v4328 = vld [vmem:[%s4 + $0x1d0] sm:$0xf]
      %v4329 = vld [vmem:[%s4 + $0x1d4] sm:$0xf]
      %v4330 = vld [vmem:[%s4 + $0x1d8] sm:$0xf]
      %v4331 = vld [vmem:[%s4 + $0x1dc] sm:$0xf]
      %v4332 = vld [vmem:[%s4 + $0x1e0] sm:$0xf]
      %v4333 = vld [vmem:[%s4 + $0x1e4] sm:$0xf]
      %v4334 = vld [vmem:[%s4 + $0x1e8] sm:$0xf]
      %v4335 = vld [vmem:[%s4 + $0x1ec] sm:$0xf]
      %v4336 = vld [vmem:[%s4 + $0x1f0] sm:$0xf]
      %v4337 = vld [vmem:[%s4 + $0x1f4] sm:$0xf]
      %v4338 = vld [vmem:[%s4 + $0x1f8] sm:$0xf]
      %v4339 = vld [vmem:[%s4 + $0x1fc] sm:$0xf]
      %v4340 = vld [vmem:[%s4 + $0x200] sm:$0xf]
      %v4341 = vld [vmem:[%s4 + $0x204] sm:$0xf]
      %v4342 = vld [vmem:[%s4 + $0x208] sm:$0xf]
      %v4343 = vld [vmem:[%s4 + $0x20c] sm:$0xf]
      %v4344 = vld [vmem:[%s4 + $0x210] sm:$0xf]
      %v4345 = vld [vmem:[%s4 + $0x214] sm:$0xf]
      %v4346 = vld [vmem:[%s4 + $0x218] sm:$0xf]
      %v4347 = vld [vmem:[%s4 + $0x21c] sm:$0xf]
      %v4348 = vld [vmem:[%s4 + $0x220] sm:$0xf]
      %v4349 = vld [vmem:[%s4 + $0x224] sm:$0xf]
      %v4350 = vld [vmem:[%s4 + $0x228] sm:$0xf]
      %v4351 = vld [vmem:[%s4 + $0x22c] sm:$0xf]
      %v4352 = vld [vmem:[%s4 + $0x230] sm:$0xf]
      %v4353 = vld [vmem:[%s4 + $0x234] sm:$0xf]
      %v4354 = vld [vmem:[%s4 + $0x238] sm:$0xf]
      %v4355 = vld [vmem:[%s4 + $0x23c] sm:$0xf]
      %v4500 = vunpack.c.l.b16 %v4212
      %v4501 = vunpack.c.l.b16 %v4213
      %v4502 = vunpack.c.l.b16 %v4214
      %v4503 = vunpack.c.l.b16 %v4215
      %v4504 = vunpack.c.l.b16 %v4216
      %v4505 = vunpack.c.l.b16 %v4217
      %v4506 = vunpack.c.l.b16 %v4218
      %v4507 = vunpack.c.l.b16 %v4219
      %v4508 = vunpack.c.l.b16 %v4220
      %v4509 = vunpack.c.l.b16 %v4221
      %v4510 = vunpack.c.l.b16 %v4222
      %v4511 = vunpack.c.l.b16 %v4223
      %v4512 = vunpack.c.l.b16 %v4224
      %v4513 = vunpack.c.l.b16 %v4225
      %v4514 = vunpack.c.l.b16 %v4226
      %v4515 = vunpack.c.l.b16 %v4227
      %v4516 = vunpack.c.l.b16 %v4228
      %v4517 = vunpack.c.l.b16 %v4229
      %v4518 = vunpack.c.l.b16 %v4230
      %v4519 = vunpack.c.l.b16 %v4231
      %v4520 = vunpack.c.l.b16 %v4232
      %v4521 = vunpack.c.l.b16 %v4233
      %v4522 = vunpack.c.l.b16 %v4234
      %v4523 = vunpack.c.l.b16 %v4235
      %v4524 = vunpack.c.l.b16 %v4236
      %v4525 = vunpack.c.l.b16 %v4237
      %v4526 = vunpack.c.l.b16 %v4238
      %v4527 = vunpack.c.l.b16 %v4239
      %v4528 = vunpack.c.l.b16 %v4240
      %v4529 = vunpack.c.l.b16 %v4241
      %v4530 = vunpack.c.l.b16 %v4242
      %v4531 = vunpack.c.l.b16 %v4243
      %v4532 = vunpack.c.l.b16 %v4244
      %v4533 = vunpack.c.l.b16 %v4245
      %v4534 = vunpack.c.l.b16 %v4246
      %v4535 = vunpack.c.l.b16 %v4247
      %v4536 = vunpack.c.l.b16 %v4248
      %v4537 = vunpack.c.l.b16 %v4249
      %v4538 = vunpack.c.l.b16 %v4250
      %v4539 = vunpack.c.l.b16 %v4251
      %v4540 = vunpack.c.l.b16 %v4252
      %v4541 = vunpack.c.l.b16 %v4253
      %v4542 = vunpack.c.l.b16 %v4254
      %v4543 = vunpack.c.l.b16 %v4255
      %v4544 = vunpack.c.l.b16 %v4256
      %v4545 = vunpack.c.l.b16 %v4257
      %v4546 = vunpack.c.l.b16 %v4258
      %v4547 = vunpack.c.l.b16 %v4259
      %v4548 = vunpack.c.l.b16 %v4260
      %v4549 = vunpack.c.l.b16 %v4261
      %v4550 = vunpack.c.l.b16 %v4262
      %v4551 = vunpack.c.l.b16 %v4263
      %v4552 = vunpack.c.l.b16 %v4264
      %v4553 = vunpack.c.l.b16 %v4265
      %v4554 = vunpack.c.l.b16 %v4266
      %v4555 = vunpack.c.l.b16 %v4267
      %v4556 = vunpack.c.l.b16 %v4268
      %v4557 = vunpack.c.l.b16 %v4269
      %v4558 = vunpack.c.l.b16 %v4270
      %v4559 = vunpack.c.l.b16 %v4271
      %v4560 = vunpack.c.l.b16 %v4272
      %v4561 = vunpack.c.l.b16 %v4273
      %v4562 = vunpack.c.l.b16 %v4274
      %v4563 = vunpack.c.l.b16 %v4275
      %v4564 = vunpack.c.l.b16 %v4276
      %v4565 = vunpack.c.l.b16 %v4277
      %v4566 = vunpack.c.l.b16 %v4278
      %v4567 = vunpack.c.l.b16 %v4279
      %v4568 = vunpack.c.l.b16 %v4280
      %v4569 = vunpack.c.l.b16 %v4281
      %v4570 = vunpack.c.l.b16 %v4282
      %v4571 = vunpack.c.l.b16 %v4283
      %v4572 = vunpack.c.l.b16 %v4284
      %v4573 = vunpack.c.l.b16 %v4285
      %v4574 = vunpack.c.l.b16 %v4286
      %v4575 = vunpack.c.l.b16 %v4287
      %v4576 = vunpack.c.l.b16 %v4288
      %v4577 = vunpack.c.l.b16 %v4289
      %v4578 = vunpack.c.l.b16 %v4290
      %v4579 = vunpack.c.l.b16 %v4291
      %v4580 = vunpack.c.l.b16 %v4292
      %v4581 = vunpack.c.l.b16 %v4293
      %v4582 = vunpack.c.l.b16 %v4294
      %v4583 = vunpack.c.l.b16 %v4295
      %v4584 = vunpack.c.l.b16 %v4296
      %v4585 = vunpack.c.l.b16 %v4297
      %v4586 = vunpack.c.l.b16 %v4298
      %v4587 = vunpack.c.l.b16 %v4299
      %v4588 = vunpack.c.l.b16 %v4300
      %v4589 = vunpack.c.l.b16 %v4301
      %v4590 = vunpack.c.l.b16 %v4302
      %v4591 = vunpack.c.l.b16 %v4303
      %v4592 = vunpack.c.l.b16 %v4304
      %v4593 = vunpack.c.l.b16 %v4305
      %v4594 = vunpack.c.l.b16 %v4306
      %v4595 = vunpack.c.l.b16 %v4307
      %v4596 = vunpack.c.l.b16 %v4308
      %v4597 = vunpack.c.l.b16 %v4309
      %v4598 = vunpack.c.l.b16 %v4310
      %v4599 = vunpack.c.l.b16 %v4311
      %v4600 = vunpack.c.l.b16 %v4312
      %v4601 = vunpack.c.l.b16 %v4313
      %v4602 = vunpack.c.l.b16 %v4314
      %v4603 = vunpack.c.l.b16 %v4315
      %v4604 = vunpack.c.l.b16 %v4316
      %v4605 = vunpack.c.l.b16 %v4317
      %v4606 = vunpack.c.l.b16 %v4318
      %v4607 = vunpack.c.l.b16 %v4319
      %v4608 = vunpack.c.l.b16 %v4320
      %v4609 = vunpack.c.l.b16 %v4321
      %v4610 = vunpack.c.l.b16 %v4322
      %v4611 = vunpack.c.l.b16 %v4323
      %v4612 = vunpack.c.l.b16 %v4324
      %v4613 = vunpack.c.l.b16 %v4325
      %v4614 = vunpack.c.l.b16 %v4326
      %v4615 = vunpack.c.l.b16 %v4327
      %v4616 = vunpack.c.l.b16 %v4328
      %v4617 = vunpack.c.l.b16 %v4329
      %v4618 = vunpack.c.l.b16 %v4330
      %v4619 = vunpack.c.l.b16 %v4331
      %v4620 = vunpack.c.l.b16 %v4332
      %v4621 = vunpack.c.l.b16 %v4333
      %v4622 = vunpack.c.l.b16 %v4334
      %v4623 = vunpack.c.l.b16 %v4335
      %v4624 = vunpack.c.l.b16 %v4336
      %v4625 = vunpack.c.l.b16 %v4337
      %v4626 = vunpack.c.l.b16 %v4338
      %v4627 = vunpack.c.l.b16 %v4339
      %v4628 = vunpack.c.l.b16 %v4340
      %v4629 = vunpack.c.l.b16 %v4341
      %v4630 = vunpack.c.l.b16 %v4342
      %v4631 = vunpack.c.l.b16 %v4343
      %v4632 = vunpack.c.l.b16 %v4344
      %v4633 = vunpack.c.l.b16 %v4345
      %v4634 = vunpack.c.l.b16 %v4346
      %v4635 = vunpack.c.l.b16 %v4347
      %v4636 = vunpack.c.l.b16 %v4348
      %v4637 = vunpack.c.l.b16 %v4349
      %v4638 = vunpack.c.l.b16 %v4350
      %v4639 = vunpack.c.l.b16 %v4351
      %v4640 = vunpack.c.l.b16 %v4352
      %v4641 = vunpack.c.l.b16 %v4353
      %v4642 = vunpack.c.l.b16 %v4354
      %v4643 = vunpack.c.l.b16 %v4355
      %v4644 = vpack.c.b16 %v4501, %v4500
      %v4645 = vpack.c.b16 %v4503, %v4502
      %v4646 = vpack.c.b16 %v4505, %v4504
      %v4647 = vpack.c.b16 %v4507, %v4506
      %v4648 = vpack.c.b16 %v4509, %v4508
      %v4649 = vpack.c.b16 %v4511, %v4510
      %v4650 = vpack.c.b16 %v4513, %v4512
      %v4651 = vpack.c.b16 %v4515, %v4514
      %v4652 = vpack.c.b16 %v4517, %v4516
      %v4653 = vpack.c.b16 %v4519, %v4518
      %v4654 = vpack.c.b16 %v4521, %v4520
      %v4655 = vpack.c.b16 %v4523, %v4522
      %v4656 = vpack.c.b16 %v4525, %v4524
      %v4657 = vpack.c.b16 %v4527, %v4526
      %v4658 = vpack.c.b16 %v4529, %v4528
      %v4659 = vpack.c.b16 %v4531, %v4530
      %v4660 = vpack.c.b16 %v4533, %v4532
      %v4661 = vpack.c.b16 %v4535, %v4534
      %v4662 = vpack.c.b16 %v4537, %v4536
      %v4663 = vpack.c.b16 %v4539, %v4538
      %v4664 = vpack.c.b16 %v4541, %v4540
      %v4665 = vpack.c.b16 %v4543, %v4542
      %v4666 = vpack.c.b16 %v4545, %v4544
      %v4667 = vpack.c.b16 %v4547, %v4546
      %v4668 = vpack.c.b16 %v4549, %v4548
      %v4669 = vpack.c.b16 %v4551, %v4550
      %v4670 = vpack.c.b16 %v4553, %v4552
      %v4671 = vpack.c.b16 %v4555, %v4554
      %v4672 = vpack.c.b16 %v4557, %v4556
      %v4673 = vpack.c.b16 %v4559, %v4558
      %v4674 = vpack.c.b16 %v4561, %v4560
      %v4675 = vpack.c.b16 %v4563, %v4562
      %v4676 = vpack.c.b16 %v4565, %v4564
      %v4677 = vpack.c.b16 %v4567, %v4566
      %v4678 = vpack.c.b16 %v4569, %v4568
      %v4679 = vpack.c.b16 %v4571, %v4570
      %v4680 = vpack.c.b16 %v4573, %v4572
      %v4681 = vpack.c.b16 %v4575, %v4574
      %v4682 = vpack.c.b16 %v4577, %v4576
      %v4683 = vpack.c.b16 %v4579, %v4578
      %v4684 = vpack.c.b16 %v4581, %v4580
      %v4685 = vpack.c.b16 %v4583, %v4582
      %v4686 = vpack.c.b16 %v4585, %v4584
      %v4687 = vpack.c.b16 %v4587, %v4586
      %v4688 = vpack.c.b16 %v4589, %v4588
      %v4689 = vpack.c.b16 %v4591, %v4590
      %v4690 = vpack.c.b16 %v4593, %v4592
      %v4691 = vpack.c.b16 %v4595, %v4594
      %v4692 = vpack.c.b16 %v4597, %v4596
      %v4693 = vpack.c.b16 %v4599, %v4598
      %v4694 = vpack.c.b16 %v4601, %v4600
      %v4695 = vpack.c.b16 %v4603, %v4602
      %v4696 = vpack.c.b16 %v4605, %v4604
      %v4697 = vpack.c.b16 %v4607, %v4606
      %v4698 = vpack.c.b16 %v4609, %v4608
      %v4699 = vpack.c.b16 %v4611, %v4610
      %v4700 = vpack.c.b16 %v4613, %v4612
      %v4701 = vpack.c.b16 %v4615, %v4614
      %v4702 = vpack.c.b16 %v4617, %v4616
      %v4703 = vpack.c.b16 %v4619, %v4618
      %v4704 = vpack.c.b16 %v4621, %v4620
      %v4705 = vpack.c.b16 %v4623, %v4622
      %v4706 = vpack.c.b16 %v4625, %v4624
      %v4707 = vpack.c.b16 %v4627, %v4626
      %v4708 = vpack.c.b16 %v4629, %v4628
      %v4709 = vpack.c.b16 %v4631, %v4630
      %v4710 = vpack.c.b16 %v4633, %v4632
      %v4711 = vpack.c.b16 %v4635, %v4634
      %v4712 = vpack.c.b16 %v4637, %v4636
      %v4713 = vpack.c.b16 %v4639, %v4638
      %v4714 = vpack.c.b16 %v4641, %v4640
      %v4715 = vpack.c.b16 %v4643, %v4642
      %4788 = vmatprep.subr.bf16.mxu0 0
      %4789 = vmatpush1.bf16.msra.mxu0 %v4644
      %4790 = vmatprep.subr.bf16.mxu0 0
      %4791 = vmatpush1.bf16.msra.mxu0 %v4645
      %4792 = vmatprep.subr.bf16.mxu0 0
      %4793 = vmatpush1.bf16.msra.mxu0 %v4646
      %4794 = vmatprep.subr.bf16.mxu0 0
      %4795 = vmatpush1.bf16.msra.mxu0 %v4647
      %4796 = vmatprep.subr.bf16.mxu0 0
      %4797 = vmatpush1.bf16.msra.mxu0 %v4648
      %4798 = vmatprep.subr.bf16.mxu0 0
      %4799 = vmatpush1.bf16.msra.mxu0 %v4649
      %4800 = vmatprep.subr.bf16.mxu0 0
      %4801 = vmatpush1.bf16.msra.mxu0 %v4650
      %4802 = vmatprep.subr.bf16.mxu0 0
      %4803 = vmatpush1.bf16.msra.mxu0 %v4651
      %4804 = vmatprep.subr.bf16.mxu0 0
      %4805 = vmatpush1.bf16.msra.mxu0 %v4652
      %4806 = vmatprep.subr.bf16.mxu0 0
      %4807 = vmatpush1.bf16.msra.mxu0 %v4653
      %4808 = vmatprep.subr.bf16.mxu0 0
      %4809 = vmatpush1.bf16.msra.mxu0 %v4654
      %4810 = vmatprep.subr.bf16.mxu0 0
      %4811 = vmatpush1.bf16.msra.mxu0 %v4655
      %4812 = vmatprep.subr.bf16.mxu0 0
      %4813 = vmatpush1.bf16.msra.mxu0 %v4656
      %4814 = vmatprep.subr.bf16.mxu0 0
      %4815 = vmatpush1.bf16.msra.mxu0 %v4657
      %4816 = vmatprep.subr.bf16.mxu0 0
      %4817 = vmatpush1.bf16.msra.mxu0 %v4658
      %4818 = vmatprep.subr.bf16.mxu0 0
      %4819 = vmatpush1.bf16.msra.mxu0 %v4659
      %4820 = vmatprep.mubr.bf16.mxu0 %v3767
      %4821 = vmatmul.mubr.bf16.gmra.mrb[0].mxu0 %v3682
      %v4822 = vpop.f32.mrb[0].mxu0
      %v4823 = vadd.f32 0.0, %v4822
      %v4824 = vpop.f32.mrb[0].mxu0
      %v4825 = vpop.f32.mrb[0].mxu0
      %v4826 = vadd.f32 0.0, %v4825
      %v4827 = vpop.f32.mrb[0].mxu0
      %4828 = vmatprep.mubr.bf16.mxu0 %v3779
      %4829 = vmatmul.mubr.bf16.gmra.mrb[0].mxu0 %v3683
      %v4830 = vpop.f32.mrb[0].mxu0
      %v4831 = vadd.f32 0.0, %v4830
      %v4832 = vpop.f32.mrb[0].mxu0
      %v4833 = vpop.f32.mrb[0].mxu0
      %v4834 = vadd.f32 0.0, %v4833
      %v4835 = vpop.f32.mrb[0].mxu0
      %4836 = vmatprep.mubr.bf16.mxu0 %v3791
      %4837 = vmatmul.mubr.bf16.gmra.mrb[0].mxu0 %v3684
      %v4838 = vpop.f32.mrb[0].mxu0
      %v4839 = vadd.f32 0.0, %v4838
      %v4840 = vpop.f32.mrb[0].mxu0
      %v4841 = vpop.f32.mrb[0].mxu0
      %v4842 = vadd.f32 0.0, %v4841
      %v4843 = vpop.f32.mrb[0].mxu0
      %4844 = vmatprep.mubr.bf16.mxu0 %v3803
      %4845 = vmatmul.mubr.bf16.gmra.mrb[0].mxu0 %v3685
      %v4846 = vpop.f32.mrb[0].mxu0
      %v4847 = vadd.f32 0.0, %v4846
      %v4848 = vpop.f32.mrb[0].mxu0
      %v4849 = vpop.f32.mrb[0].mxu0
      %v4850 = vadd.f32 0.0, %v4849
      %v4851 = vpop.f32.mrb[0].mxu0
      %4852 = vmatprep.mubr.bf16.mxu0 %v3815
      %4853 = vmatmul.mubr.bf16.gmra.mrb[0].mxu0 %v3686
      %v4854 = vpop.f32.mrb[0].mxu0
      %v4855 = vadd.f32 0.0, %v4854
      %v4856 = vpop.f32.mrb[0].mxu0
      %v4857 = vpop.f32.mrb[0].mxu0
      %v4858 = vadd.f32 0.0, %v4857
      %v4859 = vpop.f32.mrb[0].mxu0
      %4860 = vmatprep.mubr.bf16.mxu0 %v3827
      %4861 = vmatmul.mubr.bf16.gmra.mrb[0].mxu0 %v3687
      %v4862 = vpop.f32.mrb[0].mxu0
      %v4863 = vadd.f32 0.0, %v4862
      %v4864 = vpop.f32.mrb[0].mxu0
      %v4865 = vpop.f32.mrb[0].mxu0
      %v4866 = vadd.f32 0.0, %v4865
      %v4867 = vpop.f32.mrb[0].mxu0
      %4868 = vmatprep.mubr.bf16.mxu0 %v3839
      %4869 = vmatmul.mubr.bf16.gmra.mrb[0].mxu0 %v3688
      %v4870 = vpop.f32.mrb[0].mxu0
      %v4871 = vadd.f32 0.0, %v4870
      %v4872 = vpop.f32.mrb[0].mxu0
      %v4873 = vpop.f32.mrb[0].mxu0
      %v4874 = vadd.f32 0.0, %v4873
      %v4875 = vpop.f32.mrb[0].mxu0
      %4876 = vmatprep.mubr.bf16.mxu0 %v3851
      %4877 = vmatmul.mubr.bf16.gmra.mrb[0].mxu0 %v3689
      %v4878 = vpop.f32.mrb[0].mxu0
      %v4879 = vadd.f32 0.0, %v4878
      %v4880 = vpop.f32.mrb[0].mxu0
      %v4881 = vpop.f32.mrb[0].mxu0
      %v4882 = vadd.f32 0.0, %v4881
      %v4883 = vpop.f32.mrb[0].mxu0
      %4884 = vdwg.mxu0
      %4885 = vmatprep.subr.bf16.mxu0 0
      %4886 = vmatpush1.bf16.msra.mxu0 %v4660
      %4887 = vmatprep.subr.bf16.mxu0 0
      %4888 = vmatpush1.bf16.msra.mxu0 %v4661
      %4889 = vmatprep.subr.bf16.mxu0 0
      %4890 = vmatpush1.bf16.msra.mxu0 %v4662
      %4891 = vmatprep.subr.bf16.mxu0 0
      %4892 = vmatpush1.bf16.msra.mxu0 %v4663
      %4893 = vmatprep.subr.bf16.mxu0 0
      %4894 = vmatpush1.bf16.msra.mxu0 %v4664
      %4895 = vmatprep.subr.bf16.mxu0 0
      %4896 = vmatpush1.bf16.msra.mxu0 %v4665
      %4897 = vmatprep.subr.bf16.mxu0 0
      %4898 = vmatpush1.bf16.msra.mxu0 %v4666
      %4899 = vmatprep.subr.bf16.mxu0 0
      %4900 = vmatpush1.bf16.msra.mxu0 %v4667
      %4901 = vmatprep.subr.bf16.mxu0 0
      %4902 = vmatpush1.bf16.msra.mxu0 %v4668
      %4903 = vmatprep.subr.bf16.mxu0 0
      %4904 = vmatpush1.bf16.msra.mxu0 %v4669
      %4905 = vmatprep.subr.bf16.mxu0 0
      %4906 = vmatpush1.bf16.msra.mxu0 %v4670
      %4907 = vmatprep.subr.bf16.mxu0 0
      %4908 = vmatpush1.bf16.msra.mxu0 %v4671
      %4909 = vmatprep.subr.bf16.mxu0 0
      %4910 = vmatpush1.bf16.msra.mxu0 %v4672
      %4911 = vmatprep.subr.bf16.mxu0 0
      %4912 = vmatpush1.bf16.msra.mxu0 %v4673
      %4913 = vmatprep.subr.bf16.mxu0 0
      %4914 = vmatpush1.bf16.msra.mxu0 %v4674
      %4915 = vmatprep.subr.bf16.mxu0 0
      %4916 = vmatpush1.bf16.msra.mxu0 %v4675
      %4917 = vmatprep.mubr.bf16.mxu0 %v3707
      %4918 = vmatmul.mubr.bf16.gmra.mrb[0].mxu0 %v3878
      %v4919 = vpop.f32.mrb[0].mxu0
      %v4920 = vadd.f32 %v4823, %v4919
      %v4921 = vpop.f32.mrb[0].mxu0
      %v4922 = vpop.f32.mrb[0].mxu0
      %v4923 = vadd.f32 %v4826, %v4922
      %v4924 = vpop.f32.mrb[0].mxu0
      %4925 = vmatprep.mubr.bf16.mxu0 %v3708
      %4926 = vmatmul.mubr.bf16.gmra.mrb[0].mxu0 %v3881
      %v4927 = vpop.f32.mrb[0].mxu0
      %v4928 = vadd.f32 %v4831, %v4927
      %v4929 = vpop.f32.mrb[0].mxu0
      %v4930 = vpop.f32.mrb[0].mxu0
      %v4931 = vadd.f32 %v4834, %v4930
      %v4932 = vpop.f32.mrb[0].mxu0
      %4933 = vmatprep.mubr.bf16.mxu0 %v3709
      %4934 = vmatmul.mubr.bf16.gmra.mrb[0].mxu0 %v3884
      %v4935 = vpop.f32.mrb[0].mxu0
      %v4936 = vadd.f32 %v4839, %v4935
      %v4937 = vpop.f32.mrb[0].mxu0
      %v4938 = vpop.f32.mrb[0].mxu0
      %v4939 = vadd.f32 %v4842, %v4938
      %v4940 = vpop.f32.mrb[0].mxu0
      %4941 = vmatprep.mubr.bf16.mxu0 %v3710
      %4942 = vmatmul.mubr.bf16.gmra.mrb[0].mxu0 %v3887
      %v4943 = vpop.f32.mrb[0].mxu0
      %v4944 = vadd.f32 %v4847, %v4943
      %v4945 = vpop.f32.mrb[0].mxu0
      %v4946 = vpop.f32.mrb[0].mxu0
      %v4947 = vadd.f32 %v4850, %v4946
      %v4948 = vpop.f32.mrb[0].mxu0
      %4949 = vmatprep.mubr.bf16.mxu0 %v3711
      %4950 = vmatmul.mubr.bf16.gmra.mrb[0].mxu0 %v3890
      %v4951 = vpop.f32.mrb[0].mxu0
      %v4952 = vadd.f32 %v4855, %v4951
      %v4953 = vpop.f32.mrb[0].mxu0
      %v4954 = vpop.f32.mrb[0].mxu0
      %v4955 = vadd.f32 %v4858, %v4954
      %v4956 = vpop.f32.mrb[0].mxu0
      %4957 = vmatprep.mubr.bf16.mxu0 %v3712
      %4958 = vmatmul.mubr.bf16.gmra.mrb[0].mxu0 %v3893
      %v4959 = vpop.f32.mrb[0].mxu0
      %v4960 = vadd.f32 %v4863, %v4959
      %v4961 = vpop.f32.mrb[0].mxu0
      %v4962 = vpop.f32.mrb[0].mxu0
      %v4963 = vadd.f32 %v4866, %v4962
      %v4964 = vpop.f32.mrb[0].mxu0
      %4965 = vmatprep.mubr.bf16.mxu0 %v3713
      %4966 = vmatmul.mubr.bf16.gmra.mrb[0].mxu0 %v3896
      %v4967 = vpop.f32.mrb[0].mxu0
      %v4968 = vadd.f32 %v4871, %v4967
      %v4969 = vpop.f32.mrb[0].mxu0
      %v4970 = vpop.f32.mrb[0].mxu0
      %v4971 = vadd.f32 %v4874, %v4970
      %v4972 = vpop.f32.mrb[0].mxu0
      %4973 = vmatprep.mubr.bf16.mxu0 %v3714
      %4974 = vmatmul.mubr.bf16.gmra.mrb[0].mxu0 %v3899
      %v4975 = vpop.f32.mrb[0].mxu0
      %v4976 = vadd.f32 %v4879, %v4975
      %v4977 = vpop.f32.mrb[0].mxu0
      %v4978 = vpop.f32.mrb[0].mxu0
      %v4979 = vadd.f32 %v4882, %v4978
      %v4980 = vpop.f32.mrb[0].mxu0
      %4981 = vdwg.mxu0
      %4982 = vmatprep.subr.bf16.mxu0 0
      %4983 = vmatpush1.bf16.msra.mxu0 %v4676
      %4984 = vmatprep.subr.bf16.mxu0 0
      %4985 = vmatpush1.bf16.msra.mxu0 %v4677
      %4986 = vmatprep.subr.bf16.mxu0 0
      %4987 = vmatpush1.bf16.msra.mxu0 %v4678
      %4988 = vmatprep.subr.bf16.mxu0 0
      %4989 = vmatpush1.bf16.msra.mxu0 %v4679
      %4990 = vmatprep.subr.bf16.mxu0 0
      %4991 = vmatpush1.bf16.msra.mxu0 %v4680
      %4992 = vmatprep.subr.bf16.mxu0 0
      %4993 = vmatpush1.bf16.msra.mxu0 %v4681
      %4994 = vmatprep.subr.bf16.mxu0 0
      %4995 = vmatpush1.bf16.msra.mxu0 %v4682
      %4996 = vmatprep.subr.bf16.mxu0 0
      %4997 = vmatpush1.bf16.msra.mxu0 %v4683
      %4998 = vmatprep.subr.bf16.mxu0 0
      %4999 = vmatpush1.bf16.msra.mxu0 %v4684
      %5000 = vmatprep.subr.bf16.mxu0 0
      %5001 = vmatpush1.bf16.msra.mxu0 %v4685
      %5002 = vmatprep.subr.bf16.mxu0 0
      %5003 = vmatpush1.bf16.msra.mxu0 %v4686
      %5004 = vmatprep.subr.bf16.mxu0 0
      %5005 = vmatpush1.bf16.msra.mxu0 %v4687
      %5006 = vmatprep.subr.bf16.mxu0 0
      %5007 = vmatpush1.bf16.msra.mxu0 %v4688
      %5008 = vmatprep.subr.bf16.mxu0 0
      %5009 = vmatpush1.bf16.msra.mxu0 %v4689
      %5010 = vmatprep.subr.bf16.mxu0 0
      %5011 = vmatpush1.bf16.msra.mxu0 %v4690
      %5012 = vmatprep.subr.bf16.mxu0 0
      %5013 = vmatpush1.bf16.msra.mxu0 %v4691
      %5014 = vmatprep.mubr.bf16.mxu0 %v4030
      %5015 = vmatmul.mubr.bf16.gmra.mrb[0].mxu0 %v3919
      %v5016 = vpop.f32.mrb[0].mxu0
      %v5017 = vadd.f32 %v4920, %v5016
      %v5018 = vpop.f32.mrb[0].mxu0
      %v5019 = vpop.f32.mrb[0].mxu0
      %v5020 = vadd.f32 %v4923, %v5019
      %v5021 = vpop.f32.mrb[0].mxu0
      %5022 = vmatprep.mubr.bf16.mxu0 %v4033
      %5023 = vmatmul.mubr.bf16.gmra.mrb[0].mxu0 %v3931
      %v5024 = vpop.f32.mrb[0].mxu0
      %v5025 = vadd.f32 %v4928, %v5024
      %v5026 = vpop.f32.mrb[0].mxu0
      %v5027 = vpop.f32.mrb[0].mxu0
      %v5028 = vadd.f32 %v4931, %v5027
      %v5029 = vpop.f32.mrb[0].mxu0
      %5030 = vmatprep.mubr.bf16.mxu0 %v4036
      %5031 = vmatmul.mubr.bf16.gmra.mrb[0].mxu0 %v3943
      %v5032 = vpop.f32.mrb[0].mxu0
      %v5033 = vadd.f32 %v4936, %v5032
      %v5034 = vpop.f32.mrb[0].mxu0
      %v5035 = vpop.f32.mrb[0].mxu0
      %v5036 = vadd.f32 %v4939, %v5035
      %v5037 = vpop.f32.mrb[0].mxu0
      %5038 = vmatprep.mubr.bf16.mxu0 %v4039
      %5039 = vmatmul.mubr.bf16.gmra.mrb[0].mxu0 %v3955
      %v5040 = vpop.f32.mrb[0].mxu0
      %v5041 = vadd.f32 %v4944, %v5040
      %v5042 = vpop.f32.mrb[0].mxu0
      %v5043 = vpop.f32.mrb[0].mxu0
      %v5044 = vadd.f32 %v4947, %v5043
      %v5045 = vpop.f32.mrb[0].mxu0
      %5046 = vmatprep.mubr.bf16.mxu0 %v4042
      %5047 = vmatmul.mubr.bf16.gmra.mrb[0].mxu0 %v3967
      %v5048 = vpop.f32.mrb[0].mxu0
      %v5049 = vadd.f32 %v4952, %v5048
      %v5050 = vpop.f32.mrb[0].mxu0
      %v5051 = vpop.f32.mrb[0].mxu0
      %v5052 = vadd.f32 %v4955, %v5051
      %v5053 = vpop.f32.mrb[0].mxu0
      %5054 = vmatprep.mubr.bf16.mxu0 %v4045
      %5055 = vmatmul.mubr.bf16.gmra.mrb[0].mxu0 %v3979
      %v5056 = vpop.f32.mrb[0].mxu0
      %v5057 = vadd.f32 %v4960, %v5056
      %v5058 = vpop.f32.mrb[0].mxu0
      %v5059 = vpop.f32.mrb[0].mxu0
      %v5060 = vadd.f32 %v4963, %v5059
      %v5061 = vpop.f32.mrb[0].mxu0
      %5062 = vmatprep.mubr.bf16.mxu0 %v4048
      %5063 = vmatmul.mubr.bf16.gmra.mrb[0].mxu0 %v3991
      %v5064 = vpop.f32.mrb[0].mxu0
      %v5065 = vadd.f32 %v4968, %v5064
      %v5066 = vpop.f32.mrb[0].mxu0
      %v5067 = vpop.f32.mrb[0].mxu0
      %v5068 = vadd.f32 %v4971, %v5067
      %v5069 = vpop.f32.mrb[0].mxu0
      %5070 = vmatprep.mubr.bf16.mxu0 %v4051
      %5071 = vmatmul.mubr.bf16.gmra.mrb[0].mxu0 %v4003
      %v5072 = vpop.f32.mrb[0].mxu0
      %v5073 = vadd.f32 %v4976, %v5072
      %v5074 = vpop.f32.mrb[0].mxu0
      %v5075 = vpop.f32.mrb[0].mxu0
      %v5076 = vadd.f32 %v4979, %v5075
      %v5077 = vpop.f32.mrb[0].mxu0
      %5078 = vdwg.mxu0
      %5079 = vmatprep.subr.bf16.mxu0 0
      %5080 = vmatpush1.bf16.msra.mxu0 %v4692
      %5081 = vmatprep.subr.bf16.mxu0 0
      %5082 = vmatpush1.bf16.msra.mxu0 %v4693
      %5083 = vmatprep.subr.bf16.mxu0 0
      %5084 = vmatpush1.bf16.msra.mxu0 %v4694
      %5085 = vmatprep.subr.bf16.mxu0 0
      %5086 = vmatpush1.bf16.msra.mxu0 %v4695
      %5087 = vmatprep.subr.bf16.mxu0 0
      %5088 = vmatpush1.bf16.msra.mxu0 %v4696
      %5089 = vmatprep.subr.bf16.mxu0 0
      %5090 = vmatpush1.bf16.msra.mxu0 %v4697
      %5091 = vmatprep.subr.bf16.mxu0 0
      %5092 = vmatpush1.bf16.msra.mxu0 %v4698
      %5093 = vmatprep.subr.bf16.mxu0 0
      %5094 = vmatpush1.bf16.msra.mxu0 %v4699
      %5095 = vmatprep.subr.bf16.mxu0 0
      %5096 = vmatpush1.bf16.msra.mxu0 %v4700
      %5097 = vmatprep.subr.bf16.mxu0 0
      %5098 = vmatpush1.bf16.msra.mxu0 %v4701
      %5099 = vmatprep.subr.bf16.mxu0 0
      %5100 = vmatpush1.bf16.msra.mxu0 %v4702
      %5101 = vmatprep.subr.bf16.mxu0 0
      %5102 = vmatpush1.bf16.msra.mxu0 %v4703
      %5103 = vmatprep.subr.bf16.mxu0 0
      %5104 = vmatpush1.bf16.msra.mxu0 %v4704
      %5105 = vmatprep.subr.bf16.mxu0 0
      %5106 = vmatpush1.bf16.msra.mxu0 %v4705
      %5107 = vmatprep.subr.bf16.mxu0 0
      %5108 = vmatpush1.bf16.msra.mxu0 %v4706
      %5109 = vmatprep.subr.bf16.mxu0 0
      %5110 = vmatpush1.bf16.msra.mxu0 %v4707
      %5111 = vmatprep.mubr.bf16.mxu0 %v4071
      %5112 = vmatmul.mubr.bf16.gmra.mrb[0].mxu0 %v3732
      %v5113 = vpop.f32.mrb[0].mxu0
      %v5114 = vadd.f32 %v5017, %v5113
      %v5115 = vpop.f32.mrb[0].mxu0
      %v5116 = vpop.f32.mrb[0].mxu0
      %v5117 = vadd.f32 %v5020, %v5116
      %v5118 = vpop.f32.mrb[0].mxu0
      %5119 = vmatprep.mubr.bf16.mxu0 %v4083
      %5120 = vmatmul.mubr.bf16.gmra.mrb[0].mxu0 %v3733
      %v5121 = vpop.f32.mrb[0].mxu0
      %v5122 = vadd.f32 %v5025, %v5121
      %v5123 = vpop.f32.mrb[0].mxu0
      %v5124 = vpop.f32.mrb[0].mxu0
      %v5125 = vadd.f32 %v5028, %v5124
      %v5126 = vpop.f32.mrb[0].mxu0
      %5127 = vmatprep.mubr.bf16.mxu0 %v4095
      %5128 = vmatmul.mubr.bf16.gmra.mrb[0].mxu0 %v3734
      %v5129 = vpop.f32.mrb[0].mxu0
      %v5130 = vadd.f32 %v5033, %v5129
      %v5131 = vpop.f32.mrb[0].mxu0
      %v5132 = vpop.f32.mrb[0].mxu0
      %v5133 = vadd.f32 %v5036, %v5132
      %v5134 = vpop.f32.mrb[0].mxu0
      %5135 = vmatprep.mubr.bf16.mxu0 %v4107
      %5136 = vmatmul.mubr.bf16.gmra.mrb[0].mxu0 %v3735
      %v5137 = vpop.f32.mrb[0].mxu0
      %v5138 = vadd.f32 %v5041, %v5137
      %v5139 = vpop.f32.mrb[0].mxu0
      %v5140 = vpop.f32.mrb[0].mxu0
      %v5141 = vadd.f32 %v5044, %v5140
      %v5142 = vpop.f32.mrb[0].mxu0
      %5143 = vmatprep.mubr.bf16.mxu0 %v4119
      %5144 = vmatmul.mubr.bf16.gmra.mrb[0].mxu0 %v3736
      %v5145 = vpop.f32.mrb[0].mxu0
      %v5146 = vadd.f32 %v5049, %v5145
      %v5147 = vpop.f32.mrb[0].mxu0
      %v5148 = vpop.f32.mrb[0].mxu0
      %v5149 = vadd.f32 %v5052, %v5148
      %v5150 = vpop.f32.mrb[0].mxu0
      %5151 = vmatprep.mubr.bf16.mxu0 %v4131
      %5152 = vmatmul.mubr.bf16.gmra.mrb[0].mxu0 %v3737
      %v5153 = vpop.f32.mrb[0].mxu0
      %v5154 = vadd.f32 %v5057, %v5153
      %v5155 = vpop.f32.mrb[0].mxu0
      %v5156 = vpop.f32.mrb[0].mxu0
      %v5157 = vadd.f32 %v5060, %v5156
      %v5158 = vpop.f32.mrb[0].mxu0
      %5159 = vmatprep.mubr.bf16.mxu0 %v4143
      %5160 = vmatmul.mubr.bf16.gmra.mrb[0].mxu0 %v3738
      %v5161 = vpop.f32.mrb[0].mxu0
      %v5162 = vadd.f32 %v5065, %v5161
      %v5163 = vpop.f32.mrb[0].mxu0
      %v5164 = vpop.f32.mrb[0].mxu0
      %v5165 = vadd.f32 %v5068, %v5164
      %v5166 = vpop.f32.mrb[0].mxu0
      %5167 = vmatprep.mubr.bf16.mxu0 %v4155
      %5168 = vmatmul.mubr.bf16.gmra.mrb[0].mxu0 %v3739
      %v5169 = vpop.f32.mrb[0].mxu0
      %v5170 = vadd.f32 %v5073, %v5169
      %v5171 = vpop.f32.mrb[0].mxu0
      %v5172 = vpop.f32.mrb[0].mxu0
      %v5173 = vadd.f32 %v5076, %v5172
      %v5174 = vpop.f32.mrb[0].mxu0
      %5175 = vdwg.mxu0
      %5176 = vmatprep.subr.bf16.mxu0 0
      %5177 = vmatpush1.bf16.msra.mxu0 %v4708
      %5178 = vmatprep.subr.bf16.mxu0 0
      %5179 = vmatpush1.bf16.msra.mxu0 %v4709
      %5180 = vmatprep.subr.bf16.mxu0 0
      %5181 = vmatpush1.bf16.msra.mxu0 %v4710
      %5182 = vmatprep.subr.bf16.mxu0 0
      %5183 = vmatpush1.bf16.msra.mxu0 %v4711
      %5184 = vmatprep.subr.bf16.mxu0 0
      %5185 = vmatpush1.bf16.msra.mxu0 %v4712
      %5186 = vmatprep.subr.bf16.mxu0 0
      %5187 = vmatpush1.bf16.msra.mxu0 %v4713
      %5188 = vmatprep.subr.bf16.mxu0 0
      %5189 = vmatpush1.bf16.msra.mxu0 %v4714
      %5190 = vmatprep.subr.bf16.mxu0 0
      %5191 = vmatpush1.bf16.msra.mxu0 %v4715
      %5192 = vmatprep.subr.bf16.mxu0 0
      %5193 = vmatpush1.bf16.msra.mxu0 0
      %5194 = vmatprep.subr.bf16.mxu0 0
      %5195 = vmatpush1.bf16.msra.mxu0 0
      %5196 = vmatprep.subr.bf16.mxu0 0
      %5197 = vmatpush1.bf16.msra.mxu0 0
      %5198 = vmatprep.subr.bf16.mxu0 0
      %5199 = vmatpush1.bf16.msra.mxu0 0
      %5200 = vmatprep.subr.bf16.mxu0 0
      %5201 = vmatpush1.bf16.msra.mxu0 0
      %5202 = vmatprep.subr.bf16.mxu0 0
      %5203 = vmatpush1.bf16.msra.mxu0 0
      %5204 = vmatprep.subr.bf16.mxu0 0
      %5205 = vmatpush1.bf16.msra.mxu0 0
      %5206 = vmatprep.subr.bf16.mxu0 0
      %5207 = vmatpush1.bf16.msra.mxu0 0
      %5208 = vmatprep.mubr.bf16.mxu0 0
      %5209 = vmatmul.mubr.bf16.gmra.mrb[0].mxu0 %v4182
      %v5210 = vpop.f32.mrb[0].mxu0
      %v5211 = vadd.f32 %v5114, %v5210
      %v5212 = vpop.f32.mrb[0].mxu0
      %v5213 = vpop.f32.mrb[0].mxu0
      %v5214 = vadd.f32 %v5117, %v5213
      %v5215 = vpop.f32.mrb[0].mxu0
      %5216 = vmatprep.mubr.bf16.mxu0 0
      %5217 = vmatmul.mubr.bf16.gmra.mrb[0].mxu0 %v4185
      %v5218 = vpop.f32.mrb[0].mxu0
      %v5219 = vadd.f32 %v5122, %v5218
      %v5220 = vpop.f32.mrb[0].mxu0
      %v5221 = vpop.f32.mrb[0].mxu0
      %v5222 = vadd.f32 %v5125, %v5221
      %v5223 = vpop.f32.mrb[0].mxu0
      %5224 = vmatprep.mubr.bf16.mxu0 0
      %5225 = vmatmul.mubr.bf16.gmra.mrb[0].mxu0 %v4188
      %v5226 = vpop.f32.mrb[0].mxu0
      %v5227 = vadd.f32 %v5130, %v5226
      %v5228 = vpop.f32.mrb[0].mxu0
      %v5229 = vpop.f32.mrb[0].mxu0
      %v5230 = vadd.f32 %v5133, %v5229
      %v5231 = vpop.f32.mrb[0].mxu0
      %5232 = vmatprep.mubr.bf16.mxu0 0
      %5233 = vmatmul.mubr.bf16.gmra.mrb[0].mxu0 %v4191
      %v5234 = vpop.f32.mrb[0].mxu0
      %v5235 = vadd.f32 %v5138, %v5234
      %v5236 = vpop.f32.mrb[0].mxu0
      %v5237 = vpop.f32.mrb[0].mxu0
      %v5238 = vadd.f32 %v5141, %v5237
      %v5239 = vpop.f32.mrb[0].mxu0
      %5240 = vmatprep.mubr.bf16.mxu0 0
      %5241 = vmatmul.mubr.bf16.gmra.mrb[0].mxu0 %v4194
      %v5242 = vpop.f32.mrb[0].mxu0
      %v5243 = vadd.f32 %v5146, %v5242
      %v5244 = vpop.f32.mrb[0].mxu0
      %v5245 = vpop.f32.mrb[0].mxu0
      %v5246 = vadd.f32 %v5149, %v5245
      %v5247 = vpop.f32.mrb[0].mxu0
      %5248 = vmatprep.mubr.bf16.mxu0 0
      %5249 = vmatmul.mubr.bf16.gmra.mrb[0].mxu0 %v4197
      %v5250 = vpop.f32.mrb[0].mxu0
      %v5251 = vadd.f32 %v5154, %v5250
      %v5252 = vpop.f32.mrb[0].mxu0
      %v5253 = vpop.f32.mrb[0].mxu0
      %v5254 = vadd.f32 %v5157, %v5253
      %v5255 = vpop.f32.mrb[0].mxu0
      %5256 = vmatprep.mubr.bf16.mxu0 0
      %5257 = vmatmul.mubr.bf16.gmra.mrb[0].mxu0 %v4200
      %v5258 = vpop.f32.mrb[0].mxu0
      %v5259 = vadd.f32 %v5162, %v5258
      %v5260 = vpop.f32.mrb[0].mxu0
      %v5261 = vpop.f32.mrb[0].mxu0
      %v5262 = vadd.f32 %v5165, %v5261
      %v5263 = vpop.f32.mrb[0].mxu0
      %5264 = vmatprep.mubr.bf16.mxu0 0
      %5265 = vmatmul.mubr.bf16.gmra.mrb[0].mxu0 %v4203
      %v5266 = vpop.f32.mrb[0].mxu0
      %v5267 = vadd.f32 %v5170, %v5266
      %v5268 = vpop.f32.mrb[0].mxu0
      %v5269 = vpop.f32.mrb[0].mxu0
      %v5270 = vadd.f32 %v5173, %v5269
      %v5271 = vpop.f32.mrb[0].mxu0
      %5272 = vdwg.mxu0
      %v5273 = vld [vmem:[%s5] sm:$0x1]
      %v5275 = vlaneseq
      %v5276 = vshrl.u32 %v5275, 7
      %v5277 = vsub.s32 0, %v5276
      %v5278 = vrot.slane %v5273, %v5277
      %v5280 = vmul.f32 %v5211, %v5278
      %v5281 = vmul.f32 %v5214, %v5278
      %v5282 = vmul.f32 %v5219, %v5278
      %v5283 = vmul.f32 %v5222, %v5278
      %v5284 = vmul.f32 %v5227, %v5278
      %v5285 = vmul.f32 %v5230, %v5278
      %v5286 = vmul.f32 %v5235, %v5278
      %v5287 = vmul.f32 %v5238, %v5278
      %v5288 = vmul.f32 %v5243, %v5278
      %v5289 = vmul.f32 %v5246, %v5278
      %v5290 = vmul.f32 %v5251, %v5278
      %v5291 = vmul.f32 %v5254, %v5278
      %v5292 = vmul.f32 %v5259, %v5278
      %v5293 = vmul.f32 %v5262, %v5278
      %v5294 = vmul.f32 %v5267, %v5278
      %v5295 = vmul.f32 %v5270, %v5278
      %v5296 = vld [vmem:[%s6] sm:$0x1]
      %v5298 = vlaneseq
      %v5299 = vshrl.u32 %v5298, 7
      %v5300 = vsub.s32 0, %v5299
      %v5301 = vrot.slane %v5296, %v5300
      %v5303 = vadd.f32 %v5280, %v5301
      %v5304 = vadd.f32 %v5281, %v5301
      %v5305 = vadd.f32 %v5282, %v5301
      %v5306 = vadd.f32 %v5283, %v5301
      %v5307 = vadd.f32 %v5284, %v5301
      %v5308 = vadd.f32 %v5285, %v5301
      %v5309 = vadd.f32 %v5286, %v5301
      %v5310 = vadd.f32 %v5287, %v5301
      %v5311 = vadd.f32 %v5288, %v5301
      %v5312 = vadd.f32 %v5289, %v5301
      %v5313 = vadd.f32 %v5290, %v5301
      %v5314 = vadd.f32 %v5291, %v5301
      %v5315 = vadd.f32 %v5292, %v5301
      %v5316 = vadd.f32 %v5293, %v5301
      %v5317 = vadd.f32 %v5294, %v5301
      %v5318 = vadd.f32 %v5295, %v5301
      %v5319 = vmax.f32 %v5303, 0.0
      %v5320 = vmax.f32 %v5304, 0.0
      %v5321 = vmax.f32 %v5305, 0.0
      %v5322 = vmax.f32 %v5306, 0.0
      %v5323 = vmax.f32 %v5307, 0.0
      %v5324 = vmax.f32 %v5308, 0.0
      %v5325 = vmax.f32 %v5309, 0.0
      %v5326 = vmax.f32 %v5310, 0.0
      %v5327 = vmax.f32 %v5311, 0.0
      %v5328 = vmax.f32 %v5312, 0.0
      %v5329 = vmax.f32 %v5313, 0.0
      %v5330 = vmax.f32 %v5314, 0.0
      %v5331 = vmax.f32 %v5315, 0.0
      %v5332 = vmax.f32 %v5316, 0.0
      %v5333 = vmax.f32 %v5317, 0.0
      %v5334 = vmax.f32 %v5318, 0.0
      %5335 = vst [vmem:[%s302] sm:$0xff] %v5319
      %5336 = vst [vmem:[%s302 + $0x8] sm:$0xff] %v5320
      %5337 = vst [vmem:[%s302 + $0x10] sm:$0xff] %v5321
      %5338 = vst [vmem:[%s302 + $0x18] sm:$0xff] %v5322
      %5339 = vst [vmem:[%s302 + $0x20] sm:$0xff] %v5323
      %5340 = vst [vmem:[%s302 + $0x28] sm:$0xff] %v5324
      %5341 = vst [vmem:[%s302 + $0x30] sm:$0xff] %v5325
      %5342 = vst [vmem:[%s302 + $0x38] sm:$0xff] %v5326
      %5343 = vst [vmem:[%s302 + $0x40] sm:$0xff] %v5327
      %5344 = vst [vmem:[%s302 + $0x48] sm:$0xff] %v5328
      %5345 = vst [vmem:[%s302 + $0x50] sm:$0xff] %v5329
      %5346 = vst [vmem:[%s302 + $0x58] sm:$0xff] %v5330
      %5347 = vst [vmem:[%s302 + $0x60] sm:$0xff] %v5331
      %5348 = vst [vmem:[%s302 + $0x68] sm:$0xff] %v5332
      %5349 = vst [vmem:[%s302 + $0x70] sm:$0xff] %v5333
      %5350 = vst [vmem:[%s302 + $0x78] sm:$0xff] %v5334
      %s5351 = smul.u32 8, %s23
      %p5352 = scmp.lt.s32.totalorder %s22, 1
      %s5353 = scalar_select %p5352, %s22, 1
      %p5354 = scmp.lt.s32.totalorder %s5351, 15
      %s5355 = scalar_select %p5354, %s5351, 15
      %s5356 = smul.addr %s5355, 2
      %s5357 = smul.addr %s5353, 32
      %s5358 = sadd.s32 %s5356, %s5357
      %s5359 = smul.addr %s5358, 8
      %s5360 = scalar_lea.vmem %s7, %s5359
      // Predicated region
      $region49: #{double_conv_forward.1} parent=47 // pred_check
        %p5361 = pneg %p202
      $region50: #{double_conv_forward.1} parent=47 // pred_check_branch
        %5363 = sbr.rel (%p5361) target = $region52
      $region51: #{double_conv_forward.1} parent=47 // pred_region
        %s5364 = smul.u32 8, %s23
      $region52: #{double_conv_forward.1} parent=47 // pred_fallthru
        _
    $region48: #{double_conv_forward.1} parent=5 // pred_fallthru
      _
    %p5365 = scmp.le.s32.totalorder 2, %s13
    // Predicated region
    $region53: #{double_conv_forward.1} parent=5 // pred_check
      %p5366 = pneg %p5365
    $region54: #{double_conv_forward.1} parent=5 // pred_check_branch
      %5368 = sbr.rel (%p5366) target = $region56
    $region55: #{double_conv_forward.1} parent=5 // pred_region
      %s5369 = ssub.s32 %s13, 2
      // Predicated region
      $region57: #{double_conv_forward.1} parent=55 // pred_check
        %p5370 = pneg %p208
      $region58: #{double_conv_forward.1} parent=55 // pred_check_branch
        %5372 = sbr.rel (%p5370) target = $region60
      $region59: #{double_conv_forward.1} parent=55 // pred_region
        %s5373 = smul.u32 8, %s25
        %p5374 = scmp.lt.s32.totalorder %s24, 1
        %s5375 = scalar_select %p5374, %s24, 1
        %p5376 = scmp.lt.s32.totalorder %s5373, 15
        %s5377 = scalar_select %p5376, %s5373, 15
        %s5378 = smul.addr %s5377, 2
        %s5379 = smul.addr %s5375, 32
        %s5380 = sadd.s32 %s5378, %s5379
        %s5381 = smul.addr %s5380, 8
        %s5382 = scalar_lea.vmem %s7, %s5381
      $region60: #{double_conv_forward.1} parent=55 // pred_fallthru
        _
    $region56: #{double_conv_forward.1} parent=5 // pred_fallthru
      _
  $region6: #{double_conv_forward.1} parent=0 // loop_footer
    %s17 = sadd.s32 1, %s13
  $region7: #{double_conv_forward.1} parent=0 // loop_footer_branch
    %12 = sbr.rel target = $region3
  $region8: #{double_conv_forward.1} parent=0 // loop_exit
    _

</llo_original>
